<compile_context>
chip_gen: v5e
topology: v5e:2x2
jax: 0.10.0
libtpu: 0.0.40
codegen_flags: <defaults>
</compile_context>

<pallas_src>
import jax
import jax.numpy as jnp
from jax.experimental import pallas as pl
from jax.experimental.pallas import tpu as pltpu


LANE = 128  # all GEMM output-channel dims are padded to this (lane-dense stores)


# ---------------------------------------------------------------------------
# Helpers
# ---------------------------------------------------------------------------

def _round_up(x: int, m: int) -> int:
    return ((x + m - 1) // m) * m


def _vmem_budget_bytes() -> int:
    """Generation-aware VMEM budget (v7x has 64 MiB per TensorCore; v5e/v6e 128)."""
    cap = 64 * 1024 * 1024  # conservative default if the query fails
    try:
        info = pltpu.get_tpu_info()
        cap = int(getattr(info, "vmem_capacity_bytes", cap))
    except Exception:
        pass
    # 75% of capacity, clamped to [32 MiB, 96 MiB].
    return max(32 * 1024 * 1024, min((cap * 3) // 4, 96 * 1024 * 1024))


def _pick_tile_m(m: int, row_bytes: int, const_bytes: int, budget: int,
                 target: int = 1024) -> int:
    """Row tile: as large as possible (<= target), multiple of 8, double-buffered
    streamed tiles + constant blocks must fit the VMEM budget."""
    tm = min(target, _round_up(m, 8))
    tm = _round_up(tm, 8)
    while tm > 8 and 2 * tm * row_bytes + const_bytes > (budget * 4) // 5:
        tm = max(8, _round_up(tm // 2, 8))
    return tm


def _pad_to(a, rows=None, cols=None):
    r = a.shape[0] if rows is None else rows
    c = a.shape[1] if cols is None else cols
    return jnp.pad(a, ((0, r - a.shape[0]), (0, c - a.shape[1])))


def _im2col(x_nhwc, k: int, pad: int):
    """Extract k*k patches (PyTorch cross-correlation order: (dy, dx, c_in))."""
    n, h, w, c = x_nhwc.shape
    xp = jnp.pad(x_nhwc, ((0, 0), (pad, pad), (pad, pad), (0, 0)))
    h_out = h + 2 * pad - k + 1
    w_out = w + 2 * pad - k + 1
    cols = []
    for dy in range(k):
        for dx in range(k):
            cols.append(xp[:, dy:dy + h_out, dx:dx + w_out, :])
    patches = jnp.concatenate(cols, axis=-1)            # (n, h_out, w_out, k*k*c)
    return patches.reshape(n * h_out * w_out, k * k * c), (n, h_out, w_out)


# ---------------------------------------------------------------------------
# Pallas kernels
# ---------------------------------------------------------------------------

def _conv12_kernel(p_ref, w1_ref, b1_ref, w2_ref, b2_ref, o_ref):
    # p_ref: (tm, K1)  w1_ref: (K1, 128)  w2_ref: (128, 128)  biases: (1, 128)
    # DEFAULT MXU precision (single bf16 pass), f32 accumulation.
    h = jnp.dot(p_ref[...], w1_ref[...], preferred_element_type=jnp.float32)
    h = jnp.maximum(h + b1_ref[...], 0.0)                        # conv1 + ReLU
    h = jnp.dot(h, w2_ref[...], preferred_element_type=jnp.float32)
    h = jnp.maximum(h + b2_ref[...], 0.0)                        # conv2 (1x1) + ReLU
    o_ref[...] = h.astype(o_ref.dtype)


def _conv3_mask_kernel(p_ref, w_ref, b_ref, m_ref, o_ref):
    # p_ref: (tm, K3)  w_ref: (K3, 128)  b_ref: (1, 128)  m_ref: (tm, 1)
    acc = jnp.dot(p_ref[...], w_ref[...], preferred_element_type=jnp.float32)
    acc = acc + b_ref[...]
    o_ref[...] = (acc * m_ref[...]).astype(o_ref.dtype)          # fused mask mult


# ---------------------------------------------------------------------------
# pallas_call wrappers
# ---------------------------------------------------------------------------

def _conv12_gemm(patches, w1p, b1p, w2p, b2p):
    """(M, K1) -> ReLU(ReLU(patches @ W1 + b1) @ W2 + b2), C_out padded to 128."""
    m, k1 = patches.shape
    budget = _vmem_budget_bytes()
    row_bytes = 4 * (k1 + LANE)
    const_bytes = 4 * (k1 * LANE + LANE * LANE + 2 * LANE)
    tm = _pick_tile_m(m, row_bytes, const_bytes, budget)
    mp = _round_up(m, tm)
    if mp != m:                                   # cdiv grid via zero-padded M
        patches = jnp.pad(patches, ((0, mp - m), (0, 0)))
    grid = (mp // tm,)

    flops = 2 * mp * k1 * LANE + 2 * mp * LANE * LANE
    bytes_accessed = 4 * (mp * k1 + k1 * LANE + LANE * LANE + 2 * LANE + mp * LANE)

    out = pl.pallas_call(
        _conv12_kernel,
        out_shape=jax.ShapeDtypeStruct((mp, LANE), jnp.float32),
        grid_spec=pltpu.PrefetchScalarGridSpec(
            num_scalar_prefetch=0,
            grid=grid,
            in_specs=[
                pl.BlockSpec((tm, k1), lambda i: (i, 0)),       # patch rows (streamed)
                pl.BlockSpec((k1, LANE), lambda i: (0, 0)),     # W1 (constant block)
                pl.BlockSpec((1, LANE), lambda i: (0, 0)),      # b1
                pl.BlockSpec((LANE, LANE), lambda i: (0, 0)),   # W2 (1x1 conv)
                pl.BlockSpec((1, LANE), lambda i: (0, 0)),      # b2
            ],
            out_specs=pl.BlockSpec((tm, LANE), lambda i: (i, 0)),
        ),
        compiler_params=pltpu.CompilerParams(
            dimension_semantics=("parallel",),
            vmem_limit_bytes=budget,
        ),
        cost_estimate=pl.CostEstimate(
            flops=flops, transcendentals=0, bytes_accessed=bytes_accessed),
    )(patches, w1p, b1p, w2p, b2p)
    return out[:m]


def _conv3_gemm(patches, w3p, b3p, mask):
    """(M, K3) -> (patches @ W3 + b3) * mask, C_out padded to 128 (lane-dense)."""
    m, k3 = patches.shape
    budget = _vmem_budget_bytes()
    row_bytes = 4 * (k3 + LANE + 1)
    const_bytes = 4 * (k3 * LANE + LANE)
    tm = _pick_tile_m(m, row_bytes, const_bytes, budget)
    mp = _round_up(m, tm)
    if mp != m:
        patches = jnp.pad(patches, ((0, mp - m), (0, 0)))
        mask = jnp.pad(mask, ((0, mp - m), (0, 0)))
    grid = (mp // tm,)

    flops = 2 * mp * k3 * LANE
    bytes_accessed = 4 * (mp * k3 + k3 * LANE + LANE + mp + mp * LANE)

    out = pl.pallas_call(
        _conv3_mask_kernel,
        out_shape=jax.ShapeDtypeStruct((mp, LANE), jnp.float32),
        grid_spec=pltpu.PrefetchScalarGridSpec(
            num_scalar_prefetch=0,
            grid=grid,
            in_specs=[
                pl.BlockSpec((tm, k3), lambda i: (i, 0)),       # patch rows (streamed)
                pl.BlockSpec((k3, LANE), lambda i: (0, 0)),     # W3 (constant block)
                pl.BlockSpec((1, LANE), lambda i: (0, 0)),      # b3
                pl.BlockSpec((tm, 1), lambda i: (i, 0)),        # mask rows
            ],
            out_specs=pl.BlockSpec((tm, LANE), lambda i: (i, 0)),
        ),
        compiler_params=pltpu.CompilerParams(
            dimension_semantics=("parallel",),
            vmem_limit_bytes=budget,
        ),
        cost_estimate=pl.CostEstimate(
            flops=flops, transcendentals=0, bytes_accessed=bytes_accessed),
    )(patches, w3p, b3p, mask)
    return out[:m]


# ---------------------------------------------------------------------------
# Forward pass
# ---------------------------------------------------------------------------

def nir_feat_extrator_forward(x_nchw, mask_nchw, params):
    """Pallas implementation of NirFeatExtrator.forward(x, mask)."""
    n, c_in, h, w = x_nchw.shape
    x = jnp.transpose(x_nchw, (0, 2, 3, 1)).astype(jnp.float32)          # NHWC

    # ---- conv1 (9x9, pad 2) + ReLU + conv2 (1x1) + ReLU, fused in one kernel ----
    p1, (_, h1, w1) = _im2col(x, 9, 2)                                   # (M1, 81*c_in)
    c1 = params["w1"].shape[0]                                           # 96
    c2 = params["w2"].shape[0]                                           # 48
    k1 = p1.shape[1]
    w1m = jnp.transpose(params["w1"], (2, 3, 1, 0)).reshape(k1, c1).astype(jnp.float32)
    w2m = jnp.transpose(params["w2"], (2, 3, 1, 0)).reshape(c1, c2).astype(jnp.float32)
    w1p = _pad_to(w1m, cols=LANE)                                        # (81, 128)
    b1p = _pad_to(params["b1"].reshape(1, c1).astype(jnp.float32), cols=LANE)
    w2p = _pad_to(w2m, rows=LANE, cols=LANE)                             # (128, 128)
    b2p = _pad_to(params["b2"].reshape(1, c2).astype(jnp.float32), cols=LANE)

    y12 = _conv12_gemm(p1, w1p, b1p, w2p, b2p)[:, :c2]                   # (M1, 48)
    y12 = y12.reshape(n, h1, w1, c2)

    # conv2 has padding=2 on a 1x1 kernel: output spatial is (h1+4, w1+4) and the
    # outer 2-pixel ring equals ReLU(b2) (zero input * W + bias, then ReLU).
    ring = jnp.maximum(params["b2"], 0.0).astype(jnp.float32).reshape(1, 1, 1, c2)
    y2 = jnp.broadcast_to(ring, (n, h1 + 4, w1 + 4, c2))
    y2 = y2.at[:, 2:2 + h1, 2:2 + w1, :].set(y12)                        # (n, h, w, 48)

    # ---- conv3 (5x5, pad 2) with the mask multiply fused into the epilogue ----
    p3, (_, h3, w3) = _im2col(y2, 5, 2)                                  # (M3, 1200)
    k3 = p3.shape[1]
    w3m = jnp.transpose(params["w3"], (2, 3, 1, 0)).reshape(k3, 1).astype(jnp.float32)
    w3p = _pad_to(w3m, cols=LANE)                                        # (1200, 128)
    b3p = _pad_to(params["b3"].reshape(1, 1).astype(jnp.float32), cols=LANE)
    mask_flat = jnp.transpose(mask_nchw, (0, 2, 3, 1)).astype(jnp.float32)
    mask_flat = mask_flat.reshape(-1, 1)                                 # (M3, 1)

    y3 = _conv3_gemm(p3, w3p, b3p, mask_flat)[:, :1]                     # (M3, 1)
    y3 = y3.reshape(n, h3, w3, 1)
    return jnp.transpose(y3, (0, 3, 1, 2))                               # back to NCHW


# ---------------------------------------------------------------------------
# Pure-JAX reference (ground truth, f32-exact conv)
# ---------------------------------------------------------------------------

def _ref_forward(x, mask, params):
    def conv(inp, w, b, pad):
        y = jax.lax.conv_general_dilated(
            inp, w, window_strides=(1, 1), padding=[(pad, pad), (pad, pad)],
            dimension_numbers=("NCHW", "OIHW", "NCHW"),
            precision=jax.lax.Precision.HIGHEST)
        return y + b.reshape(1, -1, 1, 1)

    y = jax.nn.relu(conv(x, params["w1"], params["b1"], 2))
    y = jax.nn.relu(conv(y, params["w2"], params["b2"], 2))
    y = conv(y, params["w3"], params["b3"], 2)
    return y * mask


# ---------------------------------------------------------------------------
# Demo / self-test
# ---------------------------------------------------------------------------

if __name__ == "__main__":
    key = jax.random.PRNGKey(0)
    N, C, H, W = 2, 1, 16, 16            # first conv takes 1 input channel
    ks = jax.random.split(key, 8)

    x = jax.random.normal(ks[0], (N, C, H, W), dtype=jnp.float32)
    mask = (jax.random.uniform(ks[1], (N, C, H, W)) > 0.5).astype(jnp.float32)

    params = {
        "w1": jax.random.normal(ks[2], (96, 1, 9, 9), jnp.float32) * (1.0 / (1 * 9 * 9) ** 0.5),
        "b1": jax.random.normal(ks[3], (96,), jnp.float32) * 0.1,
        "w2": jax.random.normal(ks[4], (48, 96, 1, 1), jnp.float32) * (1.0 / 96 ** 0.5),
        "b2": jax.random.normal(ks[5], (48,), jnp.float32) * 0.1,
        "w3": jax.random.normal(ks[6], (1, 48, 5, 5), jnp.float32) * (1.0 / (48 * 5 * 5) ** 0.5),
        "b3": jax.random.normal(ks[7], (1,), jnp.float32) * 0.1,
    }

    fwd = jax.jit(nir_feat_extrator_forward)
    out = jax.block_until_ready(fwd(x, mask, params))

    ref = _ref_forward(x, mask, params)
    assert out.shape == (N, 1, H, W), out.shape
    max_err = float(jnp.max(jnp.abs(out - ref)))
    # Tolerance accounts for single-pass bf16 MXU (DEFAULT precision) vs the f32
    # HIGHEST-precision reference; structural errors would be O(1).
    assert jnp.allclose(out, ref, atol=2e-2, rtol=2e-2), f"max abs err = {max_err}"

    print("KERNEL_OK")
</pallas_src>

<mosaic_0001>
module attributes {stable_mosaic.version = 11 : i64} {
  func.func @_conv12_kernel(%arg0: i32, %arg1: memref<288x81xf32, #tpu.memory_space<vmem>>, %arg2: memref<81x128xf32, #tpu.memory_space<vmem>>, %arg3: memref<1x128xf32, #tpu.memory_space<vmem>>, %arg4: memref<128x128xf32, #tpu.memory_space<vmem>>, %arg5: memref<1x128xf32, #tpu.memory_space<vmem>>, %arg6: memref<288x128xf32, #tpu.memory_space<vmem>>) attributes {dimension_semantics = [#tpu.dimension_semantics<parallel>], iteration_bounds = array<i64: 1>, scalar_prefetch = 0 : i64, scratch_operands = 0 : i64, tpu.core_type = #tpu.core_type<tc>, window_params = [{transform_indices = @transform_0, window_bounds = array<i64: 288, 81>}, {pipeline_mode = #tpu.pipeline_mode<synchronous>, transform_indices = @transform_1, window_bounds = array<i64: 81, 128>}, {pipeline_mode = #tpu.pipeline_mode<synchronous>, transform_indices = @transform_2, window_bounds = array<i64: 1, 128>}, {pipeline_mode = #tpu.pipeline_mode<synchronous>, transform_indices = @transform_3, window_bounds = array<i64: 128, 128>}, {pipeline_mode = #tpu.pipeline_mode<synchronous>, transform_indices = @transform_4, window_bounds = array<i64: 1, 128>}, {transform_indices = @transform_5, window_bounds = array<i64: 288, 128>}]} {
    %c0 = arith.constant 0 : index
    %c0_0 = arith.constant 0 : index
    %0 = vector.load %arg1[%c0, %c0_0] : memref<288x81xf32, #tpu.memory_space<vmem>>, vector<288x81xf32>
    %c0_1 = arith.constant 0 : index
    %c0_2 = arith.constant 0 : index
    %1 = vector.load %arg2[%c0_1, %c0_2] : memref<81x128xf32, #tpu.memory_space<vmem>>, vector<81x128xf32>
    %cst = arith.constant dense<0.000000e+00> : vector<288x128xf32>
    %2 = tpu.matmul %0, %1, %cst {dimension_numbers = #tpu.dot_dimension_numbers<[1], [0], [0], [1], [0, 0, 1, 1], [], []>} : vector<288x81xf32>, vector<81x128xf32>, vector<288x128xf32> -> vector<288x128xf32>
    %c0_3 = arith.constant 0 : index
    %c0_4 = arith.constant 0 : index
    %3 = vector.load %arg3[%c0_3, %c0_4] : memref<1x128xf32, #tpu.memory_space<vmem>>, vector<1x128xf32>
    %4 = vector.broadcast %3 : vector<1x128xf32> to vector<288x128xf32>
    %5 = arith.addf %2, %4 : vector<288x128xf32>
    %cst_5 = arith.constant 0.000000e+00 : f32
    %6 = vector.broadcast %cst_5 : f32 to vector<288x128xf32>
    %7 = arith.maximumf %5, %6 : vector<288x128xf32>
    %c0_6 = arith.constant 0 : index
    %c0_7 = arith.constant 0 : index
    %8 = vector.load %arg4[%c0_6, %c0_7] : memref<128x128xf32, #tpu.memory_space<vmem>>, vector<128x128xf32>
    %cst_8 = arith.constant dense<0.000000e+00> : vector<288x128xf32>
    %9 = tpu.matmul %7, %8, %cst_8 {dimension_numbers = #tpu.dot_dimension_numbers<[1], [0], [0], [1], [0, 0, 1, 1], [], []>} : vector<288x128xf32>, vector<128x128xf32>, vector<288x128xf32> -> vector<288x128xf32>
    %c0_9 = arith.constant 0 : index
    %c0_10 = arith.constant 0 : index
    %10 = vector.load %arg5[%c0_9, %c0_10] : memref<1x128xf32, #tpu.memory_space<vmem>>, vector<1x128xf32>
    %11 = vector.broadcast %10 : vector<1x128xf32> to vector<288x128xf32>
    %12 = arith.addf %9, %11 : vector<288x128xf32>
    %cst_11 = arith.constant 0.000000e+00 : f32
    %13 = vector.broadcast %cst_11 : f32 to vector<288x128xf32>
    %14 = arith.maximumf %12, %13 : vector<288x128xf32>
    %c0_12 = arith.constant 0 : index
    %c0_13 = arith.constant 0 : index
    %15 = vector.load %arg6[%c0_12, %c0_13] : memref<288x128xf32, #tpu.memory_space<vmem>>, vector<288x128xf32>
    tpu.vector_store %arg6[%c0_12, %c0_13], %14 {strides = array<i32>} : memref<288x128xf32, #tpu.memory_space<vmem>>, vector<288x128xf32>,
    return
  }
  func.func @transform_0(%arg0: i32) -> (i32, i32) {
    %c0_i32 = arith.constant 0 : i32
    %c0_i32_0 = arith.constant 0 : i32
    return %arg0, %c0_i32 : i32, i32
  }
  func.func @transform_1(%arg0: i32) -> (i32, i32) {
    %c0_i32 = arith.constant 0 : i32
    %c0_i32_0 = arith.constant 0 : i32
    %c0_i32_1 = arith.constant 0 : i32
    return %c0_i32, %c0_i32_0 : i32, i32
  }
  func.func @transform_2(%arg0: i32) -> (i32, i32) {
    %c0_i32 = arith.constant 0 : i32
    %c0_i32_0 = arith.constant 0 : i32
    %c0_i32_1 = arith.constant 0 : i32
    return %c0_i32, %c0_i32_0 : i32, i32
  }
  func.func @transform_3(%arg0: i32) -> (i32, i32) {
    %c0_i32 = arith.constant 0 : i32
    %c0_i32_0 = arith.constant 0 : i32
    %c0_i32_1 = arith.constant 0 : i32
    return %c0_i32, %c0_i32_0 : i32, i32
  }
  func.func @transform_4(%arg0: i32) -> (i32, i32) {
    %c0_i32 = arith.constant 0 : i32
    %c0_i32_0 = arith.constant 0 : i32
    %c0_i32_1 = arith.constant 0 : i32
    return %c0_i32, %c0_i32_0 : i32, i32
  }
  func.func @transform_5(%arg0: i32) -> (i32, i32) {
    %c0_i32 = arith.constant 0 : i32
    %c0_i32_0 = arith.constant 0 : i32
    return %arg0, %c0_i32 : i32, i32
  }
}

module attributes {stable_mosaic.version = 11 : i64} {
  func.func @_conv3_mask_kernel(%arg0: i32, %arg1: memref<512x1200xf32, #tpu.memory_space<vmem>>, %arg2: memref<1200x128xf32, #tpu.memory_space<vmem>>, %arg3: memref<1x128xf32, #tpu.memory_space<vmem>>, %arg4: memref<512x1xf32, #tpu.memory_space<vmem>>, %arg5: memref<512x128xf32, #tpu.memory_space<vmem>>) attributes {dimension_semantics = [#tpu.dimension_semantics<parallel>], iteration_bounds = array<i64: 1>, scalar_prefetch = 0 : i64, scratch_operands = 0 : i64, tpu.core_type = #tpu.core_type<tc>, window_params = [{transform_indices = @transform_0, window_bounds = array<i64: 512, 1200>}, {pipeline_mode = #tpu.pipeline_mode<synchronous>, transform_indices = @transform_1, window_bounds = array<i64: 1200, 128>}, {pipeline_mode = #tpu.pipeline_mode<synchronous>, transform_indices = @transform_2, window_bounds = array<i64: 1, 128>}, {transform_indices = @transform_3, window_bounds = array<i64: 512, 1>}, {transform_indices = @transform_4, window_bounds = array<i64: 512, 128>}]} {
    %c0 = arith.constant 0 : index
    %c0_0 = arith.constant 0 : index
    %0 = vector.load %arg1[%c0, %c0_0] : memref<512x1200xf32, #tpu.memory_space<vmem>>, vector<512x1200xf32>
    %c0_1 = arith.constant 0 : index
    %c0_2 = arith.constant 0 : index
    %1 = vector.load %arg2[%c0_1, %c0_2] : memref<1200x128xf32, #tpu.memory_space<vmem>>, vector<1200x128xf32>
    %cst = arith.constant dense<0.000000e+00> : vector<512x128xf32>
    %2 = tpu.matmul %0, %1, %cst {dimension_numbers = #tpu.dot_dimension_numbers<[1], [0], [0], [1], [0, 0, 1, 1], [], []>} : vector<512x1200xf32>, vector<1200x128xf32>, vector<512x128xf32> -> vector<512x128xf32>
    %c0_3 = arith.constant 0 : index
    %c0_4 = arith.constant 0 : index
    %3 = vector.load %arg3[%c0_3, %c0_4] : memref<1x128xf32, #tpu.memory_space<vmem>>, vector<1x128xf32>
    %4 = vector.broadcast %3 : vector<1x128xf32> to vector<512x128xf32>
    %5 = arith.addf %2, %4 : vector<512x128xf32>
    %c0_5 = arith.constant 0 : index
    %c0_6 = arith.constant 0 : index
    %6 = vector.load %arg4[%c0_5, %c0_6] : memref<512x1xf32, #tpu.memory_space<vmem>>, vector<512x1xf32>
    %7 = vector.broadcast %6 : vector<512x1xf32> to vector<512x128xf32>
    %8 = arith.mulf %5, %7 : vector<512x128xf32>
    %c0_7 = arith.constant 0 : index
    %c0_8 = arith.constant 0 : index
    %9 = vector.load %arg5[%c0_7, %c0_8] : memref<512x128xf32, #tpu.memory_space<vmem>>, vector<512x128xf32>
    tpu.vector_store %arg5[%c0_7, %c0_8], %8 {strides = array<i32>} : memref<512x128xf32, #tpu.memory_space<vmem>>, vector<512x128xf32>,
    return
  }
  func.func @transform_0(%arg0: i32) -> (i32, i32) {
    %c0_i32 = arith.constant 0 : i32
    %c0_i32_0 = arith.constant 0 : i32
    return %arg0, %c0_i32 : i32, i32
  }
  func.func @transform_1(%arg0: i32) -> (i32, i32) {
    %c0_i32 = arith.constant 0 : i32
    %c0_i32_0 = arith.constant 0 : i32
    %c0_i32_1 = arith.constant 0 : i32
    return %c0_i32, %c0_i32_0 : i32, i32
  }
  func.func @transform_2(%arg0: i32) -> (i32, i32) {
    %c0_i32 = arith.constant 0 : i32
    %c0_i32_0 = arith.constant 0 : i32
    %c0_i32_1 = arith.constant 0 : i32
    return %c0_i32, %c0_i32_0 : i32, i32
  }
  func.func @transform_3(%arg0: i32) -> (i32, i32) {
    %c0_i32 = arith.constant 0 : i32
    %c0_i32_0 = arith.constant 0 : i32
    return %arg0, %c0_i32 : i32, i32
  }
  func.func @transform_4(%arg0: i32) -> (i32, i32) {
    %c0_i32 = arith.constant 0 : i32
    %c0_i32_0 = arith.constant 0 : i32
    return %arg0, %c0_i32 : i32, i32
  }
}

</mosaic_0001>

<llo_original>
// kernel: nir_feat_extrator_forward.2
$region0: #{nir_feat_extrator_forward.2}
  #allocation0 [shape = 'u32[]', space=smem, size = 0x4, offset = 0x4, fixed_abs, tag = 'smem constant byte address 0x4 - core index']
  #allocation1 [shape = 'u32[72,128]{1,0:T(1,128)}', space=vmem, size = 0x9000, scoped, tag = 'internal scratch']
  %s0 = inlined_call_operand.vmem [shape: f32[288,81], index: 0, kind: input, shape index: {}]
  %s1 = inlined_call_operand.vmem [shape: f32[81,128], index: 1, kind: input, shape index: {}]
  %s2 = inlined_call_operand.vmem [shape: f32[1,128], index: 2, kind: input, shape index: {}]
  %s3 = inlined_call_operand.vmem [shape: f32[128,128], index: 3, kind: input, shape index: {}]
  %s4 = inlined_call_operand.vmem [shape: f32[1,128], index: 4, kind: input, shape index: {}]
  %s5 = inlined_call_operand.vmem [shape: f32[288,128], index: 5, kind: output, shape index: {}]
  %s6 = sld [smem:[#allocation0]]
  $region30: #{nir_feat_extrator_forward.2} parent=0
    _
  %s8 = ssub.s32 1, %s6
  %s9 = scalar_select 0, %s8, %s6
  // Predicated region
  $region2: #{nir_feat_extrator_forward.2} parent=0 // pred_check
    _
  $region3: #{nir_feat_extrator_forward.2} parent=0 // pred_check_branch
    %11 = sbr.rel (0) target = $region5
  $region4: #{nir_feat_extrator_forward.2} parent=0 // pred_region
    _
  $region5: #{nir_feat_extrator_forward.2} parent=0 // pred_fallthru
    _
  // Predicated region
  $region6: #{nir_feat_extrator_forward.2} parent=0 // pred_check
    _
  $region7: #{nir_feat_extrator_forward.2} parent=0 // pred_check_branch
    %13 = sbr.rel (0) target = $region9
  $region8: #{nir_feat_extrator_forward.2} parent=0 // pred_region
    _
  $region9: #{nir_feat_extrator_forward.2} parent=0 // pred_fallthru
    _
  // Predicated region
  $region10: #{nir_feat_extrator_forward.2} parent=0 // pred_check
    _
  $region11: #{nir_feat_extrator_forward.2} parent=0 // pred_check_branch
    %15 = sbr.rel (0) target = $region13
  $region12: #{nir_feat_extrator_forward.2} parent=0 // pred_region
    _
  $region13: #{nir_feat_extrator_forward.2} parent=0 // pred_fallthru
    _
  // Predicated region
  $region14: #{nir_feat_extrator_forward.2} parent=0 // pred_check
    _
  $region15: #{nir_feat_extrator_forward.2} parent=0 // pred_check_branch
    %17 = sbr.rel (0) target = $region17
  $region16: #{nir_feat_extrator_forward.2} parent=0 // pred_region
    _
  $region17: #{nir_feat_extrator_forward.2} parent=0 // pred_fallthru
    _
  // Predicated region
  $region18: #{nir_feat_extrator_forward.2} parent=0 // pred_check
    _
  $region19: #{nir_feat_extrator_forward.2} parent=0 // pred_check_branch
    %19 = sbr.rel (0) target = $region21
  $region20: #{nir_feat_extrator_forward.2} parent=0 // pred_region
    _
  $region21: #{nir_feat_extrator_forward.2} parent=0 // pred_fallthru
    _
  %v20 = vld [vmem:[%s0] sm:$0xff]
  %v21 = vld [vmem:[%s0 + $0x8] sm:$0xff]
  %v22 = vld [vmem:[%s0 + $0x10] sm:$0xff]
  %v23 = vld [vmem:[%s0 + $0x18] sm:$0xff]
  %v24 = vld [vmem:[%s0 + $0x20] sm:$0xff]
  %v25 = vld [vmem:[%s0 + $0x28] sm:$0xff]
  %v26 = vld [vmem:[%s0 + $0x30] sm:$0xff]
  %v27 = vld [vmem:[%s0 + $0x38] sm:$0xff]
  %v28 = vld [vmem:[%s0 + $0x40] sm:$0xff]
  %v29 = vld [vmem:[%s0 + $0x48] sm:$0xff]
  %v30 = vld [vmem:[%s0 + $0x50] sm:$0xff]
  %v31 = vld [vmem:[%s0 + $0x58] sm:$0xff]
  %v32 = vld [vmem:[%s0 + $0x60] sm:$0xff]
  %v33 = vld [vmem:[%s0 + $0x68] sm:$0xff]
  %v34 = vld [vmem:[%s0 + $0x70] sm:$0xff]
  %v35 = vld [vmem:[%s0 + $0x78] sm:$0xff]
  %v36 = vld [vmem:[%s0 + $0x80] sm:$0xff]
  %v37 = vld [vmem:[%s0 + $0x88] sm:$0xff]
  %v38 = vld [vmem:[%s0 + $0x90] sm:$0xff]
  %v39 = vld [vmem:[%s0 + $0x98] sm:$0xff]
  %v40 = vld [vmem:[%s0 + $0xa0] sm:$0xff]
  %v41 = vld [vmem:[%s0 + $0xa8] sm:$0xff]
  %v42 = vld [vmem:[%s0 + $0xb0] sm:$0xff]
  %v43 = vld [vmem:[%s0 + $0xb8] sm:$0xff]
  %v44 = vld [vmem:[%s0 + $0xc0] sm:$0xff]
  %v45 = vld [vmem:[%s0 + $0xc8] sm:$0xff]
  %v46 = vld [vmem:[%s0 + $0xd0] sm:$0xff]
  %v47 = vld [vmem:[%s0 + $0xd8] sm:$0xff]
  %v48 = vld [vmem:[%s0 + $0xe0] sm:$0xff]
  %v49 = vld [vmem:[%s0 + $0xe8] sm:$0xff]
  %v50 = vld [vmem:[%s0 + $0xf0] sm:$0xff]
  %v51 = vld [vmem:[%s0 + $0xf8] sm:$0xff]
  %v52 = vld [vmem:[%s0 + $0x100] sm:$0xff]
  %v53 = vld [vmem:[%s0 + $0x108] sm:$0xff]
  %v54 = vld [vmem:[%s0 + $0x110] sm:$0xff]
  %v55 = vld [vmem:[%s0 + $0x118] sm:$0xff]
  %v56 = vld [vmem:[%s1] sm:$0xff]
  %v57 = vld [vmem:[%s1 + $0x8] sm:$0xff]
  %v58 = vld [vmem:[%s1 + $0x10] sm:$0xff]
  %v59 = vld [vmem:[%s1 + $0x18] sm:$0xff]
  %v60 = vld [vmem:[%s1 + $0x20] sm:$0xff]
  %v61 = vld [vmem:[%s1 + $0x28] sm:$0xff]
  %v62 = vld [vmem:[%s1 + $0x30] sm:$0xff]
  %v63 = vld [vmem:[%s1 + $0x38] sm:$0xff]
  %v64 = vld [vmem:[%s1 + $0x40] sm:$0xff]
  %v65 = vld [vmem:[%s1 + $0x48] sm:$0xff]
  %v66 = vld [vmem:[%s1 + $0x50] sm:$0x1]
  %v67 = vld [vmem:[%s2] sm:$0x1]
  %v69 = vperm.slane %v67, 0
  %vm71 = vcmask 662528
  %v73 = vsel %vm71, %v20, 0
  %v76 = vsel %vm71, %v21, 0
  %v79 = vsel %vm71, %v22, 0
  %v82 = vsel %vm71, %v23, 0
  %v85 = vsel %vm71, %v24, 0
  %v88 = vsel %vm71, %v25, 0
  %v91 = vsel %vm71, %v26, 0
  %v94 = vsel %vm71, %v27, 0
  %v97 = vsel %vm71, %v28, 0
  %v100 = vsel %vm71, %v29, 0
  %v103 = vsel %vm71, %v30, 0
  %v106 = vsel %vm71, %v31, 0
  %v109 = vsel %vm71, %v32, 0
  %v112 = vsel %vm71, %v33, 0
  %v115 = vsel %vm71, %v34, 0
  %v118 = vsel %vm71, %v35, 0
  %v121 = vsel %vm71, %v36, 0
  %v124 = vsel %vm71, %v37, 0
  %v127 = vsel %vm71, %v38, 0
  %v130 = vsel %vm71, %v39, 0
  %v133 = vsel %vm71, %v40, 0
  %v136 = vsel %vm71, %v41, 0
  %v139 = vsel %vm71, %v42, 0
  %v142 = vsel %vm71, %v43, 0
  %v145 = vsel %vm71, %v44, 0
  %v148 = vsel %vm71, %v45, 0
  %v151 = vsel %vm71, %v46, 0
  %v154 = vsel %vm71, %v47, 0
  %v157 = vsel %vm71, %v48, 0
  %v160 = vsel %vm71, %v49, 0
  %v163 = vsel %vm71, %v50, 0
  %v166 = vsel %vm71, %v51, 0
  %v169 = vsel %vm71, %v52, 0
  %v172 = vsel %vm71, %v53, 0
  %v175 = vsel %vm71, %v54, 0
  %v178 = vsel %vm71, %v55, 0
  %vm180 = vcmask 1040384
  %v182 = vsel %vm180, %v66, 0
  %184 = vmatpush.msra.mxu0 0.0
  %185 = vmatpush.msra.mxu0 0.0
  %186 = vmatpush.msra.mxu0 0.0
  %187 = vmatpush.msra.mxu0 0.0
  %188 = vmatpush.msra.mxu0 0.0
  %189 = vmatpush.msra.mxu0 %v182
  %190 = vmatpush.msra.mxu0 %v65
  %191 = vmatpush.msra.mxu0 %v64
  %192 = vmatpush.msra.mxu0 %v63
  %193 = vmatpush.msra.mxu0 %v62
  %194 = vmatpush.msra.mxu0 %v61
  %195 = vmatpush.msra.mxu0 %v60
  %196 = vmatpush.msra.mxu0 %v59
  %197 = vmatpush.msra.mxu0 %v58
  %198 = vmatpush.msra.mxu0 %v57
  %199 = vmatpush.msra.mxu0 %v56
  %200 = vmatmul.f32.gmra.mxu0 %v73
  %v201 = vpop.f32.mrf.mxu0
  %v202 = vadd.f32 %v69, %v201
  %203 = vmatmul.f32.gmra.mxu0 %v76
  %v204 = vpop.f32.mrf.mxu0
  %v205 = vadd.f32 %v69, %v204
  %206 = vmatmul.f32.gmra.mxu0 %v79
  %v207 = vpop.f32.mrf.mxu0
  %v208 = vadd.f32 %v69, %v207
  %209 = vmatmul.f32.gmra.mxu0 %v82
  %v210 = vpop.f32.mrf.mxu0
  %v211 = vadd.f32 %v69, %v210
  %212 = vmatmul.f32.gmra.mxu0 %v85
  %v213 = vpop.f32.mrf.mxu0
  %v214 = vadd.f32 %v69, %v213
  %215 = vmatmul.f32.gmra.mxu0 %v88
  %v216 = vpop.f32.mrf.mxu0
  %v217 = vadd.f32 %v69, %v216
  %218 = vmatmul.f32.gmra.mxu0 %v91
  %v219 = vpop.f32.mrf.mxu0
  %v220 = vadd.f32 %v69, %v219
  %221 = vmatmul.f32.gmra.mxu0 %v94
  %v222 = vpop.f32.mrf.mxu0
  %v223 = vadd.f32 %v69, %v222
  %224 = vmatmul.f32.gmra.mxu0 %v97
  %v225 = vpop.f32.mrf.mxu0
  %v226 = vadd.f32 %v69, %v225
  %227 = vmatmul.f32.gmra.mxu0 %v100
  %v228 = vpop.f32.mrf.mxu0
  %v229 = vadd.f32 %v69, %v228
  %230 = vmatmul.f32.gmra.mxu0 %v103
  %v231 = vpop.f32.mrf.mxu0
  %v232 = vadd.f32 %v69, %v231
  %233 = vmatmul.f32.gmra.mxu0 %v106
  %v234 = vpop.f32.mrf.mxu0
  %v235 = vadd.f32 %v69, %v234
  %236 = vmatmul.f32.gmra.mxu0 %v109
  %v237 = vpop.f32.mrf.mxu0
  %v238 = vadd.f32 %v69, %v237
  %239 = vmatmul.f32.gmra.mxu0 %v112
  %v240 = vpop.f32.mrf.mxu0
  %v241 = vadd.f32 %v69, %v240
  %242 = vmatmul.f32.gmra.mxu0 %v115
  %v243 = vpop.f32.mrf.mxu0
  %v244 = vadd.f32 %v69, %v243
  %245 = vmatmul.f32.gmra.mxu0 %v118
  %v246 = vpop.f32.mrf.mxu0
  %v247 = vadd.f32 %v69, %v246
  %248 = vmatmul.f32.gmra.mxu0 %v121
  %v249 = vpop.f32.mrf.mxu0
  %v250 = vadd.f32 %v69, %v249
  %251 = vmatmul.f32.gmra.mxu0 %v124
  %v252 = vpop.f32.mrf.mxu0
  %v253 = vadd.f32 %v69, %v252
  %254 = vmatmul.f32.gmra.mxu0 %v127
  %v255 = vpop.f32.mrf.mxu0
  %v256 = vadd.f32 %v69, %v255
  %257 = vmatmul.f32.gmra.mxu0 %v130
  %v258 = vpop.f32.mrf.mxu0
  %v259 = vadd.f32 %v69, %v258
  %260 = vmatmul.f32.gmra.mxu0 %v133
  %v261 = vpop.f32.mrf.mxu0
  %v262 = vadd.f32 %v69, %v261
  %263 = vmatmul.f32.gmra.mxu0 %v136
  %v264 = vpop.f32.mrf.mxu0
  %v265 = vadd.f32 %v69, %v264
  %266 = vmatmul.f32.gmra.mxu0 %v139
  %v267 = vpop.f32.mrf.mxu0
  %v268 = vadd.f32 %v69, %v267
  %269 = vmatmul.f32.gmra.mxu0 %v142
  %v270 = vpop.f32.mrf.mxu0
  %v271 = vadd.f32 %v69, %v270
  %272 = vmatmul.f32.gmra.mxu0 %v145
  %v273 = vpop.f32.mrf.mxu0
  %v274 = vadd.f32 %v69, %v273
  %275 = vmatmul.f32.gmra.mxu0 %v148
  %v276 = vpop.f32.mrf.mxu0
  %v277 = vadd.f32 %v69, %v276
  %278 = vmatmul.f32.gmra.mxu0 %v151
  %v279 = vpop.f32.mrf.mxu0
  %v280 = vadd.f32 %v69, %v279
  %281 = vmatmul.f32.gmra.mxu0 %v154
  %v282 = vpop.f32.mrf.mxu0
  %v283 = vadd.f32 %v69, %v282
  %284 = vmatmul.f32.gmra.mxu0 %v157
  %v285 = vpop.f32.mrf.mxu0
  %v286 = vadd.f32 %v69, %v285
  %287 = vmatmul.f32.gmra.mxu0 %v160
  %v288 = vpop.f32.mrf.mxu0
  %v289 = vadd.f32 %v69, %v288
  %290 = vmatmul.f32.gmra.mxu0 %v163
  %v291 = vpop.f32.mrf.mxu0
  %v292 = vadd.f32 %v69, %v291
  %293 = vmatmul.f32.gmra.mxu0 %v166
  %v294 = vpop.f32.mrf.mxu0
  %v295 = vadd.f32 %v69, %v294
  %296 = vmatmul.f32.gmra.mxu0 %v169
  %v297 = vpop.f32.mrf.mxu0
  %v298 = vadd.f32 %v69, %v297
  %299 = vmatmul.f32.gmra.mxu0 %v172
  %v300 = vpop.f32.mrf.mxu0
  %v301 = vadd.f32 %v69, %v300
  %302 = vmatmul.f32.gmra.mxu0 %v175
  %v303 = vpop.f32.mrf.mxu0
  %v304 = vadd.f32 %v69, %v303
  %305 = vmatmul.f32.gmra.mxu0 %v178
  %v306 = vpop.f32.mrf.mxu0
  %v307 = vadd.f32 %v69, %v306
  %308 = vdwg.mxu0
  %v309 = vmax.f32 %v202, 0.0
  %v310 = vmax.f32 %v205, 0.0
  %v311 = vmax.f32 %v208, 0.0
  %v312 = vmax.f32 %v211, 0.0
  %v313 = vmax.f32 %v214, 0.0
  %v314 = vmax.f32 %v217, 0.0
  %v315 = vmax.f32 %v220, 0.0
  %v316 = vmax.f32 %v223, 0.0
  %v317 = vmax.f32 %v226, 0.0
  %v318 = vmax.f32 %v229, 0.0
  %v319 = vmax.f32 %v232, 0.0
  %v320 = vmax.f32 %v235, 0.0
  %v321 = vmax.f32 %v238, 0.0
  %v322 = vmax.f32 %v241, 0.0
  %v323 = vmax.f32 %v244, 0.0
  %v324 = vmax.f32 %v247, 0.0
  %v325 = vmax.f32 %v250, 0.0
  %v326 = vmax.f32 %v253, 0.0
  %v327 = vmax.f32 %v256, 0.0
  %v328 = vmax.f32 %v259, 0.0
  %v329 = vmax.f32 %v262, 0.0
  %v330 = vmax.f32 %v265, 0.0
  %v331 = vmax.f32 %v268, 0.0
  %v332 = vmax.f32 %v271, 0.0
  %v333 = vmax.f32 %v274, 0.0
  %v334 = vmax.f32 %v277, 0.0
  %v335 = vmax.f32 %v280, 0.0
  %v336 = vmax.f32 %v283, 0.0
  %v337 = vmax.f32 %v286, 0.0
  %v338 = vmax.f32 %v289, 0.0
  %v339 = vmax.f32 %v292, 0.0
  %v340 = vmax.f32 %v295, 0.0
  %v341 = vmax.f32 %v298, 0.0
  %v342 = vmax.f32 %v301, 0.0
  %v343 = vmax.f32 %v304, 0.0
  %v344 = vmax.f32 %v307, 0.0
  %v345 = vld [vmem:[%s3] sm:$0xff]
  %v346 = vld [vmem:[%s3 + $0x8] sm:$0xff]
  %v347 = vld [vmem:[%s3 + $0x10] sm:$0xff]
  %v348 = vld [vmem:[%s3 + $0x18] sm:$0xff]
  %v349 = vld [vmem:[%s3 + $0x20] sm:$0xff]
  %v350 = vld [vmem:[%s3 + $0x28] sm:$0xff]
  %v351 = vld [vmem:[%s3 + $0x30] sm:$0xff]
  %v352 = vld [vmem:[%s3 + $0x38] sm:$0xff]
  %v353 = vld [vmem:[%s3 + $0x40] sm:$0xff]
  %v354 = vld [vmem:[%s3 + $0x48] sm:$0xff]
  %v355 = vld [vmem:[%s3 + $0x50] sm:$0xff]
  %v356 = vld [vmem:[%s3 + $0x58] sm:$0xff]
  %v357 = vld [vmem:[%s3 + $0x60] sm:$0xff]
  %v358 = vld [vmem:[%s3 + $0x68] sm:$0xff]
  %v359 = vld [vmem:[%s3 + $0x70] sm:$0xff]
  %v360 = vld [vmem:[%s3 + $0x78] sm:$0xff]
  %v361 = vld [vmem:[%s4] sm:$0x1]
  %v363 = vperm.slane %v361, 0
  %365 = vmatpush.msra.mxu0 %v360
  %366 = vmatpush.msra.mxu0 %v359
  %367 = vmatpush.msra.mxu0 %v358
  %368 = vmatpush.msra.mxu0 %v357
  %369 = vmatpush.msra.mxu0 %v356
  %370 = vmatpush.msra.mxu0 %v355
  %371 = vmatpush.msra.mxu0 %v354
  %372 = vmatpush.msra.mxu0 %v353
  %373 = vmatpush.msra.mxu0 %v352
  %374 = vmatpush.msra.mxu0 %v351
  %375 = vmatpush.msra.mxu0 %v350
  %376 = vmatpush.msra.mxu0 %v349
  %377 = vmatpush.msra.mxu0 %v348
  %378 = vmatpush.msra.mxu0 %v347
  %379 = vmatpush.msra.mxu0 %v346
  %380 = vmatpush.msra.mxu0 %v345
  %381 = vmatmul.f32.gmra.mxu0 %v309
  %v382 = vpop.f32.mrf.mxu0
  %v383 = vadd.f32 %v363, %v382
  %384 = vmatmul.f32.gmra.mxu0 %v310
  %v385 = vpop.f32.mrf.mxu0
  %v386 = vadd.f32 %v363, %v385
  %387 = vmatmul.f32.gmra.mxu0 %v311
  %v388 = vpop.f32.mrf.mxu0
  %v389 = vadd.f32 %v363, %v388
  %390 = vmatmul.f32.gmra.mxu0 %v312
  %v391 = vpop.f32.mrf.mxu0
  %v392 = vadd.f32 %v363, %v391
  %393 = vmatmul.f32.gmra.mxu0 %v313
  %v394 = vpop.f32.mrf.mxu0
  %v395 = vadd.f32 %v363, %v394
  %396 = vmatmul.f32.gmra.mxu0 %v314
  %v397 = vpop.f32.mrf.mxu0
  %v398 = vadd.f32 %v363, %v397
  %399 = vmatmul.f32.gmra.mxu0 %v315
  %v400 = vpop.f32.mrf.mxu0
  %v401 = vadd.f32 %v363, %v400
  %402 = vmatmul.f32.gmra.mxu0 %v316
  %v403 = vpop.f32.mrf.mxu0
  %v404 = vadd.f32 %v363, %v403
  %405 = vmatmul.f32.gmra.mxu0 %v317
  %v406 = vpop.f32.mrf.mxu0
  %v407 = vadd.f32 %v363, %v406
  %408 = vmatmul.f32.gmra.mxu0 %v318
  %v409 = vpop.f32.mrf.mxu0
  %v410 = vadd.f32 %v363, %v409
  %411 = vmatmul.f32.gmra.mxu0 %v319
  %v412 = vpop.f32.mrf.mxu0
  %v413 = vadd.f32 %v363, %v412
  %414 = vmatmul.f32.gmra.mxu0 %v320
  %v415 = vpop.f32.mrf.mxu0
  %v416 = vadd.f32 %v363, %v415
  %417 = vmatmul.f32.gmra.mxu0 %v321
  %v418 = vpop.f32.mrf.mxu0
  %v419 = vadd.f32 %v363, %v418
  %420 = vmatmul.f32.gmra.mxu0 %v322
  %v421 = vpop.f32.mrf.mxu0
  %v422 = vadd.f32 %v363, %v421
  %423 = vmatmul.f32.gmra.mxu0 %v323
  %v424 = vpop.f32.mrf.mxu0
  %v425 = vadd.f32 %v363, %v424
  %426 = vmatmul.f32.gmra.mxu0 %v324
  %v427 = vpop.f32.mrf.mxu0
  %v428 = vadd.f32 %v363, %v427
  %429 = vmatmul.f32.gmra.mxu0 %v325
  %v430 = vpop.f32.mrf.mxu0
  %v431 = vadd.f32 %v363, %v430
  %432 = vmatmul.f32.gmra.mxu0 %v326
  %v433 = vpop.f32.mrf.mxu0
  %v434 = vadd.f32 %v363, %v433
  %435 = vmatmul.f32.gmra.mxu0 %v327
  %v436 = vpop.f32.mrf.mxu0
  %v437 = vadd.f32 %v363, %v436
  %438 = vmatmul.f32.gmra.mxu0 %v328
  %v439 = vpop.f32.mrf.mxu0
  %v440 = vadd.f32 %v363, %v439
  %441 = vmatmul.f32.gmra.mxu0 %v329
  %v442 = vpop.f32.mrf.mxu0
  %v443 = vadd.f32 %v363, %v442
  %444 = vmatmul.f32.gmra.mxu0 %v330
  %v445 = vpop.f32.mrf.mxu0
  %v446 = vadd.f32 %v363, %v445
  %447 = vmatmul.f32.gmra.mxu0 %v331
  %v448 = vpop.f32.mrf.mxu0
  %v449 = vadd.f32 %v363, %v448
  %450 = vmatmul.f32.gmra.mxu0 %v332
  %v451 = vpop.f32.mrf.mxu0
  %v452 = vadd.f32 %v363, %v451
  %453 = vmatmul.f32.gmra.mxu0 %v333
  %v454 = vpop.f32.mrf.mxu0
  %v455 = vadd.f32 %v363, %v454
  %456 = vmatmul.f32.gmra.mxu0 %v334
  %v457 = vpop.f32.mrf.mxu0
  %v458 = vadd.f32 %v363, %v457
  %459 = vmatmul.f32.gmra.mxu0 %v335
  %v460 = vpop.f32.mrf.mxu0
  %v461 = vadd.f32 %v363, %v460
  %462 = vmatmul.f32.gmra.mxu0 %v336
  %v463 = vpop.f32.mrf.mxu0
  %v464 = vadd.f32 %v363, %v463
  %465 = vmatmul.f32.gmra.mxu0 %v337
  %v466 = vpop.f32.mrf.mxu0
  %v467 = vadd.f32 %v363, %v466
  %468 = vmatmul.f32.gmra.mxu0 %v338
  %v469 = vpop.f32.mrf.mxu0
  %v470 = vadd.f32 %v363, %v469
  %471 = vmatmul.f32.gmra.mxu0 %v339
  %v472 = vpop.f32.mrf.mxu0
  %v473 = vadd.f32 %v363, %v472
  %474 = vmatmul.f32.gmra.mxu0 %v340
  %v475 = vpop.f32.mrf.mxu0
  %v476 = vadd.f32 %v363, %v475
  %477 = vmatmul.f32.gmra.mxu0 %v341
  %v478 = vpop.f32.mrf.mxu0
  %v479 = vadd.f32 %v363, %v478
  %480 = vmatmul.f32.gmra.mxu0 %v342
  %v481 = vpop.f32.mrf.mxu0
  %v482 = vadd.f32 %v363, %v481
  %483 = vmatmul.f32.gmra.mxu0 %v343
  %v484 = vpop.f32.mrf.mxu0
  %v485 = vadd.f32 %v363, %v484
  %486 = vmatmul.f32.gmra.mxu0 %v344
  %v487 = vpop.f32.mrf.mxu0
  %v488 = vadd.f32 %v363, %v487
  %489 = vdwg.mxu0
  %v490 = vmax.f32 %v383, 0.0
  %v491 = vmax.f32 %v386, 0.0
  %v492 = vmax.f32 %v389, 0.0
  %v493 = vmax.f32 %v392, 0.0
  %v494 = vmax.f32 %v395, 0.0
  %v495 = vmax.f32 %v398, 0.0
  %v496 = vmax.f32 %v401, 0.0
  %v497 = vmax.f32 %v404, 0.0
  %v498 = vmax.f32 %v407, 0.0
  %v499 = vmax.f32 %v410, 0.0
  %v500 = vmax.f32 %v413, 0.0
  %v501 = vmax.f32 %v416, 0.0
  %v502 = vmax.f32 %v419, 0.0
  %v503 = vmax.f32 %v422, 0.0
  %v504 = vmax.f32 %v425, 0.0
  %v505 = vmax.f32 %v428, 0.0
  %v506 = vmax.f32 %v431, 0.0
  %v507 = vmax.f32 %v434, 0.0
  %v508 = vmax.f32 %v437, 0.0
  %v509 = vmax.f32 %v440, 0.0
  %v510 = vmax.f32 %v443, 0.0
  %v511 = vmax.f32 %v446, 0.0
  %v512 = vmax.f32 %v449, 0.0
  %v513 = vmax.f32 %v452, 0.0
  %v514 = vmax.f32 %v455, 0.0
  %v515 = vmax.f32 %v458, 0.0
  %v516 = vmax.f32 %v461, 0.0
  %v517 = vmax.f32 %v464, 0.0
  %v518 = vmax.f32 %v467, 0.0
  %v519 = vmax.f32 %v470, 0.0
  %v520 = vmax.f32 %v473, 0.0
  %v521 = vmax.f32 %v476, 0.0
  %v522 = vmax.f32 %v479, 0.0
  %v523 = vmax.f32 %v482, 0.0
  %v524 = vmax.f32 %v485, 0.0
  %v525 = vmax.f32 %v488, 0.0
  %526 = vst [vmem:[%s5] sm:$0xff] %v490
  %527 = vst [vmem:[%s5 + $0x8] sm:$0xff] %v491
  %528 = vst [vmem:[%s5 + $0x10] sm:$0xff] %v492
  %529 = vst [vmem:[%s5 + $0x18] sm:$0xff] %v493
  %530 = vst [vmem:[%s5 + $0x20] sm:$0xff] %v494
  %531 = vst [vmem:[%s5 + $0x28] sm:$0xff] %v495
  %532 = vst [vmem:[%s5 + $0x30] sm:$0xff] %v496
  %533 = vst [vmem:[%s5 + $0x38] sm:$0xff] %v497
  %534 = vst [vmem:[%s5 + $0x40] sm:$0xff] %v498
  %535 = vst [vmem:[%s5 + $0x48] sm:$0xff] %v499
  %536 = vst [vmem:[%s5 + $0x50] sm:$0xff] %v500
  %537 = vst [vmem:[%s5 + $0x58] sm:$0xff] %v501
  %538 = vst [vmem:[%s5 + $0x60] sm:$0xff] %v502
  %539 = vst [vmem:[%s5 + $0x68] sm:$0xff] %v503
  %540 = vst [vmem:[%s5 + $0x70] sm:$0xff] %v504
  %541 = vst [vmem:[%s5 + $0x78] sm:$0xff] %v505
  %542 = vst [vmem:[%s5 + $0x80] sm:$0xff] %v506
  %543 = vst [vmem:[%s5 + $0x88] sm:$0xff] %v507
  %544 = vst [vmem:[%s5 + $0x90] sm:$0xff] %v508
  %545 = vst [vmem:[%s5 + $0x98] sm:$0xff] %v509
  %546 = vst [vmem:[%s5 + $0xa0] sm:$0xff] %v510
  %547 = vst [vmem:[%s5 + $0xa8] sm:$0xff] %v511
  %548 = vst [vmem:[%s5 + $0xb0] sm:$0xff] %v512
  %549 = vst [vmem:[%s5 + $0xb8] sm:$0xff] %v513
  %550 = vst [vmem:[%s5 + $0xc0] sm:$0xff] %v514
  %551 = vst [vmem:[%s5 + $0xc8] sm:$0xff] %v515
  %552 = vst [vmem:[%s5 + $0xd0] sm:$0xff] %v516
  %553 = vst [vmem:[%s5 + $0xd8] sm:$0xff] %v517
  %554 = vst [vmem:[%s5 + $0xe0] sm:$0xff] %v518
  %555 = vst [vmem:[%s5 + $0xe8] sm:$0xff] %v519
  %556 = vst [vmem:[%s5 + $0xf0] sm:$0xff] %v520
  %557 = vst [vmem:[%s5 + $0xf8] sm:$0xff] %v521
  %558 = vst [vmem:[%s5 + $0x100] sm:$0xff] %v522
  %559 = vst [vmem:[%s5 + $0x108] sm:$0xff] %v523
  %560 = vst [vmem:[%s5 + $0x110] sm:$0xff] %v524
  %561 = vst [vmem:[%s5 + $0x118] sm:$0xff] %v525
  // Predicated region
  $region22: #{nir_feat_extrator_forward.2} parent=0 // pred_check
    _
  $region23: #{nir_feat_extrator_forward.2} parent=0 // pred_check_branch
    %563 = sbr.rel (0) target = $region25
  $region24: #{nir_feat_extrator_forward.2} parent=0 // pred_region
    _
  $region25: #{nir_feat_extrator_forward.2} parent=0 // pred_fallthru
    _
  // Predicated region
  $region26: #{nir_feat_extrator_forward.2} parent=0 // pred_check
    _
  $region27: #{nir_feat_extrator_forward.2} parent=0 // pred_check_branch
    %565 = sbr.rel (0) target = $region29
  $region28: #{nir_feat_extrator_forward.2} parent=0 // pred_region
    _
  $region29: #{nir_feat_extrator_forward.2} parent=0 // pred_fallthru
    _

// kernel: nir_feat_extrator_forward.3
$region0: #{nir_feat_extrator_forward.3}
  #allocation0 [shape = 'u32[]', space=smem, size = 0x4, offset = 0x4, fixed_abs, tag = 'smem constant byte address 0x4 - core index']
  #allocation1 [shape = 'u32[72,128]{1,0:T(1,128)}', space=vmem, size = 0x9000, scoped, tag = 'internal scratch']
  %s0 = inlined_call_operand.vmem [shape: f32[512,1200], index: 0, kind: input, shape index: {}]
  %s1 = inlined_call_operand.vmem [shape: f32[1200,128], index: 1, kind: input, shape index: {}]
  %s2 = inlined_call_operand.vmem [shape: f32[1,128], index: 2, kind: input, shape index: {}]
  %s3 = inlined_call_operand.vmem [shape: f32[512,1], index: 3, kind: input, shape index: {}]
  %s4 = inlined_call_operand.vmem [shape: f32[512,128], index: 4, kind: output, shape index: {}]
  %s5 = sld [smem:[#allocation0]]
  $region26: #{nir_feat_extrator_forward.3} parent=0
    _
  %s7 = ssub.s32 1, %s5
  %s8 = scalar_select 0, %s7, %s5
  // Predicated region
  $region2: #{nir_feat_extrator_forward.3} parent=0 // pred_check
    _
  $region3: #{nir_feat_extrator_forward.3} parent=0 // pred_check_branch
    %10 = sbr.rel (0) target = $region5
  $region4: #{nir_feat_extrator_forward.3} parent=0 // pred_region
    _
  $region5: #{nir_feat_extrator_forward.3} parent=0 // pred_fallthru
    _
  // Predicated region
  $region6: #{nir_feat_extrator_forward.3} parent=0 // pred_check
    _
  $region7: #{nir_feat_extrator_forward.3} parent=0 // pred_check_branch
    %12 = sbr.rel (0) target = $region9
  $region8: #{nir_feat_extrator_forward.3} parent=0 // pred_region
    _
  $region9: #{nir_feat_extrator_forward.3} parent=0 // pred_fallthru
    _
  // Predicated region
  $region10: #{nir_feat_extrator_forward.3} parent=0 // pred_check
    _
  $region11: #{nir_feat_extrator_forward.3} parent=0 // pred_check_branch
    %14 = sbr.rel (0) target = $region13
  $region12: #{nir_feat_extrator_forward.3} parent=0 // pred_region
    _
  $region13: #{nir_feat_extrator_forward.3} parent=0 // pred_fallthru
    _
  // Predicated region
  $region14: #{nir_feat_extrator_forward.3} parent=0 // pred_check
    _
  $region15: #{nir_feat_extrator_forward.3} parent=0 // pred_check_branch
    %16 = sbr.rel (0) target = $region17
  $region16: #{nir_feat_extrator_forward.3} parent=0 // pred_region
    _
  $region17: #{nir_feat_extrator_forward.3} parent=0 // pred_fallthru
    _
  %v17 = vld [vmem:[%s0] sm:$0xff]
  %v18 = vld [vmem:[%s0 + $0x8] sm:$0xff]
  %v19 = vld [vmem:[%s0 + $0x10] sm:$0xff]
  %v20 = vld [vmem:[%s0 + $0x18] sm:$0xff]
  %v21 = vld [vmem:[%s0 + $0x20] sm:$0xff]
  %v22 = vld [vmem:[%s0 + $0x28] sm:$0xff]
  %v23 = vld [vmem:[%s0 + $0x30] sm:$0xff]
  %v24 = vld [vmem:[%s0 + $0x38] sm:$0xff]
  %v25 = vld [vmem:[%s0 + $0x40] sm:$0xff]
  %v26 = vld [vmem:[%s0 + $0x48] sm:$0xff]
  %v27 = vld [vmem:[%s0 + $0x50] sm:$0xff]
  %v28 = vld [vmem:[%s0 + $0x58] sm:$0xff]
  %v29 = vld [vmem:[%s0 + $0x60] sm:$0xff]
  %v30 = vld [vmem:[%s0 + $0x68] sm:$0xff]
  %v31 = vld [vmem:[%s0 + $0x70] sm:$0xff]
  %v32 = vld [vmem:[%s0 + $0x78] sm:$0xff]
  %v33 = vld [vmem:[%s0 + $0x80] sm:$0xff]
  %v34 = vld [vmem:[%s0 + $0x88] sm:$0xff]
  %v35 = vld [vmem:[%s0 + $0x90] sm:$0xff]
  %v36 = vld [vmem:[%s0 + $0x98] sm:$0xff]
  %v37 = vld [vmem:[%s0 + $0xa0] sm:$0xff]
  %v38 = vld [vmem:[%s0 + $0xa8] sm:$0xff]
  %v39 = vld [vmem:[%s0 + $0xb0] sm:$0xff]
  %v40 = vld [vmem:[%s0 + $0xb8] sm:$0xff]
  %v41 = vld [vmem:[%s0 + $0xc0] sm:$0xff]
  %v42 = vld [vmem:[%s0 + $0xc8] sm:$0xff]
  %v43 = vld [vmem:[%s0 + $0xd0] sm:$0xff]
  %v44 = vld [vmem:[%s0 + $0xd8] sm:$0xff]
  %v45 = vld [vmem:[%s0 + $0xe0] sm:$0xff]
  %v46 = vld [vmem:[%s0 + $0xe8] sm:$0xff]
  %v47 = vld [vmem:[%s0 + $0xf0] sm:$0xff]
  %v48 = vld [vmem:[%s0 + $0xf8] sm:$0xff]
  %v49 = vld [vmem:[%s0 + $0x100] sm:$0xff]
  %v50 = vld [vmem:[%s0 + $0x108] sm:$0xff]
  %v51 = vld [vmem:[%s0 + $0x110] sm:$0xff]
  %v52 = vld [vmem:[%s0 + $0x118] sm:$0xff]
  %v53 = vld [vmem:[%s0 + $0x120] sm:$0xff]
  %v54 = vld [vmem:[%s0 + $0x128] sm:$0xff]
  %v55 = vld [vmem:[%s0 + $0x130] sm:$0xff]
  %v56 = vld [vmem:[%s0 + $0x138] sm:$0xff]
  %v57 = vld [vmem:[%s0 + $0x140] sm:$0xff]
  %v58 = vld [vmem:[%s0 + $0x148] sm:$0xff]
  %v59 = vld [vmem:[%s0 + $0x150] sm:$0xff]
  %v60 = vld [vmem:[%s0 + $0x158] sm:$0xff]
  %v61 = vld [vmem:[%s0 + $0x160] sm:$0xff]
  %v62 = vld [vmem:[%s0 + $0x168] sm:$0xff]
  %v63 = vld [vmem:[%s0 + $0x170] sm:$0xff]
  %v64 = vld [vmem:[%s0 + $0x178] sm:$0xff]
  %v65 = vld [vmem:[%s0 + $0x180] sm:$0xff]
  %v66 = vld [vmem:[%s0 + $0x188] sm:$0xff]
  %v67 = vld [vmem:[%s0 + $0x190] sm:$0xff]
  %v68 = vld [vmem:[%s0 + $0x198] sm:$0xff]
  %v69 = vld [vmem:[%s0 + $0x1a0] sm:$0xff]
  %v70 = vld [vmem:[%s0 + $0x1a8] sm:$0xff]
  %v71 = vld [vmem:[%s0 + $0x1b0] sm:$0xff]
  %v72 = vld [vmem:[%s0 + $0x1b8] sm:$0xff]
  %v73 = vld [vmem:[%s0 + $0x1c0] sm:$0xff]
  %v74 = vld [vmem:[%s0 + $0x1c8] sm:$0xff]
  %v75 = vld [vmem:[%s0 + $0x1d0] sm:$0xff]
  %v76 = vld [vmem:[%s0 + $0x1d8] sm:$0xff]
  %v77 = vld [vmem:[%s0 + $0x1e0] sm:$0xff]
  %v78 = vld [vmem:[%s0 + $0x1e8] sm:$0xff]
  %v79 = vld [vmem:[%s0 + $0x1f0] sm:$0xff]
  %v80 = vld [vmem:[%s0 + $0x1f8] sm:$0xff]
  %v81 = vld [vmem:[%s0 + $0x200] sm:$0xff]
  %v82 = vld [vmem:[%s0 + $0x208] sm:$0xff]
  %v83 = vld [vmem:[%s0 + $0x210] sm:$0xff]
  %v84 = vld [vmem:[%s0 + $0x218] sm:$0xff]
  %v85 = vld [vmem:[%s0 + $0x220] sm:$0xff]
  %v86 = vld [vmem:[%s0 + $0x228] sm:$0xff]
  %v87 = vld [vmem:[%s0 + $0x230] sm:$0xff]
  %v88 = vld [vmem:[%s0 + $0x238] sm:$0xff]
  %v89 = vld [vmem:[%s0 + $0x240] sm:$0xff]
  %v90 = vld [vmem:[%s0 + $0x248] sm:$0xff]
  %v91 = vld [vmem:[%s0 + $0x250] sm:$0xff]
  %v92 = vld [vmem:[%s0 + $0x258] sm:$0xff]
  %v93 = vld [vmem:[%s0 + $0x260] sm:$0xff]
  %v94 = vld [vmem:[%s0 + $0x268] sm:$0xff]
  %v95 = vld [vmem:[%s0 + $0x270] sm:$0xff]
  %v96 = vld [vmem:[%s0 + $0x278] sm:$0xff]
  %v97 = vld [vmem:[%s0 + $0x280] sm:$0xff]
  %v98 = vld [vmem:[%s0 + $0x288] sm:$0xff]
  %v99 = vld [vmem:[%s0 + $0x290] sm:$0xff]
  %v100 = vld [vmem:[%s0 + $0x298] sm:$0xff]
  %v101 = vld [vmem:[%s0 + $0x2a0] sm:$0xff]
  %v102 = vld [vmem:[%s0 + $0x2a8] sm:$0xff]
  %v103 = vld [vmem:[%s0 + $0x2b0] sm:$0xff]
  %v104 = vld [vmem:[%s0 + $0x2b8] sm:$0xff]
  %v105 = vld [vmem:[%s0 + $0x2c0] sm:$0xff]
  %v106 = vld [vmem:[%s0 + $0x2c8] sm:$0xff]
  %v107 = vld [vmem:[%s0 + $0x2d0] sm:$0xff]
  %v108 = vld [vmem:[%s0 + $0x2d8] sm:$0xff]
  %v109 = vld [vmem:[%s0 + $0x2e0] sm:$0xff]
  %v110 = vld [vmem:[%s0 + $0x2e8] sm:$0xff]
  %v111 = vld [vmem:[%s0 + $0x2f0] sm:$0xff]
  %v112 = vld [vmem:[%s0 + $0x2f8] sm:$0xff]
  %v113 = vld [vmem:[%s0 + $0x300] sm:$0xff]
  %v114 = vld [vmem:[%s0 + $0x308] sm:$0xff]
  %v115 = vld [vmem:[%s0 + $0x310] sm:$0xff]
  %v116 = vld [vmem:[%s0 + $0x318] sm:$0xff]
  %v117 = vld [vmem:[%s0 + $0x320] sm:$0xff]
  %v118 = vld [vmem:[%s0 + $0x328] sm:$0xff]
  %v119 = vld [vmem:[%s0 + $0x330] sm:$0xff]
  %v120 = vld [vmem:[%s0 + $0x338] sm:$0xff]
  %v121 = vld [vmem:[%s0 + $0x340] sm:$0xff]
  %v122 = vld [vmem:[%s0 + $0x348] sm:$0xff]
  %v123 = vld [vmem:[%s0 + $0x350] sm:$0xff]
  %v124 = vld [vmem:[%s0 + $0x358] sm:$0xff]
  %v125 = vld [vmem:[%s0 + $0x360] sm:$0xff]
  %v126 = vld [vmem:[%s0 + $0x368] sm:$0xff]
  %v127 = vld [vmem:[%s0 + $0x370] sm:$0xff]
  %v128 = vld [vmem:[%s0 + $0x378] sm:$0xff]
  %v129 = vld [vmem:[%s0 + $0x380] sm:$0xff]
  %v130 = vld [vmem:[%s0 + $0x388] sm:$0xff]
  %v131 = vld [vmem:[%s0 + $0x390] sm:$0xff]
  %v132 = vld [vmem:[%s0 + $0x398] sm:$0xff]
  %v133 = vld [vmem:[%s0 + $0x3a0] sm:$0xff]
  %v134 = vld [vmem:[%s0 + $0x3a8] sm:$0xff]
  %v135 = vld [vmem:[%s0 + $0x3b0] sm:$0xff]
  %v136 = vld [vmem:[%s0 + $0x3b8] sm:$0xff]
  %v137 = vld [vmem:[%s0 + $0x3c0] sm:$0xff]
  %v138 = vld [vmem:[%s0 + $0x3c8] sm:$0xff]
  %v139 = vld [vmem:[%s0 + $0x3d0] sm:$0xff]
  %v140 = vld [vmem:[%s0 + $0x3d8] sm:$0xff]
  %v141 = vld [vmem:[%s0 + $0x3e0] sm:$0xff]
  %v142 = vld [vmem:[%s0 + $0x3e8] sm:$0xff]
  %v143 = vld [vmem:[%s0 + $0x3f0] sm:$0xff]
  %v144 = vld [vmem:[%s0 + $0x3f8] sm:$0xff]
  %v145 = vld [vmem:[%s0 + $0x400] sm:$0xff]
  %v146 = vld [vmem:[%s0 + $0x408] sm:$0xff]
  %v147 = vld [vmem:[%s0 + $0x410] sm:$0xff]
  %v148 = vld [vmem:[%s0 + $0x418] sm:$0xff]
  %v149 = vld [vmem:[%s0 + $0x420] sm:$0xff]
  %v150 = vld [vmem:[%s0 + $0x428] sm:$0xff]
  %v151 = vld [vmem:[%s0 + $0x430] sm:$0xff]
  %v152 = vld [vmem:[%s0 + $0x438] sm:$0xff]
  %v153 = vld [vmem:[%s0 + $0x440] sm:$0xff]
  %v154 = vld [vmem:[%s0 + $0x448] sm:$0xff]
  %v155 = vld [vmem:[%s0 + $0x450] sm:$0xff]
  %v156 = vld [vmem:[%s0 + $0x458] sm:$0xff]
  %v157 = vld [vmem:[%s0 + $0x460] sm:$0xff]
  %v158 = vld [vmem:[%s0 + $0x468] sm:$0xff]
  %v159 = vld [vmem:[%s0 + $0x470] sm:$0xff]
  %v160 = vld [vmem:[%s0 + $0x478] sm:$0xff]
  %v161 = vld [vmem:[%s0 + $0x480] sm:$0xff]
  %v162 = vld [vmem:[%s0 + $0x488] sm:$0xff]
  %v163 = vld [vmem:[%s0 + $0x490] sm:$0xff]
  %v164 = vld [vmem:[%s0 + $0x498] sm:$0xff]
  %v165 = vld [vmem:[%s0 + $0x4a0] sm:$0xff]
  %v166 = vld [vmem:[%s0 + $0x4a8] sm:$0xff]
  %v167 = vld [vmem:[%s0 + $0x4b0] sm:$0xff]
  %v168 = vld [vmem:[%s0 + $0x4b8] sm:$0xff]
  %v169 = vld [vmem:[%s0 + $0x4c0] sm:$0xff]
  %v170 = vld [vmem:[%s0 + $0x4c8] sm:$0xff]
  %v171 = vld [vmem:[%s0 + $0x4d0] sm:$0xff]
  %v172 = vld [vmem:[%s0 + $0x4d8] sm:$0xff]
  %v173 = vld [vmem:[%s0 + $0x4e0] sm:$0xff]
  %v174 = vld [vmem:[%s0 + $0x4e8] sm:$0xff]
  %v175 = vld [vmem:[%s0 + $0x4f0] sm:$0xff]
  %v176 = vld [vmem:[%s0 + $0x4f8] sm:$0xff]
  %v177 = vld [vmem:[%s0 + $0x500] sm:$0xff]
  %v178 = vld [vmem:[%s0 + $0x508] sm:$0xff]
  %v179 = vld [vmem:[%s0 + $0x510] sm:$0xff]
  %v180 = vld [vmem:[%s0 + $0x518] sm:$0xff]
  %v181 = vld [vmem:[%s0 + $0x520] sm:$0xff]
  %v182 = vld [vmem:[%s0 + $0x528] sm:$0xff]
  %v183 = vld [vmem:[%s0 + $0x530] sm:$0xff]
  %v184 = vld [vmem:[%s0 + $0x538] sm:$0xff]
  %v185 = vld [vmem:[%s0 + $0x540] sm:$0xff]
  %v186 = vld [vmem:[%s0 + $0x548] sm:$0xff]
  %v187 = vld [vmem:[%s0 + $0x550] sm:$0xff]
  %v188 = vld [vmem:[%s0 + $0x558] sm:$0xff]
  %v189 = vld [vmem:[%s0 + $0x560] sm:$0xff]
  %v190 = vld [vmem:[%s0 + $0x568] sm:$0xff]
  %v191 = vld [vmem:[%s0 + $0x570] sm:$0xff]
  %v192 = vld [vmem:[%s0 + $0x578] sm:$0xff]
  %v193 = vld [vmem:[%s0 + $0x580] sm:$0xff]
  %v194 = vld [vmem:[%s0 + $0x588] sm:$0xff]
  %v195 = vld [vmem:[%s0 + $0x590] sm:$0xff]
  %v196 = vld [vmem:[%s0 + $0x598] sm:$0xff]
  %v197 = vld [vmem:[%s0 + $0x5a0] sm:$0xff]
  %v198 = vld [vmem:[%s0 + $0x5a8] sm:$0xff]
  %v199 = vld [vmem:[%s0 + $0x5b0] sm:$0xff]
  %v200 = vld [vmem:[%s0 + $0x5b8] sm:$0xff]
  %v201 = vld [vmem:[%s0 + $0x5c0] sm:$0xff]
  %v202 = vld [vmem:[%s0 + $0x5c8] sm:$0xff]
  %v203 = vld [vmem:[%s0 + $0x5d0] sm:$0xff]
  %v204 = vld [vmem:[%s0 + $0x5d8] sm:$0xff]
  %v205 = vld [vmem:[%s0 + $0x5e0] sm:$0xff]
  %v206 = vld [vmem:[%s0 + $0x5e8] sm:$0xff]
  %v207 = vld [vmem:[%s0 + $0x5f0] sm:$0xff]
  %v208 = vld [vmem:[%s0 + $0x5f8] sm:$0xff]
  %v209 = vld [vmem:[%s0 + $0x600] sm:$0xff]
  %v210 = vld [vmem:[%s0 + $0x608] sm:$0xff]
  %v211 = vld [vmem:[%s0 + $0x610] sm:$0xff]
  %v212 = vld [vmem:[%s0 + $0x618] sm:$0xff]
  %v213 = vld [vmem:[%s0 + $0x620] sm:$0xff]
  %v214 = vld [vmem:[%s0 + $0x628] sm:$0xff]
  %v215 = vld [vmem:[%s0 + $0x630] sm:$0xff]
  %v216 = vld [vmem:[%s0 + $0x638] sm:$0xff]
  %v217 = vld [vmem:[%s0 + $0x640] sm:$0xff]
  %v218 = vld [vmem:[%s0 + $0x648] sm:$0xff]
  %v219 = vld [vmem:[%s0 + $0x650] sm:$0xff]
  %v220 = vld [vmem:[%s0 + $0x658] sm:$0xff]
  %v221 = vld [vmem:[%s0 + $0x660] sm:$0xff]
  %v222 = vld [vmem:[%s0 + $0x668] sm:$0xff]
  %v223 = vld [vmem:[%s0 + $0x670] sm:$0xff]
  %v224 = vld [vmem:[%s0 + $0x678] sm:$0xff]
  %v225 = vld [vmem:[%s0 + $0x680] sm:$0xff]
  %v226 = vld [vmem:[%s0 + $0x688] sm:$0xff]
  %v227 = vld [vmem:[%s0 + $0x690] sm:$0xff]
  %v228 = vld [vmem:[%s0 + $0x698] sm:$0xff]
  %v229 = vld [vmem:[%s0 + $0x6a0] sm:$0xff]
  %v230 = vld [vmem:[%s0 + $0x6a8] sm:$0xff]
  %v231 = vld [vmem:[%s0 + $0x6b0] sm:$0xff]
  %v232 = vld [vmem:[%s0 + $0x6b8] sm:$0xff]
  %v233 = vld [vmem:[%s0 + $0x6c0] sm:$0xff]
  %v234 = vld [vmem:[%s0 + $0x6c8] sm:$0xff]
  %v235 = vld [vmem:[%s0 + $0x6d0] sm:$0xff]
  %v236 = vld [vmem:[%s0 + $0x6d8] sm:$0xff]
  %v237 = vld [vmem:[%s0 + $0x6e0] sm:$0xff]
  %v238 = vld [vmem:[%s0 + $0x6e8] sm:$0xff]
  %v239 = vld [vmem:[%s0 + $0x6f0] sm:$0xff]
  %v240 = vld [vmem:[%s0 + $0x6f8] sm:$0xff]
  %v241 = vld [vmem:[%s0 + $0x700] sm:$0xff]
  %v242 = vld [vmem:[%s0 + $0x708] sm:$0xff]
  %v243 = vld [vmem:[%s0 + $0x710] sm:$0xff]
  %v244 = vld [vmem:[%s0 + $0x718] sm:$0xff]
  %v245 = vld [vmem:[%s0 + $0x720] sm:$0xff]
  %v246 = vld [vmem:[%s0 + $0x728] sm:$0xff]
  %v247 = vld [vmem:[%s0 + $0x730] sm:$0xff]
  %v248 = vld [vmem:[%s0 + $0x738] sm:$0xff]
  %v249 = vld [vmem:[%s0 + $0x740] sm:$0xff]
  %v250 = vld [vmem:[%s0 + $0x748] sm:$0xff]
  %v251 = vld [vmem:[%s0 + $0x750] sm:$0xff]
  %v252 = vld [vmem:[%s0 + $0x758] sm:$0xff]
  %v253 = vld [vmem:[%s0 + $0x760] sm:$0xff]
  %v254 = vld [vmem:[%s0 + $0x768] sm:$0xff]
  %v255 = vld [vmem:[%s0 + $0x770] sm:$0xff]
  %v256 = vld [vmem:[%s0 + $0x778] sm:$0xff]
  %v257 = vld [vmem:[%s0 + $0x780] sm:$0xff]
  %v258 = vld [vmem:[%s0 + $0x788] sm:$0xff]
  %v259 = vld [vmem:[%s0 + $0x790] sm:$0xff]
  %v260 = vld [vmem:[%s0 + $0x798] sm:$0xff]
  %v261 = vld [vmem:[%s0 + $0x7a0] sm:$0xff]
  %v262 = vld [vmem:[%s0 + $0x7a8] sm:$0xff]
  %v263 = vld [vmem:[%s0 + $0x7b0] sm:$0xff]
  %v264 = vld [vmem:[%s0 + $0x7b8] sm:$0xff]
  %v265 = vld [vmem:[%s0 + $0x7c0] sm:$0xff]
  %v266 = vld [vmem:[%s0 + $0x7c8] sm:$0xff]
  %v267 = vld [vmem:[%s0 + $0x7d0] sm:$0xff]
  %v268 = vld [vmem:[%s0 + $0x7d8] sm:$0xff]
  %v269 = vld [vmem:[%s0 + $0x7e0] sm:$0xff]
  %v270 = vld [vmem:[%s0 + $0x7e8] sm:$0xff]
  %v271 = vld [vmem:[%s0 + $0x7f0] sm:$0xff]
  %v272 = vld [vmem:[%s0 + $0x7f8] sm:$0xff]
  %v273 = vld [vmem:[%s0 + $0x800] sm:$0xff]
  %v274 = vld [vmem:[%s0 + $0x808] sm:$0xff]
  %v275 = vld [vmem:[%s0 + $0x810] sm:$0xff]
  %v276 = vld [vmem:[%s0 + $0x818] sm:$0xff]
  %v277 = vld [vmem:[%s0 + $0x820] sm:$0xff]
  %v278 = vld [vmem:[%s0 + $0x828] sm:$0xff]
  %v279 = vld [vmem:[%s0 + $0x830] sm:$0xff]
  %v280 = vld [vmem:[%s0 + $0x838] sm:$0xff]
  %v281 = vld [vmem:[%s0 + $0x840] sm:$0xff]
  %v282 = vld [vmem:[%s0 + $0x848] sm:$0xff]
  %v283 = vld [vmem:[%s0 + $0x850] sm:$0xff]
  %v284 = vld [vmem:[%s0 + $0x858] sm:$0xff]
  %v285 = vld [vmem:[%s0 + $0x860] sm:$0xff]
  %v286 = vld [vmem:[%s0 + $0x868] sm:$0xff]
  %v287 = vld [vmem:[%s0 + $0x870] sm:$0xff]
  %v288 = vld [vmem:[%s0 + $0x878] sm:$0xff]
  %v289 = vld [vmem:[%s0 + $0x880] sm:$0xff]
  %v290 = vld [vmem:[%s0 + $0x888] sm:$0xff]
  %v291 = vld [vmem:[%s0 + $0x890] sm:$0xff]
  %v292 = vld [vmem:[%s0 + $0x898] sm:$0xff]
  %v293 = vld [vmem:[%s0 + $0x8a0] sm:$0xff]
  %v294 = vld [vmem:[%s0 + $0x8a8] sm:$0xff]
  %v295 = vld [vmem:[%s0 + $0x8b0] sm:$0xff]
  %v296 = vld [vmem:[%s0 + $0x8b8] sm:$0xff]
  %v297 = vld [vmem:[%s0 + $0x8c0] sm:$0xff]
  %v298 = vld [vmem:[%s0 + $0x8c8] sm:$0xff]
  %v299 = vld [vmem:[%s0 + $0x8d0] sm:$0xff]
  %v300 = vld [vmem:[%s0 + $0x8d8] sm:$0xff]
  %v301 = vld [vmem:[%s0 + $0x8e0] sm:$0xff]
  %v302 = vld [vmem:[%s0 + $0x8e8] sm:$0xff]
  %v303 = vld [vmem:[%s0 + $0x8f0] sm:$0xff]
  %v304 = vld [vmem:[%s0 + $0x8f8] sm:$0xff]
  %v305 = vld [vmem:[%s0 + $0x900] sm:$0xff]
  %v306 = vld [vmem:[%s0 + $0x908] sm:$0xff]
  %v307 = vld [vmem:[%s0 + $0x910] sm:$0xff]
  %v308 = vld [vmem:[%s0 + $0x918] sm:$0xff]
  %v309 = vld [vmem:[%s0 + $0x920] sm:$0xff]
  %v310 = vld [vmem:[%s0 + $0x928] sm:$0xff]
  %v311 = vld [vmem:[%s0 + $0x930] sm:$0xff]
  %v312 = vld [vmem:[%s0 + $0x938] sm:$0xff]
  %v313 = vld [vmem:[%s0 + $0x940] sm:$0xff]
  %v314 = vld [vmem:[%s0 + $0x948] sm:$0xff]
  %v315 = vld [vmem:[%s0 + $0x950] sm:$0xff]
  %v316 = vld [vmem:[%s0 + $0x958] sm:$0xff]
  %v317 = vld [vmem:[%s0 + $0x960] sm:$0xff]
  %v318 = vld [vmem:[%s0 + $0x968] sm:$0xff]
  %v319 = vld [vmem:[%s0 + $0x970] sm:$0xff]
  %v320 = vld [vmem:[%s0 + $0x978] sm:$0xff]
  %v321 = vld [vmem:[%s0 + $0x980] sm:$0xff]
  %v322 = vld [vmem:[%s0 + $0x988] sm:$0xff]
  %v323 = vld [vmem:[%s0 + $0x990] sm:$0xff]
  %v324 = vld [vmem:[%s0 + $0x998] sm:$0xff]
  %v325 = vld [vmem:[%s0 + $0x9a0] sm:$0xff]
  %v326 = vld [vmem:[%s0 + $0x9a8] sm:$0xff]
  %v327 = vld [vmem:[%s0 + $0x9b0] sm:$0xff]
  %v328 = vld [vmem:[%s0 + $0x9b8] sm:$0xff]
  %v329 = vld [vmem:[%s0 + $0x9c0] sm:$0xff]
  %v330 = vld [vmem:[%s0 + $0x9c8] sm:$0xff]
  %v331 = vld [vmem:[%s0 + $0x9d0] sm:$0xff]
  %v332 = vld [vmem:[%s0 + $0x9d8] sm:$0xff]
  %v333 = vld [vmem:[%s0 + $0x9e0] sm:$0xff]
  %v334 = vld [vmem:[%s0 + $0x9e8] sm:$0xff]
  %v335 = vld [vmem:[%s0 + $0x9f0] sm:$0xff]
  %v336 = vld [vmem:[%s0 + $0x9f8] sm:$0xff]
  %v337 = vld [vmem:[%s0 + $0xa00] sm:$0xff]
  %v338 = vld [vmem:[%s0 + $0xa08] sm:$0xff]
  %v339 = vld [vmem:[%s0 + $0xa10] sm:$0xff]
  %v340 = vld [vmem:[%s0 + $0xa18] sm:$0xff]
  %v341 = vld [vmem:[%s0 + $0xa20] sm:$0xff]
  %v342 = vld [vmem:[%s0 + $0xa28] sm:$0xff]
  %v343 = vld [vmem:[%s0 + $0xa30] sm:$0xff]
  %v344 = vld [vmem:[%s0 + $0xa38] sm:$0xff]
  %v345 = vld [vmem:[%s0 + $0xa40] sm:$0xff]
  %v346 = vld [vmem:[%s0 + $0xa48] sm:$0xff]
  %v347 = vld [vmem:[%s0 + $0xa50] sm:$0xff]
  %v348 = vld [vmem:[%s0 + $0xa58] sm:$0xff]
  %v349 = vld [vmem:[%s0 + $0xa60] sm:$0xff]
  %v350 = vld [vmem:[%s0 + $0xa68] sm:$0xff]
  %v351 = vld [vmem:[%s0 + $0xa70] sm:$0xff]
  %v352 = vld [vmem:[%s0 + $0xa78] sm:$0xff]
  %v353 = vld [vmem:[%s0 + $0xa80] sm:$0xff]
  %v354 = vld [vmem:[%s0 + $0xa88] sm:$0xff]
  %v355 = vld [vmem:[%s0 + $0xa90] sm:$0xff]
  %v356 = vld [vmem:[%s0 + $0xa98] sm:$0xff]
  %v357 = vld [vmem:[%s0 + $0xaa0] sm:$0xff]
  %v358 = vld [vmem:[%s0 + $0xaa8] sm:$0xff]
  %v359 = vld [vmem:[%s0 + $0xab0] sm:$0xff]
  %v360 = vld [vmem:[%s0 + $0xab8] sm:$0xff]
  %v361 = vld [vmem:[%s0 + $0xac0] sm:$0xff]
  %v362 = vld [vmem:[%s0 + $0xac8] sm:$0xff]
  %v363 = vld [vmem:[%s0 + $0xad0] sm:$0xff]
  %v364 = vld [vmem:[%s0 + $0xad8] sm:$0xff]
  %v365 = vld [vmem:[%s0 + $0xae0] sm:$0xff]
  %v366 = vld [vmem:[%s0 + $0xae8] sm:$0xff]
  %v367 = vld [vmem:[%s0 + $0xaf0] sm:$0xff]
  %v368 = vld [vmem:[%s0 + $0xaf8] sm:$0xff]
  %v369 = vld [vmem:[%s0 + $0xb00] sm:$0xff]
  %v370 = vld [vmem:[%s0 + $0xb08] sm:$0xff]
  %v371 = vld [vmem:[%s0 + $0xb10] sm:$0xff]
  %v372 = vld [vmem:[%s0 + $0xb18] sm:$0xff]
  %v373 = vld [vmem:[%s0 + $0xb20] sm:$0xff]
  %v374 = vld [vmem:[%s0 + $0xb28] sm:$0xff]
  %v375 = vld [vmem:[%s0 + $0xb30] sm:$0xff]
  %v376 = vld [vmem:[%s0 + $0xb38] sm:$0xff]
  %v377 = vld [vmem:[%s0 + $0xb40] sm:$0xff]
  %v378 = vld [vmem:[%s0 + $0xb48] sm:$0xff]
  %v379 = vld [vmem:[%s0 + $0xb50] sm:$0xff]
  %v380 = vld [vmem:[%s0 + $0xb58] sm:$0xff]
  %v381 = vld [vmem:[%s0 + $0xb60] sm:$0xff]
  %v382 = vld [vmem:[%s0 + $0xb68] sm:$0xff]
  %v383 = vld [vmem:[%s0 + $0xb70] sm:$0xff]
  %v384 = vld [vmem:[%s0 + $0xb78] sm:$0xff]
  %v385 = vld [vmem:[%s0 + $0xb80] sm:$0xff]
  %v386 = vld [vmem:[%s0 + $0xb88] sm:$0xff]
  %v387 = vld [vmem:[%s0 + $0xb90] sm:$0xff]
  %v388 = vld [vmem:[%s0 + $0xb98] sm:$0xff]
  %v389 = vld [vmem:[%s0 + $0xba0] sm:$0xff]
  %v390 = vld [vmem:[%s0 + $0xba8] sm:$0xff]
  %v391 = vld [vmem:[%s0 + $0xbb0] sm:$0xff]
  %v392 = vld [vmem:[%s0 + $0xbb8] sm:$0xff]
  %v393 = vld [vmem:[%s0 + $0xbc0] sm:$0xff]
  %v394 = vld [vmem:[%s0 + $0xbc8] sm:$0xff]
  %v395 = vld [vmem:[%s0 + $0xbd0] sm:$0xff]
  %v396 = vld [vmem:[%s0 + $0xbd8] sm:$0xff]
  %v397 = vld [vmem:[%s0 + $0xbe0] sm:$0xff]
  %v398 = vld [vmem:[%s0 + $0xbe8] sm:$0xff]
  %v399 = vld [vmem:[%s0 + $0xbf0] sm:$0xff]
  %v400 = vld [vmem:[%s0 + $0xbf8] sm:$0xff]
  %v401 = vld [vmem:[%s0 + $0xc00] sm:$0xff]
  %v402 = vld [vmem:[%s0 + $0xc08] sm:$0xff]
  %v403 = vld [vmem:[%s0 + $0xc10] sm:$0xff]
  %v404 = vld [vmem:[%s0 + $0xc18] sm:$0xff]
  %v405 = vld [vmem:[%s0 + $0xc20] sm:$0xff]
  %v406 = vld [vmem:[%s0 + $0xc28] sm:$0xff]
  %v407 = vld [vmem:[%s0 + $0xc30] sm:$0xff]
  %v408 = vld [vmem:[%s0 + $0xc38] sm:$0xff]
  %v409 = vld [vmem:[%s0 + $0xc40] sm:$0xff]
  %v410 = vld [vmem:[%s0 + $0xc48] sm:$0xff]
  %v411 = vld [vmem:[%s0 + $0xc50] sm:$0xff]
  %v412 = vld [vmem:[%s0 + $0xc58] sm:$0xff]
  %v413 = vld [vmem:[%s0 + $0xc60] sm:$0xff]
  %v414 = vld [vmem:[%s0 + $0xc68] sm:$0xff]
  %v415 = vld [vmem:[%s0 + $0xc70] sm:$0xff]
  %v416 = vld [vmem:[%s0 + $0xc78] sm:$0xff]
  %v417 = vld [vmem:[%s0 + $0xc80] sm:$0xff]
  %v418 = vld [vmem:[%s0 + $0xc88] sm:$0xff]
  %v419 = vld [vmem:[%s0 + $0xc90] sm:$0xff]
  %v420 = vld [vmem:[%s0 + $0xc98] sm:$0xff]
  %v421 = vld [vmem:[%s0 + $0xca0] sm:$0xff]
  %v422 = vld [vmem:[%s0 + $0xca8] sm:$0xff]
  %v423 = vld [vmem:[%s0 + $0xcb0] sm:$0xff]
  %v424 = vld [vmem:[%s0 + $0xcb8] sm:$0xff]
  %v425 = vld [vmem:[%s0 + $0xcc0] sm:$0xff]
  %v426 = vld [vmem:[%s0 + $0xcc8] sm:$0xff]
  %v427 = vld [vmem:[%s0 + $0xcd0] sm:$0xff]
  %v428 = vld [vmem:[%s0 + $0xcd8] sm:$0xff]
  %v429 = vld [vmem:[%s0 + $0xce0] sm:$0xff]
  %v430 = vld [vmem:[%s0 + $0xce8] sm:$0xff]
  %v431 = vld [vmem:[%s0 + $0xcf0] sm:$0xff]
  %v432 = vld [vmem:[%s0 + $0xcf8] sm:$0xff]
  %v433 = vld [vmem:[%s0 + $0xd00] sm:$0xff]
  %v434 = vld [vmem:[%s0 + $0xd08] sm:$0xff]
  %v435 = vld [vmem:[%s0 + $0xd10] sm:$0xff]
  %v436 = vld [vmem:[%s0 + $0xd18] sm:$0xff]
  %v437 = vld [vmem:[%s0 + $0xd20] sm:$0xff]
  %v438 = vld [vmem:[%s0 + $0xd28] sm:$0xff]
  %v439 = vld [vmem:[%s0 + $0xd30] sm:$0xff]
  %v440 = vld [vmem:[%s0 + $0xd38] sm:$0xff]
  %v441 = vld [vmem:[%s0 + $0xd40] sm:$0xff]
  %v442 = vld [vmem:[%s0 + $0xd48] sm:$0xff]
  %v443 = vld [vmem:[%s0 + $0xd50] sm:$0xff]
  %v444 = vld [vmem:[%s0 + $0xd58] sm:$0xff]
  %v445 = vld [vmem:[%s0 + $0xd60] sm:$0xff]
  %v446 = vld [vmem:[%s0 + $0xd68] sm:$0xff]
  %v447 = vld [vmem:[%s0 + $0xd70] sm:$0xff]
  %v448 = vld [vmem:[%s0 + $0xd78] sm:$0xff]
  %v449 = vld [vmem:[%s0 + $0xd80] sm:$0xff]
  %v450 = vld [vmem:[%s0 + $0xd88] sm:$0xff]
  %v451 = vld [vmem:[%s0 + $0xd90] sm:$0xff]
  %v452 = vld [vmem:[%s0 + $0xd98] sm:$0xff]
  %v453 = vld [vmem:[%s0 + $0xda0] sm:$0xff]
  %v454 = vld [vmem:[%s0 + $0xda8] sm:$0xff]
  %v455 = vld [vmem:[%s0 + $0xdb0] sm:$0xff]
  %v456 = vld [vmem:[%s0 + $0xdb8] sm:$0xff]
  %v457 = vld [vmem:[%s0 + $0xdc0] sm:$0xff]
  %v458 = vld [vmem:[%s0 + $0xdc8] sm:$0xff]
  %v459 = vld [vmem:[%s0 + $0xdd0] sm:$0xff]
  %v460 = vld [vmem:[%s0 + $0xdd8] sm:$0xff]
  %v461 = vld [vmem:[%s0 + $0xde0] sm:$0xff]
  %v462 = vld [vmem:[%s0 + $0xde8] sm:$0xff]
  %v463 = vld [vmem:[%s0 + $0xdf0] sm:$0xff]
  %v464 = vld [vmem:[%s0 + $0xdf8] sm:$0xff]
  %v465 = vld [vmem:[%s0 + $0xe00] sm:$0xff]
  %v466 = vld [vmem:[%s0 + $0xe08] sm:$0xff]
  %v467 = vld [vmem:[%s0 + $0xe10] sm:$0xff]
  %v468 = vld [vmem:[%s0 + $0xe18] sm:$0xff]
  %v469 = vld [vmem:[%s0 + $0xe20] sm:$0xff]
  %v470 = vld [vmem:[%s0 + $0xe28] sm:$0xff]
  %v471 = vld [vmem:[%s0 + $0xe30] sm:$0xff]
  %v472 = vld [vmem:[%s0 + $0xe38] sm:$0xff]
  %v473 = vld [vmem:[%s0 + $0xe40] sm:$0xff]
  %v474 = vld [vmem:[%s0 + $0xe48] sm:$0xff]
  %v475 = vld [vmem:[%s0 + $0xe50] sm:$0xff]
  %v476 = vld [vmem:[%s0 + $0xe58] sm:$0xff]
  %v477 = vld [vmem:[%s0 + $0xe60] sm:$0xff]
  %v478 = vld [vmem:[%s0 + $0xe68] sm:$0xff]
  %v479 = vld [vmem:[%s0 + $0xe70] sm:$0xff]
  %v480 = vld [vmem:[%s0 + $0xe78] sm:$0xff]
  %v481 = vld [vmem:[%s0 + $0xe80] sm:$0xff]
  %v482 = vld [vmem:[%s0 + $0xe88] sm:$0xff]
  %v483 = vld [vmem:[%s0 + $0xe90] sm:$0xff]
  %v484 = vld [vmem:[%s0 + $0xe98] sm:$0xff]
  %v485 = vld [vmem:[%s0 + $0xea0] sm:$0xff]
  %v486 = vld [vmem:[%s0 + $0xea8] sm:$0xff]
  %v487 = vld [vmem:[%s0 + $0xeb0] sm:$0xff]
  %v488 = vld [vmem:[%s0 + $0xeb8] sm:$0xff]
  %v489 = vld [vmem:[%s0 + $0xec0] sm:$0xff]
  %v490 = vld [vmem:[%s0 + $0xec8] sm:$0xff]
  %v491 = vld [vmem:[%s0 + $0xed0] sm:$0xff]
  %v492 = vld [vmem:[%s0 + $0xed8] sm:$0xff]
  %v493 = vld [vmem:[%s0 + $0xee0] sm:$0xff]
  %v494 = vld [vmem:[%s0 + $0xee8] sm:$0xff]
  %v495 = vld [vmem:[%s0 + $0xef0] sm:$0xff]
  %v496 = vld [vmem:[%s0 + $0xef8] sm:$0xff]
  %v497 = vld [vmem:[%s0 + $0xf00] sm:$0xff]
  %v498 = vld [vmem:[%s0 + $0xf08] sm:$0xff]
  %v499 = vld [vmem:[%s0 + $0xf10] sm:$0xff]
  %v500 = vld [vmem:[%s0 + $0xf18] sm:$0xff]
  %v501 = vld [vmem:[%s0 + $0xf20] sm:$0xff]
  %v502 = vld [vmem:[%s0 + $0xf28] sm:$0xff]
  %v503 = vld [vmem:[%s0 + $0xf30] sm:$0xff]
  %v504 = vld [vmem:[%s0 + $0xf38] sm:$0xff]
  %v505 = vld [vmem:[%s0 + $0xf40] sm:$0xff]
  %v506 = vld [vmem:[%s0 + $0xf48] sm:$0xff]
  %v507 = vld [vmem:[%s0 + $0xf50] sm:$0xff]
  %v508 = vld [vmem:[%s0 + $0xf58] sm:$0xff]
  %v509 = vld [vmem:[%s0 + $0xf60] sm:$0xff]
  %v510 = vld [vmem:[%s0 + $0xf68] sm:$0xff]
  %v511 = vld [vmem:[%s0 + $0xf70] sm:$0xff]
  %v512 = vld [vmem:[%s0 + $0xf78] sm:$0xff]
  %v513 = vld [vmem:[%s0 + $0xf80] sm:$0xff]
  %v514 = vld [vmem:[%s0 + $0xf88] sm:$0xff]
  %v515 = vld [vmem:[%s0 + $0xf90] sm:$0xff]
  %v516 = vld [vmem:[%s0 + $0xf98] sm:$0xff]
  %v517 = vld [vmem:[%s0 + $0xfa0] sm:$0xff]
  %v518 = vld [vmem:[%s0 + $0xfa8] sm:$0xff]
  %v519 = vld [vmem:[%s0 + $0xfb0] sm:$0xff]
  %v520 = vld [vmem:[%s0 + $0xfb8] sm:$0xff]
  %v521 = vld [vmem:[%s0 + $0xfc0] sm:$0xff]
  %v522 = vld [vmem:[%s0 + $0xfc8] sm:$0xff]
  %v523 = vld [vmem:[%s0 + $0xfd0] sm:$0xff]
  %v524 = vld [vmem:[%s0 + $0xfd8] sm:$0xff]
  %v525 = vld [vmem:[%s0 + $0xfe0] sm:$0xff]
  %v526 = vld [vmem:[%s0 + $0xfe8] sm:$0xff]
  %v527 = vld [vmem:[%s0 + $0xff0] sm:$0xff]
  %v528 = vld [vmem:[%s0 + $0xff8] sm:$0xff]
  %v529 = vld [vmem:[%s0 + $0x1000] sm:$0xff]
  %v530 = vld [vmem:[%s0 + $0x1008] sm:$0xff]
  %v531 = vld [vmem:[%s0 + $0x1010] sm:$0xff]
  %v532 = vld [vmem:[%s0 + $0x1018] sm:$0xff]
  %v533 = vld [vmem:[%s0 + $0x1020] sm:$0xff]
  %v534 = vld [vmem:[%s0 + $0x1028] sm:$0xff]
  %v535 = vld [vmem:[%s0 + $0x1030] sm:$0xff]
  %v536 = vld [vmem:[%s0 + $0x1038] sm:$0xff]
  %v537 = vld [vmem:[%s0 + $0x1040] sm:$0xff]
  %v538 = vld [vmem:[%s0 + $0x1048] sm:$0xff]
  %v539 = vld [vmem:[%s0 + $0x1050] sm:$0xff]
  %v540 = vld [vmem:[%s0 + $0x1058] sm:$0xff]
  %v541 = vld [vmem:[%s0 + $0x1060] sm:$0xff]
  %v542 = vld [vmem:[%s0 + $0x1068] sm:$0xff]
  %v543 = vld [vmem:[%s0 + $0x1070] sm:$0xff]
  %v544 = vld [vmem:[%s0 + $0x1078] sm:$0xff]
  %v545 = vld [vmem:[%s0 + $0x1080] sm:$0xff]
  %v546 = vld [vmem:[%s0 + $0x1088] sm:$0xff]
  %v547 = vld [vmem:[%s0 + $0x1090] sm:$0xff]
  %v548 = vld [vmem:[%s0 + $0x1098] sm:$0xff]
  %v549 = vld [vmem:[%s0 + $0x10a0] sm:$0xff]
  %v550 = vld [vmem:[%s0 + $0x10a8] sm:$0xff]
  %v551 = vld [vmem:[%s0 + $0x10b0] sm:$0xff]
  %v552 = vld [vmem:[%s0 + $0x10b8] sm:$0xff]
  %v553 = vld [vmem:[%s0 + $0x10c0] sm:$0xff]
  %v554 = vld [vmem:[%s0 + $0x10c8] sm:$0xff]
  %v555 = vld [vmem:[%s0 + $0x10d0] sm:$0xff]
  %v556 = vld [vmem:[%s0 + $0x10d8] sm:$0xff]
  %v557 = vld [vmem:[%s0 + $0x10e0] sm:$0xff]
  %v558 = vld [vmem:[%s0 + $0x10e8] sm:$0xff]
  %v559 = vld [vmem:[%s0 + $0x10f0] sm:$0xff]
  %v560 = vld [vmem:[%s0 + $0x10f8] sm:$0xff]
  %v561 = vld [vmem:[%s0 + $0x1100] sm:$0xff]
  %v562 = vld [vmem:[%s0 + $0x1108] sm:$0xff]
  %v563 = vld [vmem:[%s0 + $0x1110] sm:$0xff]
  %v564 = vld [vmem:[%s0 + $0x1118] sm:$0xff]
  %v565 = vld [vmem:[%s0 + $0x1120] sm:$0xff]
  %v566 = vld [vmem:[%s0 + $0x1128] sm:$0xff]
  %v567 = vld [vmem:[%s0 + $0x1130] sm:$0xff]
  %v568 = vld [vmem:[%s0 + $0x1138] sm:$0xff]
  %v569 = vld [vmem:[%s0 + $0x1140] sm:$0xff]
  %v570 = vld [vmem:[%s0 + $0x1148] sm:$0xff]
  %v571 = vld [vmem:[%s0 + $0x1150] sm:$0xff]
  %v572 = vld [vmem:[%s0 + $0x1158] sm:$0xff]
  %v573 = vld [vmem:[%s0 + $0x1160] sm:$0xff]
  %v574 = vld [vmem:[%s0 + $0x1168] sm:$0xff]
  %v575 = vld [vmem:[%s0 + $0x1170] sm:$0xff]
  %v576 = vld [vmem:[%s0 + $0x1178] sm:$0xff]
  %v577 = vld [vmem:[%s0 + $0x1180] sm:$0xff]
  %v578 = vld [vmem:[%s0 + $0x1188] sm:$0xff]
  %v579 = vld [vmem:[%s0 + $0x1190] sm:$0xff]
  %v580 = vld [vmem:[%s0 + $0x1198] sm:$0xff]
  %v581 = vld [vmem:[%s0 + $0x11a0] sm:$0xff]
  %v582 = vld [vmem:[%s0 + $0x11a8] sm:$0xff]
  %v583 = vld [vmem:[%s0 + $0x11b0] sm:$0xff]
  %v584 = vld [vmem:[%s0 + $0x11b8] sm:$0xff]
  %v585 = vld [vmem:[%s0 + $0x11c0] sm:$0xff]
  %v586 = vld [vmem:[%s0 + $0x11c8] sm:$0xff]
  %v587 = vld [vmem:[%s0 + $0x11d0] sm:$0xff]
  %v588 = vld [vmem:[%s0 + $0x11d8] sm:$0xff]
  %v589 = vld [vmem:[%s0 + $0x11e0] sm:$0xff]
  %v590 = vld [vmem:[%s0 + $0x11e8] sm:$0xff]
  %v591 = vld [vmem:[%s0 + $0x11f0] sm:$0xff]
  %v592 = vld [vmem:[%s0 + $0x11f8] sm:$0xff]
  %v593 = vld [vmem:[%s0 + $0x1200] sm:$0xff]
  %v594 = vld [vmem:[%s0 + $0x1208] sm:$0xff]
  %v595 = vld [vmem:[%s0 + $0x1210] sm:$0xff]
  %v596 = vld [vmem:[%s0 + $0x1218] sm:$0xff]
  %v597 = vld [vmem:[%s0 + $0x1220] sm:$0xff]
  %v598 = vld [vmem:[%s0 + $0x1228] sm:$0xff]
  %v599 = vld [vmem:[%s0 + $0x1230] sm:$0xff]
  %v600 = vld [vmem:[%s0 + $0x1238] sm:$0xff]
  %v601 = vld [vmem:[%s0 + $0x1240] sm:$0xff]
  %v602 = vld [vmem:[%s0 + $0x1248] sm:$0xff]
  %v603 = vld [vmem:[%s0 + $0x1250] sm:$0xff]
  %v604 = vld [vmem:[%s0 + $0x1258] sm:$0xff]
  %v605 = vld [vmem:[%s0 + $0x1260] sm:$0xff]
  %v606 = vld [vmem:[%s0 + $0x1268] sm:$0xff]
  %v607 = vld [vmem:[%s0 + $0x1270] sm:$0xff]
  %v608 = vld [vmem:[%s0 + $0x1278] sm:$0xff]
  %v609 = vld [vmem:[%s0 + $0x1280] sm:$0xff]
  %v610 = vld [vmem:[%s0 + $0x1288] sm:$0xff]
  %v611 = vld [vmem:[%s0 + $0x1290] sm:$0xff]
  %v612 = vld [vmem:[%s0 + $0x1298] sm:$0xff]
  %v613 = vld [vmem:[%s0 + $0x12a0] sm:$0xff]
  %v614 = vld [vmem:[%s0 + $0x12a8] sm:$0xff]
  %v615 = vld [vmem:[%s0 + $0x12b0] sm:$0xff]
  %v616 = vld [vmem:[%s0 + $0x12b8] sm:$0xff]
  %v617 = vld [vmem:[%s0 + $0x12c0] sm:$0xff]
  %v618 = vld [vmem:[%s0 + $0x12c8] sm:$0xff]
  %v619 = vld [vmem:[%s0 + $0x12d0] sm:$0xff]
  %v620 = vld [vmem:[%s0 + $0x12d8] sm:$0xff]
  %v621 = vld [vmem:[%s0 + $0x12e0] sm:$0xff]
  %v622 = vld [vmem:[%s0 + $0x12e8] sm:$0xff]
  %v623 = vld [vmem:[%s0 + $0x12f0] sm:$0xff]
  %v624 = vld [vmem:[%s0 + $0x12f8] sm:$0xff]
  %v625 = vld [vmem:[%s0 + $0x1300] sm:$0xff]
  %v626 = vld [vmem:[%s0 + $0x1308] sm:$0xff]
  %v627 = vld [vmem:[%s0 + $0x1310] sm:$0xff]
  %v628 = vld [vmem:[%s0 + $0x1318] sm:$0xff]
  %v629 = vld [vmem:[%s0 + $0x1320] sm:$0xff]
  %v630 = vld [vmem:[%s0 + $0x1328] sm:$0xff]
  %v631 = vld [vmem:[%s0 + $0x1330] sm:$0xff]
  %v632 = vld [vmem:[%s0 + $0x1338] sm:$0xff]
  %v633 = vld [vmem:[%s0 + $0x1340] sm:$0xff]
  %v634 = vld [vmem:[%s0 + $0x1348] sm:$0xff]
  %v635 = vld [vmem:[%s0 + $0x1350] sm:$0xff]
  %v636 = vld [vmem:[%s0 + $0x1358] sm:$0xff]
  %v637 = vld [vmem:[%s0 + $0x1360] sm:$0xff]
  %v638 = vld [vmem:[%s0 + $0x1368] sm:$0xff]
  %v639 = vld [vmem:[%s0 + $0x1370] sm:$0xff]
  %v640 = vld [vmem:[%s0 + $0x1378] sm:$0xff]
  %v641 = vld [vmem:[%s0 + $0x1380] sm:$0xff]
  %v642 = vld [vmem:[%s0 + $0x1388] sm:$0xff]
  %v643 = vld [vmem:[%s0 + $0x1390] sm:$0xff]
  %v644 = vld [vmem:[%s0 + $0x1398] sm:$0xff]
  %v645 = vld [vmem:[%s0 + $0x13a0] sm:$0xff]
  %v646 = vld [vmem:[%s0 + $0x13a8] sm:$0xff]
  %v647 = vld [vmem:[%s0 + $0x13b0] sm:$0xff]
  %v648 = vld [vmem:[%s0 + $0x13b8] sm:$0xff]
  %v649 = vld [vmem:[%s0 + $0x13c0] sm:$0xff]
  %v650 = vld [vmem:[%s0 + $0x13c8] sm:$0xff]
  %v651 = vld [vmem:[%s0 + $0x13d0] sm:$0xff]
  %v652 = vld [vmem:[%s0 + $0x13d8] sm:$0xff]
  %v653 = vld [vmem:[%s0 + $0x13e0] sm:$0xff]
  %v654 = vld [vmem:[%s0 + $0x13e8] sm:$0xff]
  %v655 = vld [vmem:[%s0 + $0x13f0] sm:$0xff]
  %v656 = vld [vmem:[%s0 + $0x13f8] sm:$0xff]
  %v657 = vld [vmem:[%s1] sm:$0xff]
  %v658 = vld [vmem:[%s1 + $0x8] sm:$0xff]
  %v659 = vld [vmem:[%s1 + $0x10] sm:$0xff]
  %v660 = vld [vmem:[%s1 + $0x18] sm:$0xff]
  %v661 = vld [vmem:[%s1 + $0x20] sm:$0xff]
  %v662 = vld [vmem:[%s1 + $0x28] sm:$0xff]
  %v663 = vld [vmem:[%s1 + $0x30] sm:$0xff]
  %v664 = vld [vmem:[%s1 + $0x38] sm:$0xff]
  %v665 = vld [vmem:[%s1 + $0x40] sm:$0xff]
  %v666 = vld [vmem:[%s1 + $0x48] sm:$0xff]
  %v667 = vld [vmem:[%s1 + $0x50] sm:$0xff]
  %v668 = vld [vmem:[%s1 + $0x58] sm:$0xff]
  %v669 = vld [vmem:[%s1 + $0x60] sm:$0xff]
  %v670 = vld [vmem:[%s1 + $0x68] sm:$0xff]
  %v671 = vld [vmem:[%s1 + $0x70] sm:$0xff]
  %v672 = vld [vmem:[%s1 + $0x78] sm:$0xff]
  %v673 = vld [vmem:[%s1 + $0x80] sm:$0xff]
  %v674 = vld [vmem:[%s1 + $0x88] sm:$0xff]
  %v675 = vld [vmem:[%s1 + $0x90] sm:$0xff]
  %v676 = vld [vmem:[%s1 + $0x98] sm:$0xff]
  %v677 = vld [vmem:[%s1 + $0xa0] sm:$0xff]
  %v678 = vld [vmem:[%s1 + $0xa8] sm:$0xff]
  %v679 = vld [vmem:[%s1 + $0xb0] sm:$0xff]
  %v680 = vld [vmem:[%s1 + $0xb8] sm:$0xff]
  %v681 = vld [vmem:[%s1 + $0xc0] sm:$0xff]
  %v682 = vld [vmem:[%s1 + $0xc8] sm:$0xff]
  %v683 = vld [vmem:[%s1 + $0xd0] sm:$0xff]
  %v684 = vld [vmem:[%s1 + $0xd8] sm:$0xff]
  %v685 = vld [vmem:[%s1 + $0xe0] sm:$0xff]
  %v686 = vld [vmem:[%s1 + $0xe8] sm:$0xff]
  %v687 = vld [vmem:[%s1 + $0xf0] sm:$0xff]
  %v688 = vld [vmem:[%s1 + $0xf8] sm:$0xff]
  %v689 = vld [vmem:[%s1 + $0x100] sm:$0xff]
  %v690 = vld [vmem:[%s1 + $0x108] sm:$0xff]
  %v691 = vld [vmem:[%s1 + $0x110] sm:$0xff]
  %v692 = vld [vmem:[%s1 + $0x118] sm:$0xff]
  %v693 = vld [vmem:[%s1 + $0x120] sm:$0xff]
  %v694 = vld [vmem:[%s1 + $0x128] sm:$0xff]
  %v695 = vld [vmem:[%s1 + $0x130] sm:$0xff]
  %v696 = vld [vmem:[%s1 + $0x138] sm:$0xff]
  %v697 = vld [vmem:[%s1 + $0x140] sm:$0xff]
  %v698 = vld [vmem:[%s1 + $0x148] sm:$0xff]
  %v699 = vld [vmem:[%s1 + $0x150] sm:$0xff]
  %v700 = vld [vmem:[%s1 + $0x158] sm:$0xff]
  %v701 = vld [vmem:[%s1 + $0x160] sm:$0xff]
  %v702 = vld [vmem:[%s1 + $0x168] sm:$0xff]
  %v703 = vld [vmem:[%s1 + $0x170] sm:$0xff]
  %v704 = vld [vmem:[%s1 + $0x178] sm:$0xff]
  %v705 = vld [vmem:[%s1 + $0x180] sm:$0xff]
  %v706 = vld [vmem:[%s1 + $0x188] sm:$0xff]
  %v707 = vld [vmem:[%s1 + $0x190] sm:$0xff]
  %v708 = vld [vmem:[%s1 + $0x198] sm:$0xff]
  %v709 = vld [vmem:[%s1 + $0x1a0] sm:$0xff]
  %v710 = vld [vmem:[%s1 + $0x1a8] sm:$0xff]
  %v711 = vld [vmem:[%s1 + $0x1b0] sm:$0xff]
  %v712 = vld [vmem:[%s1 + $0x1b8] sm:$0xff]
  %v713 = vld [vmem:[%s1 + $0x1c0] sm:$0xff]
  %v714 = vld [vmem:[%s1 + $0x1c8] sm:$0xff]
  %v715 = vld [vmem:[%s1 + $0x1d0] sm:$0xff]
  %v716 = vld [vmem:[%s1 + $0x1d8] sm:$0xff]
  %v717 = vld [vmem:[%s1 + $0x1e0] sm:$0xff]
  %v718 = vld [vmem:[%s1 + $0x1e8] sm:$0xff]
  %v719 = vld [vmem:[%s1 + $0x1f0] sm:$0xff]
  %v720 = vld [vmem:[%s1 + $0x1f8] sm:$0xff]
  %v721 = vld [vmem:[%s1 + $0x200] sm:$0xff]
  %v722 = vld [vmem:[%s1 + $0x208] sm:$0xff]
  %v723 = vld [vmem:[%s1 + $0x210] sm:$0xff]
  %v724 = vld [vmem:[%s1 + $0x218] sm:$0xff]
  %v725 = vld [vmem:[%s1 + $0x220] sm:$0xff]
  %v726 = vld [vmem:[%s1 + $0x228] sm:$0xff]
  %v727 = vld [vmem:[%s1 + $0x230] sm:$0xff]
  %v728 = vld [vmem:[%s1 + $0x238] sm:$0xff]
  %v729 = vld [vmem:[%s1 + $0x240] sm:$0xff]
  %v730 = vld [vmem:[%s1 + $0x248] sm:$0xff]
  %v731 = vld [vmem:[%s1 + $0x250] sm:$0xff]
  %v732 = vld [vmem:[%s1 + $0x258] sm:$0xff]
  %v733 = vld [vmem:[%s1 + $0x260] sm:$0xff]
  %v734 = vld [vmem:[%s1 + $0x268] sm:$0xff]
  %v735 = vld [vmem:[%s1 + $0x270] sm:$0xff]
  %v736 = vld [vmem:[%s1 + $0x278] sm:$0xff]
  %v737 = vld [vmem:[%s1 + $0x280] sm:$0xff]
  %v738 = vld [vmem:[%s1 + $0x288] sm:$0xff]
  %v739 = vld [vmem:[%s1 + $0x290] sm:$0xff]
  %v740 = vld [vmem:[%s1 + $0x298] sm:$0xff]
  %v741 = vld [vmem:[%s1 + $0x2a0] sm:$0xff]
  %v742 = vld [vmem:[%s1 + $0x2a8] sm:$0xff]
  %v743 = vld [vmem:[%s1 + $0x2b0] sm:$0xff]
  %v744 = vld [vmem:[%s1 + $0x2b8] sm:$0xff]
  %v745 = vld [vmem:[%s1 + $0x2c0] sm:$0xff]
  %v746 = vld [vmem:[%s1 + $0x2c8] sm:$0xff]
  %v747 = vld [vmem:[%s1 + $0x2d0] sm:$0xff]
  %v748 = vld [vmem:[%s1 + $0x2d8] sm:$0xff]
  %v749 = vld [vmem:[%s1 + $0x2e0] sm:$0xff]
  %v750 = vld [vmem:[%s1 + $0x2e8] sm:$0xff]
  %v751 = vld [vmem:[%s1 + $0x2f0] sm:$0xff]
  %v752 = vld [vmem:[%s1 + $0x2f8] sm:$0xff]
  %v753 = vld [vmem:[%s1 + $0x300] sm:$0xff]
  %v754 = vld [vmem:[%s1 + $0x308] sm:$0xff]
  %v755 = vld [vmem:[%s1 + $0x310] sm:$0xff]
  %v756 = vld [vmem:[%s1 + $0x318] sm:$0xff]
  %v757 = vld [vmem:[%s1 + $0x320] sm:$0xff]
  %v758 = vld [vmem:[%s1 + $0x328] sm:$0xff]
  %v759 = vld [vmem:[%s1 + $0x330] sm:$0xff]
  %v760 = vld [vmem:[%s1 + $0x338] sm:$0xff]
  %v761 = vld [vmem:[%s1 + $0x340] sm:$0xff]
  %v762 = vld [vmem:[%s1 + $0x348] sm:$0xff]
  %v763 = vld [vmem:[%s1 + $0x350] sm:$0xff]
  %v764 = vld [vmem:[%s1 + $0x358] sm:$0xff]
  %v765 = vld [vmem:[%s1 + $0x360] sm:$0xff]
  %v766 = vld [vmem:[%s1 + $0x368] sm:$0xff]
  %v767 = vld [vmem:[%s1 + $0x370] sm:$0xff]
  %v768 = vld [vmem:[%s1 + $0x378] sm:$0xff]
  %v769 = vld [vmem:[%s1 + $0x380] sm:$0xff]
  %v770 = vld [vmem:[%s1 + $0x388] sm:$0xff]
  %v771 = vld [vmem:[%s1 + $0x390] sm:$0xff]
  %v772 = vld [vmem:[%s1 + $0x398] sm:$0xff]
  %v773 = vld [vmem:[%s1 + $0x3a0] sm:$0xff]
  %v774 = vld [vmem:[%s1 + $0x3a8] sm:$0xff]
  %v775 = vld [vmem:[%s1 + $0x3b0] sm:$0xff]
  %v776 = vld [vmem:[%s1 + $0x3b8] sm:$0xff]
  %v777 = vld [vmem:[%s1 + $0x3c0] sm:$0xff]
  %v778 = vld [vmem:[%s1 + $0x3c8] sm:$0xff]
  %v779 = vld [vmem:[%s1 + $0x3d0] sm:$0xff]
  %v780 = vld [vmem:[%s1 + $0x3d8] sm:$0xff]
  %v781 = vld [vmem:[%s1 + $0x3e0] sm:$0xff]
  %v782 = vld [vmem:[%s1 + $0x3e8] sm:$0xff]
  %v783 = vld [vmem:[%s1 + $0x3f0] sm:$0xff]
  %v784 = vld [vmem:[%s1 + $0x3f8] sm:$0xff]
  %v785 = vld [vmem:[%s1 + $0x400] sm:$0xff]
  %v786 = vld [vmem:[%s1 + $0x408] sm:$0xff]
  %v787 = vld [vmem:[%s1 + $0x410] sm:$0xff]
  %v788 = vld [vmem:[%s1 + $0x418] sm:$0xff]
  %v789 = vld [vmem:[%s1 + $0x420] sm:$0xff]
  %v790 = vld [vmem:[%s1 + $0x428] sm:$0xff]
  %v791 = vld [vmem:[%s1 + $0x430] sm:$0xff]
  %v792 = vld [vmem:[%s1 + $0x438] sm:$0xff]
  %v793 = vld [vmem:[%s1 + $0x440] sm:$0xff]
  %v794 = vld [vmem:[%s1 + $0x448] sm:$0xff]
  %v795 = vld [vmem:[%s1 + $0x450] sm:$0xff]
  %v796 = vld [vmem:[%s1 + $0x458] sm:$0xff]
  %v797 = vld [vmem:[%s1 + $0x460] sm:$0xff]
  %v798 = vld [vmem:[%s1 + $0x468] sm:$0xff]
  %v799 = vld [vmem:[%s1 + $0x470] sm:$0xff]
  %v800 = vld [vmem:[%s1 + $0x478] sm:$0xff]
  %v801 = vld [vmem:[%s1 + $0x480] sm:$0xff]
  %v802 = vld [vmem:[%s1 + $0x488] sm:$0xff]
  %v803 = vld [vmem:[%s1 + $0x490] sm:$0xff]
  %v804 = vld [vmem:[%s1 + $0x498] sm:$0xff]
  %v805 = vld [vmem:[%s1 + $0x4a0] sm:$0xff]
  %v806 = vld [vmem:[%s1 + $0x4a8] sm:$0xff]
  %v807 = vld [vmem:[%s2] sm:$0x1]
  %v809 = vperm.slane %v807, 0
  %vm811 = vcmask 392192
  %v813 = vsel %vm811, %v26, 0
  %v816 = vsel %vm811, %v36, 0
  %v819 = vsel %vm811, %v46, 0
  %v822 = vsel %vm811, %v56, 0
  %v825 = vsel %vm811, %v66, 0
  %v828 = vsel %vm811, %v76, 0
  %v831 = vsel %vm811, %v86, 0
  %v834 = vsel %vm811, %v96, 0
  %v837 = vsel %vm811, %v106, 0
  %v840 = vsel %vm811, %v116, 0
  %v843 = vsel %vm811, %v126, 0
  %v846 = vsel %vm811, %v136, 0
  %v849 = vsel %vm811, %v146, 0
  %v852 = vsel %vm811, %v156, 0
  %v855 = vsel %vm811, %v166, 0
  %v858 = vsel %vm811, %v176, 0
  %v861 = vsel %vm811, %v186, 0
  %v864 = vsel %vm811, %v196, 0
  %v867 = vsel %vm811, %v206, 0
  %v870 = vsel %vm811, %v216, 0
  %v873 = vsel %vm811, %v226, 0
  %v876 = vsel %vm811, %v236, 0
  %v879 = vsel %vm811, %v246, 0
  %v882 = vsel %vm811, %v256, 0
  %v885 = vsel %vm811, %v266, 0
  %v888 = vsel %vm811, %v276, 0
  %v891 = vsel %vm811, %v286, 0
  %v894 = vsel %vm811, %v296, 0
  %v897 = vsel %vm811, %v306, 0
  %v900 = vsel %vm811, %v316, 0
  %v903 = vsel %vm811, %v326, 0
  %v906 = vsel %vm811, %v336, 0
  %v909 = vsel %vm811, %v346, 0
  %v912 = vsel %vm811, %v356, 0
  %v915 = vsel %vm811, %v366, 0
  %v918 = vsel %vm811, %v376, 0
  %v921 = vsel %vm811, %v386, 0
  %v924 = vsel %vm811, %v396, 0
  %v927 = vsel %vm811, %v406, 0
  %v930 = vsel %vm811, %v416, 0
  %v933 = vsel %vm811, %v426, 0
  %v936 = vsel %vm811, %v436, 0
  %v939 = vsel %vm811, %v446, 0
  %v942 = vsel %vm811, %v456, 0
  %v945 = vsel %vm811, %v466, 0
  %v948 = vsel %vm811, %v476, 0
  %v951 = vsel %vm811, %v486, 0
  %v954 = vsel %vm811, %v496, 0
  %v957 = vsel %vm811, %v506, 0
  %v960 = vsel %vm811, %v516, 0
  %v963 = vsel %vm811, %v526, 0
  %v966 = vsel %vm811, %v536, 0
  %v969 = vsel %vm811, %v546, 0
  %v972 = vsel %vm811, %v556, 0
  %v975 = vsel %vm811, %v566, 0
  %v978 = vsel %vm811, %v576, 0
  %v981 = vsel %vm811, %v586, 0
  %v984 = vsel %vm811, %v596, 0
  %v987 = vsel %vm811, %v606, 0
  %v990 = vsel %vm811, %v616, 0
  %v993 = vsel %vm811, %v626, 0
  %v996 = vsel %vm811, %v636, 0
  %v999 = vsel %vm811, %v646, 0
  %v1002 = vsel %vm811, %v656, 0
  %1004 = vmatpush.msra.mxu0 %v672
  %1005 = vmatpush.msra.mxu0 %v671
  %1006 = vmatpush.msra.mxu0 %v670
  %1007 = vmatpush.msra.mxu0 %v669
  %1008 = vmatpush.msra.mxu0 %v668
  %1009 = vmatpush.msra.mxu0 %v667
  %1010 = vmatpush.msra.mxu0 %v666
  %1011 = vmatpush.msra.mxu0 %v665
  %1012 = vmatpush.msra.mxu0 %v664
  %1013 = vmatpush.msra.mxu0 %v663
  %1014 = vmatpush.msra.mxu0 %v662
  %1015 = vmatpush.msra.mxu0 %v661
  %1016 = vmatpush.msra.mxu0 %v660
  %1017 = vmatpush.msra.mxu0 %v659
  %1018 = vmatpush.msra.mxu0 %v658
  %1019 = vmatpush.msra.mxu0 %v657
  %1020 = vmatmul.f32.gmra.mxu0 %v17
  %v1021 = vpop.f32.mrf.mxu0
  %v1022 = vadd.f32 %v809, %v1021
  %1023 = vmatmul.f32.gmra.mxu0 %v27
  %v1024 = vpop.f32.mrf.mxu0
  %v1025 = vadd.f32 %v809, %v1024
  %1026 = vmatmul.f32.gmra.mxu0 %v37
  %v1027 = vpop.f32.mrf.mxu0
  %v1028 = vadd.f32 %v809, %v1027
  %1029 = vmatmul.f32.gmra.mxu0 %v47
  %v1030 = vpop.f32.mrf.mxu0
  %v1031 = vadd.f32 %v809, %v1030
  %1032 = vmatmul.f32.gmra.mxu0 %v57
  %v1033 = vpop.f32.mrf.mxu0
  %v1034 = vadd.f32 %v809, %v1033
  %1035 = vmatmul.f32.gmra.mxu0 %v67
  %v1036 = vpop.f32.mrf.mxu0
  %v1037 = vadd.f32 %v809, %v1036
  %1038 = vmatmul.f32.gmra.mxu0 %v77
  %v1039 = vpop.f32.mrf.mxu0
  %v1040 = vadd.f32 %v809, %v1039
  %1041 = vmatmul.f32.gmra.mxu0 %v87
  %v1042 = vpop.f32.mrf.mxu0
  %v1043 = vadd.f32 %v809, %v1042
  %1044 = vmatmul.f32.gmra.mxu0 %v97
  %v1045 = vpop.f32.mrf.mxu0
  %v1046 = vadd.f32 %v809, %v1045
  %1047 = vmatmul.f32.gmra.mxu0 %v107
  %v1048 = vpop.f32.mrf.mxu0
  %v1049 = vadd.f32 %v809, %v1048
  %1050 = vmatmul.f32.gmra.mxu0 %v117
  %v1051 = vpop.f32.mrf.mxu0
  %v1052 = vadd.f32 %v809, %v1051
  %1053 = vmatmul.f32.gmra.mxu0 %v127
  %v1054 = vpop.f32.mrf.mxu0
  %v1055 = vadd.f32 %v809, %v1054
  %1056 = vmatmul.f32.gmra.mxu0 %v137
  %v1057 = vpop.f32.mrf.mxu0
  %v1058 = vadd.f32 %v809, %v1057
  %1059 = vmatmul.f32.gmra.mxu0 %v147
  %v1060 = vpop.f32.mrf.mxu0
  %v1061 = vadd.f32 %v809, %v1060
  %1062 = vmatmul.f32.gmra.mxu0 %v157
  %v1063 = vpop.f32.mrf.mxu0
  %v1064 = vadd.f32 %v809, %v1063
  %1065 = vmatmul.f32.gmra.mxu0 %v167
  %v1066 = vpop.f32.mrf.mxu0
  %v1067 = vadd.f32 %v809, %v1066
  %1068 = vmatmul.f32.gmra.mxu0 %v177
  %v1069 = vpop.f32.mrf.mxu0
  %v1070 = vadd.f32 %v809, %v1069
  %1071 = vmatmul.f32.gmra.mxu0 %v187
  %v1072 = vpop.f32.mrf.mxu0
  %v1073 = vadd.f32 %v809, %v1072
  %1074 = vmatmul.f32.gmra.mxu0 %v197
  %v1075 = vpop.f32.mrf.mxu0
  %v1076 = vadd.f32 %v809, %v1075
  %1077 = vmatmul.f32.gmra.mxu0 %v207
  %v1078 = vpop.f32.mrf.mxu0
  %v1079 = vadd.f32 %v809, %v1078
  %1080 = vmatmul.f32.gmra.mxu0 %v217
  %v1081 = vpop.f32.mrf.mxu0
  %v1082 = vadd.f32 %v809, %v1081
  %1083 = vmatmul.f32.gmra.mxu0 %v227
  %v1084 = vpop.f32.mrf.mxu0
  %v1085 = vadd.f32 %v809, %v1084
  %1086 = vmatmul.f32.gmra.mxu0 %v237
  %v1087 = vpop.f32.mrf.mxu0
  %v1088 = vadd.f32 %v809, %v1087
  %1089 = vmatmul.f32.gmra.mxu0 %v247
  %v1090 = vpop.f32.mrf.mxu0
  %v1091 = vadd.f32 %v809, %v1090
  %1092 = vmatmul.f32.gmra.mxu0 %v257
  %v1093 = vpop.f32.mrf.mxu0
  %v1094 = vadd.f32 %v809, %v1093
  %1095 = vmatmul.f32.gmra.mxu0 %v267
  %v1096 = vpop.f32.mrf.mxu0
  %v1097 = vadd.f32 %v809, %v1096
  %1098 = vmatmul.f32.gmra.mxu0 %v277
  %v1099 = vpop.f32.mrf.mxu0
  %v1100 = vadd.f32 %v809, %v1099
  %1101 = vmatmul.f32.gmra.mxu0 %v287
  %v1102 = vpop.f32.mrf.mxu0
  %v1103 = vadd.f32 %v809, %v1102
  %1104 = vmatmul.f32.gmra.mxu0 %v297
  %v1105 = vpop.f32.mrf.mxu0
  %v1106 = vadd.f32 %v809, %v1105
  %1107 = vmatmul.f32.gmra.mxu0 %v307
  %v1108 = vpop.f32.mrf.mxu0
  %v1109 = vadd.f32 %v809, %v1108
  %1110 = vmatmul.f32.gmra.mxu0 %v317
  %v1111 = vpop.f32.mrf.mxu0
  %v1112 = vadd.f32 %v809, %v1111
  %1113 = vmatmul.f32.gmra.mxu0 %v327
  %v1114 = vpop.f32.mrf.mxu0
  %v1115 = vadd.f32 %v809, %v1114
  %1116 = vmatmul.f32.gmra.mxu0 %v337
  %v1117 = vpop.f32.mrf.mxu0
  %v1118 = vadd.f32 %v809, %v1117
  %1119 = vmatmul.f32.gmra.mxu0 %v347
  %v1120 = vpop.f32.mrf.mxu0
  %v1121 = vadd.f32 %v809, %v1120
  %1122 = vmatmul.f32.gmra.mxu0 %v357
  %v1123 = vpop.f32.mrf.mxu0
  %v1124 = vadd.f32 %v809, %v1123
  %1125 = vmatmul.f32.gmra.mxu0 %v367
  %v1126 = vpop.f32.mrf.mxu0
  %v1127 = vadd.f32 %v809, %v1126
  %1128 = vmatmul.f32.gmra.mxu0 %v377
  %v1129 = vpop.f32.mrf.mxu0
  %v1130 = vadd.f32 %v809, %v1129
  %1131 = vmatmul.f32.gmra.mxu0 %v387
  %v1132 = vpop.f32.mrf.mxu0
  %v1133 = vadd.f32 %v809, %v1132
  %1134 = vmatmul.f32.gmra.mxu0 %v397
  %v1135 = vpop.f32.mrf.mxu0
  %v1136 = vadd.f32 %v809, %v1135
  %1137 = vmatmul.f32.gmra.mxu0 %v407
  %v1138 = vpop.f32.mrf.mxu0
  %v1139 = vadd.f32 %v809, %v1138
  %1140 = vmatmul.f32.gmra.mxu0 %v417
  %v1141 = vpop.f32.mrf.mxu0
  %v1142 = vadd.f32 %v809, %v1141
  %1143 = vmatmul.f32.gmra.mxu0 %v427
  %v1144 = vpop.f32.mrf.mxu0
  %v1145 = vadd.f32 %v809, %v1144
  %1146 = vmatmul.f32.gmra.mxu0 %v437
  %v1147 = vpop.f32.mrf.mxu0
  %v1148 = vadd.f32 %v809, %v1147
  %1149 = vmatmul.f32.gmra.mxu0 %v447
  %v1150 = vpop.f32.mrf.mxu0
  %v1151 = vadd.f32 %v809, %v1150
  %1152 = vmatmul.f32.gmra.mxu0 %v457
  %v1153 = vpop.f32.mrf.mxu0
  %v1154 = vadd.f32 %v809, %v1153
  %1155 = vmatmul.f32.gmra.mxu0 %v467
  %v1156 = vpop.f32.mrf.mxu0
  %v1157 = vadd.f32 %v809, %v1156
  %1158 = vmatmul.f32.gmra.mxu0 %v477
  %v1159 = vpop.f32.mrf.mxu0
  %v1160 = vadd.f32 %v809, %v1159
  %1161 = vmatmul.f32.gmra.mxu0 %v487
  %v1162 = vpop.f32.mrf.mxu0
  %v1163 = vadd.f32 %v809, %v1162
  %1164 = vmatmul.f32.gmra.mxu0 %v497
  %v1165 = vpop.f32.mrf.mxu0
  %v1166 = vadd.f32 %v809, %v1165
  %1167 = vmatmul.f32.gmra.mxu0 %v507
  %v1168 = vpop.f32.mrf.mxu0
  %v1169 = vadd.f32 %v809, %v1168
  %1170 = vmatmul.f32.gmra.mxu0 %v517
  %v1171 = vpop.f32.mrf.mxu0
  %v1172 = vadd.f32 %v809, %v1171
  %1173 = vmatmul.f32.gmra.mxu0 %v527
  %v1174 = vpop.f32.mrf.mxu0
  %v1175 = vadd.f32 %v809, %v1174
  %1176 = vmatmul.f32.gmra.mxu0 %v537
  %v1177 = vpop.f32.mrf.mxu0
  %v1178 = vadd.f32 %v809, %v1177
  %1179 = vmatmul.f32.gmra.mxu0 %v547
  %v1180 = vpop.f32.mrf.mxu0
  %v1181 = vadd.f32 %v809, %v1180
  %1182 = vmatmul.f32.gmra.mxu0 %v557
  %v1183 = vpop.f32.mrf.mxu0
  %v1184 = vadd.f32 %v809, %v1183
  %1185 = vmatmul.f32.gmra.mxu0 %v567
  %v1186 = vpop.f32.mrf.mxu0
  %v1187 = vadd.f32 %v809, %v1186
  %1188 = vmatmul.f32.gmra.mxu0 %v577
  %v1189 = vpop.f32.mrf.mxu0
  %v1190 = vadd.f32 %v809, %v1189
  %1191 = vmatmul.f32.gmra.mxu0 %v587
  %v1192 = vpop.f32.mrf.mxu0
  %v1193 = vadd.f32 %v809, %v1192
  %1194 = vmatmul.f32.gmra.mxu0 %v597
  %v1195 = vpop.f32.mrf.mxu0
  %v1196 = vadd.f32 %v809, %v1195
  %1197 = vmatmul.f32.gmra.mxu0 %v607
  %v1198 = vpop.f32.mrf.mxu0
  %v1199 = vadd.f32 %v809, %v1198
  %1200 = vmatmul.f32.gmra.mxu0 %v617
  %v1201 = vpop.f32.mrf.mxu0
  %v1202 = vadd.f32 %v809, %v1201
  %1203 = vmatmul.f32.gmra.mxu0 %v627
  %v1204 = vpop.f32.mrf.mxu0
  %v1205 = vadd.f32 %v809, %v1204
  %1206 = vmatmul.f32.gmra.mxu0 %v637
  %v1207 = vpop.f32.mrf.mxu0
  %v1208 = vadd.f32 %v809, %v1207
  %1209 = vmatmul.f32.gmra.mxu0 %v647
  %v1210 = vpop.f32.mrf.mxu0
  %v1211 = vadd.f32 %v809, %v1210
  %1212 = vdwg.mxu0
  %1213 = vmatpush.msra.mxu0 %v688
  %1214 = vmatpush.msra.mxu0 %v687
  %1215 = vmatpush.msra.mxu0 %v686
  %1216 = vmatpush.msra.mxu0 %v685
  %1217 = vmatpush.msra.mxu0 %v684
  %1218 = vmatpush.msra.mxu0 %v683
  %1219 = vmatpush.msra.mxu0 %v682
  %1220 = vmatpush.msra.mxu0 %v681
  %1221 = vmatpush.msra.mxu0 %v680
  %1222 = vmatpush.msra.mxu0 %v679
  %1223 = vmatpush.msra.mxu0 %v678
  %1224 = vmatpush.msra.mxu0 %v677
  %1225 = vmatpush.msra.mxu0 %v676
  %1226 = vmatpush.msra.mxu0 %v675
  %1227 = vmatpush.msra.mxu0 %v674
  %1228 = vmatpush.msra.mxu0 %v673
  %1229 = vmatmul.f32.gmra.mxu0 %v18
  %v1230 = vpop.f32.mrf.mxu0
  %v1231 = vadd.f32 %v1022, %v1230
  %1232 = vmatmul.f32.gmra.mxu0 %v28
  %v1233 = vpop.f32.mrf.mxu0
  %v1234 = vadd.f32 %v1025, %v1233
  %1235 = vmatmul.f32.gmra.mxu0 %v38
  %v1236 = vpop.f32.mrf.mxu0
  %v1237 = vadd.f32 %v1028, %v1236
  %1238 = vmatmul.f32.gmra.mxu0 %v48
  %v1239 = vpop.f32.mrf.mxu0
  %v1240 = vadd.f32 %v1031, %v1239
  %1241 = vmatmul.f32.gmra.mxu0 %v58
  %v1242 = vpop.f32.mrf.mxu0
  %v1243 = vadd.f32 %v1034, %v1242
  %1244 = vmatmul.f32.gmra.mxu0 %v68
  %v1245 = vpop.f32.mrf.mxu0
  %v1246 = vadd.f32 %v1037, %v1245
  %1247 = vmatmul.f32.gmra.mxu0 %v78
  %v1248 = vpop.f32.mrf.mxu0
  %v1249 = vadd.f32 %v1040, %v1248
  %1250 = vmatmul.f32.gmra.mxu0 %v88
  %v1251 = vpop.f32.mrf.mxu0
  %v1252 = vadd.f32 %v1043, %v1251
  %1253 = vmatmul.f32.gmra.mxu0 %v98
  %v1254 = vpop.f32.mrf.mxu0
  %v1255 = vadd.f32 %v1046, %v1254
  %1256 = vmatmul.f32.gmra.mxu0 %v108
  %v1257 = vpop.f32.mrf.mxu0
  %v1258 = vadd.f32 %v1049, %v1257
  %1259 = vmatmul.f32.gmra.mxu0 %v118
  %v1260 = vpop.f32.mrf.mxu0
  %v1261 = vadd.f32 %v1052, %v1260
  %1262 = vmatmul.f32.gmra.mxu0 %v128
  %v1263 = vpop.f32.mrf.mxu0
  %v1264 = vadd.f32 %v1055, %v1263
  %1265 = vmatmul.f32.gmra.mxu0 %v138
  %v1266 = vpop.f32.mrf.mxu0
  %v1267 = vadd.f32 %v1058, %v1266
  %1268 = vmatmul.f32.gmra.mxu0 %v148
  %v1269 = vpop.f32.mrf.mxu0
  %v1270 = vadd.f32 %v1061, %v1269
  %1271 = vmatmul.f32.gmra.mxu0 %v158
  %v1272 = vpop.f32.mrf.mxu0
  %v1273 = vadd.f32 %v1064, %v1272
  %1274 = vmatmul.f32.gmra.mxu0 %v168
  %v1275 = vpop.f32.mrf.mxu0
  %v1276 = vadd.f32 %v1067, %v1275
  %1277 = vmatmul.f32.gmra.mxu0 %v178
  %v1278 = vpop.f32.mrf.mxu0
  %v1279 = vadd.f32 %v1070, %v1278
  %1280 = vmatmul.f32.gmra.mxu0 %v188
  %v1281 = vpop.f32.mrf.mxu0
  %v1282 = vadd.f32 %v1073, %v1281
  %1283 = vmatmul.f32.gmra.mxu0 %v198
  %v1284 = vpop.f32.mrf.mxu0
  %v1285 = vadd.f32 %v1076, %v1284
  %1286 = vmatmul.f32.gmra.mxu0 %v208
  %v1287 = vpop.f32.mrf.mxu0
  %v1288 = vadd.f32 %v1079, %v1287
  %1289 = vmatmul.f32.gmra.mxu0 %v218
  %v1290 = vpop.f32.mrf.mxu0
  %v1291 = vadd.f32 %v1082, %v1290
  %1292 = vmatmul.f32.gmra.mxu0 %v228
  %v1293 = vpop.f32.mrf.mxu0
  %v1294 = vadd.f32 %v1085, %v1293
  %1295 = vmatmul.f32.gmra.mxu0 %v238
  %v1296 = vpop.f32.mrf.mxu0
  %v1297 = vadd.f32 %v1088, %v1296
  %1298 = vmatmul.f32.gmra.mxu0 %v248
  %v1299 = vpop.f32.mrf.mxu0
  %v1300 = vadd.f32 %v1091, %v1299
  %1301 = vmatmul.f32.gmra.mxu0 %v258
  %v1302 = vpop.f32.mrf.mxu0
  %v1303 = vadd.f32 %v1094, %v1302
  %1304 = vmatmul.f32.gmra.mxu0 %v268
  %v1305 = vpop.f32.mrf.mxu0
  %v1306 = vadd.f32 %v1097, %v1305
  %1307 = vmatmul.f32.gmra.mxu0 %v278
  %v1308 = vpop.f32.mrf.mxu0
  %v1309 = vadd.f32 %v1100, %v1308
  %1310 = vmatmul.f32.gmra.mxu0 %v288
  %v1311 = vpop.f32.mrf.mxu0
  %v1312 = vadd.f32 %v1103, %v1311
  %1313 = vmatmul.f32.gmra.mxu0 %v298
  %v1314 = vpop.f32.mrf.mxu0
  %v1315 = vadd.f32 %v1106, %v1314
  %1316 = vmatmul.f32.gmra.mxu0 %v308
  %v1317 = vpop.f32.mrf.mxu0
  %v1318 = vadd.f32 %v1109, %v1317
  %1319 = vmatmul.f32.gmra.mxu0 %v318
  %v1320 = vpop.f32.mrf.mxu0
  %v1321 = vadd.f32 %v1112, %v1320
  %1322 = vmatmul.f32.gmra.mxu0 %v328
  %v1323 = vpop.f32.mrf.mxu0
  %v1324 = vadd.f32 %v1115, %v1323
  %1325 = vmatmul.f32.gmra.mxu0 %v338
  %v1326 = vpop.f32.mrf.mxu0
  %v1327 = vadd.f32 %v1118, %v1326
  %1328 = vmatmul.f32.gmra.mxu0 %v348
  %v1329 = vpop.f32.mrf.mxu0
  %v1330 = vadd.f32 %v1121, %v1329
  %1331 = vmatmul.f32.gmra.mxu0 %v358
  %v1332 = vpop.f32.mrf.mxu0
  %v1333 = vadd.f32 %v1124, %v1332
  %1334 = vmatmul.f32.gmra.mxu0 %v368
  %v1335 = vpop.f32.mrf.mxu0
  %v1336 = vadd.f32 %v1127, %v1335
  %1337 = vmatmul.f32.gmra.mxu0 %v378
  %v1338 = vpop.f32.mrf.mxu0
  %v1339 = vadd.f32 %v1130, %v1338
  %1340 = vmatmul.f32.gmra.mxu0 %v388
  %v1341 = vpop.f32.mrf.mxu0
  %v1342 = vadd.f32 %v1133, %v1341
  %1343 = vmatmul.f32.gmra.mxu0 %v398
  %v1344 = vpop.f32.mrf.mxu0
  %v1345 = vadd.f32 %v1136, %v1344
  %1346 = vmatmul.f32.gmra.mxu0 %v408
  %v1347 = vpop.f32.mrf.mxu0
  %v1348 = vadd.f32 %v1139, %v1347
  %1349 = vmatmul.f32.gmra.mxu0 %v418
  %v1350 = vpop.f32.mrf.mxu0
  %v1351 = vadd.f32 %v1142, %v1350
  %1352 = vmatmul.f32.gmra.mxu0 %v428
  %v1353 = vpop.f32.mrf.mxu0
  %v1354 = vadd.f32 %v1145, %v1353
  %1355 = vmatmul.f32.gmra.mxu0 %v438
  %v1356 = vpop.f32.mrf.mxu0
  %v1357 = vadd.f32 %v1148, %v1356
  %1358 = vmatmul.f32.gmra.mxu0 %v448
  %v1359 = vpop.f32.mrf.mxu0
  %v1360 = vadd.f32 %v1151, %v1359
  %1361 = vmatmul.f32.gmra.mxu0 %v458
  %v1362 = vpop.f32.mrf.mxu0
  %v1363 = vadd.f32 %v1154, %v1362
  %1364 = vmatmul.f32.gmra.mxu0 %v468
  %v1365 = vpop.f32.mrf.mxu0
  %v1366 = vadd.f32 %v1157, %v1365
  %1367 = vmatmul.f32.gmra.mxu0 %v478
  %v1368 = vpop.f32.mrf.mxu0
  %v1369 = vadd.f32 %v1160, %v1368
  %1370 = vmatmul.f32.gmra.mxu0 %v488
  %v1371 = vpop.f32.mrf.mxu0
  %v1372 = vadd.f32 %v1163, %v1371
  %1373 = vmatmul.f32.gmra.mxu0 %v498
  %v1374 = vpop.f32.mrf.mxu0
  %v1375 = vadd.f32 %v1166, %v1374
  %1376 = vmatmul.f32.gmra.mxu0 %v508
  %v1377 = vpop.f32.mrf.mxu0
  %v1378 = vadd.f32 %v1169, %v1377
  %1379 = vmatmul.f32.gmra.mxu0 %v518
  %v1380 = vpop.f32.mrf.mxu0
  %v1381 = vadd.f32 %v1172, %v1380
  %1382 = vmatmul.f32.gmra.mxu0 %v528
  %v1383 = vpop.f32.mrf.mxu0
  %v1384 = vadd.f32 %v1175, %v1383
  %1385 = vmatmul.f32.gmra.mxu0 %v538
  %v1386 = vpop.f32.mrf.mxu0
  %v1387 = vadd.f32 %v1178, %v1386
  %1388 = vmatmul.f32.gmra.mxu0 %v548
  %v1389 = vpop.f32.mrf.mxu0
  %v1390 = vadd.f32 %v1181, %v1389
  %1391 = vmatmul.f32.gmra.mxu0 %v558
  %v1392 = vpop.f32.mrf.mxu0
  %v1393 = vadd.f32 %v1184, %v1392
  %1394 = vmatmul.f32.gmra.mxu0 %v568
  %v1395 = vpop.f32.mrf.mxu0
  %v1396 = vadd.f32 %v1187, %v1395
  %1397 = vmatmul.f32.gmra.mxu0 %v578
  %v1398 = vpop.f32.mrf.mxu0
  %v1399 = vadd.f32 %v1190, %v1398
  %1400 = vmatmul.f32.gmra.mxu0 %v588
  %v1401 = vpop.f32.mrf.mxu0
  %v1402 = vadd.f32 %v1193, %v1401
  %1403 = vmatmul.f32.gmra.mxu0 %v598
  %v1404 = vpop.f32.mrf.mxu0
  %v1405 = vadd.f32 %v1196, %v1404
  %1406 = vmatmul.f32.gmra.mxu0 %v608
  %v1407 = vpop.f32.mrf.mxu0
  %v1408 = vadd.f32 %v1199, %v1407
  %1409 = vmatmul.f32.gmra.mxu0 %v618
  %v1410 = vpop.f32.mrf.mxu0
  %v1411 = vadd.f32 %v1202, %v1410
  %1412 = vmatmul.f32.gmra.mxu0 %v628
  %v1413 = vpop.f32.mrf.mxu0
  %v1414 = vadd.f32 %v1205, %v1413
  %1415 = vmatmul.f32.gmra.mxu0 %v638
  %v1416 = vpop.f32.mrf.mxu0
  %v1417 = vadd.f32 %v1208, %v1416
  %1418 = vmatmul.f32.gmra.mxu0 %v648
  %v1419 = vpop.f32.mrf.mxu0
  %v1420 = vadd.f32 %v1211, %v1419
  %1421 = vdwg.mxu0
  %1422 = vmatpush.msra.mxu0 %v704
  %1423 = vmatpush.msra.mxu0 %v703
  %1424 = vmatpush.msra.mxu0 %v702
  %1425 = vmatpush.msra.mxu0 %v701
  %1426 = vmatpush.msra.mxu0 %v700
  %1427 = vmatpush.msra.mxu0 %v699
  %1428 = vmatpush.msra.mxu0 %v698
  %1429 = vmatpush.msra.mxu0 %v697
  %1430 = vmatpush.msra.mxu0 %v696
  %1431 = vmatpush.msra.mxu0 %v695
  %1432 = vmatpush.msra.mxu0 %v694
  %1433 = vmatpush.msra.mxu0 %v693
  %1434 = vmatpush.msra.mxu0 %v692
  %1435 = vmatpush.msra.mxu0 %v691
  %1436 = vmatpush.msra.mxu0 %v690
  %1437 = vmatpush.msra.mxu0 %v689
  %1438 = vmatmul.f32.gmra.mxu0 %v19
  %v1439 = vpop.f32.mrf.mxu0
  %v1440 = vadd.f32 %v1231, %v1439
  %1441 = vmatmul.f32.gmra.mxu0 %v29
  %v1442 = vpop.f32.mrf.mxu0
  %v1443 = vadd.f32 %v1234, %v1442
  %1444 = vmatmul.f32.gmra.mxu0 %v39
  %v1445 = vpop.f32.mrf.mxu0
  %v1446 = vadd.f32 %v1237, %v1445
  %1447 = vmatmul.f32.gmra.mxu0 %v49
  %v1448 = vpop.f32.mrf.mxu0
  %v1449 = vadd.f32 %v1240, %v1448
  %1450 = vmatmul.f32.gmra.mxu0 %v59
  %v1451 = vpop.f32.mrf.mxu0
  %v1452 = vadd.f32 %v1243, %v1451
  %1453 = vmatmul.f32.gmra.mxu0 %v69
  %v1454 = vpop.f32.mrf.mxu0
  %v1455 = vadd.f32 %v1246, %v1454
  %1456 = vmatmul.f32.gmra.mxu0 %v79
  %v1457 = vpop.f32.mrf.mxu0
  %v1458 = vadd.f32 %v1249, %v1457
  %1459 = vmatmul.f32.gmra.mxu0 %v89
  %v1460 = vpop.f32.mrf.mxu0
  %v1461 = vadd.f32 %v1252, %v1460
  %1462 = vmatmul.f32.gmra.mxu0 %v99
  %v1463 = vpop.f32.mrf.mxu0
  %v1464 = vadd.f32 %v1255, %v1463
  %1465 = vmatmul.f32.gmra.mxu0 %v109
  %v1466 = vpop.f32.mrf.mxu0
  %v1467 = vadd.f32 %v1258, %v1466
  %1468 = vmatmul.f32.gmra.mxu0 %v119
  %v1469 = vpop.f32.mrf.mxu0
  %v1470 = vadd.f32 %v1261, %v1469
  %1471 = vmatmul.f32.gmra.mxu0 %v129
  %v1472 = vpop.f32.mrf.mxu0
  %v1473 = vadd.f32 %v1264, %v1472
  %1474 = vmatmul.f32.gmra.mxu0 %v139
  %v1475 = vpop.f32.mrf.mxu0
  %v1476 = vadd.f32 %v1267, %v1475
  %1477 = vmatmul.f32.gmra.mxu0 %v149
  %v1478 = vpop.f32.mrf.mxu0
  %v1479 = vadd.f32 %v1270, %v1478
  %1480 = vmatmul.f32.gmra.mxu0 %v159
  %v1481 = vpop.f32.mrf.mxu0
  %v1482 = vadd.f32 %v1273, %v1481
  %1483 = vmatmul.f32.gmra.mxu0 %v169
  %v1484 = vpop.f32.mrf.mxu0
  %v1485 = vadd.f32 %v1276, %v1484
  %1486 = vmatmul.f32.gmra.mxu0 %v179
  %v1487 = vpop.f32.mrf.mxu0
  %v1488 = vadd.f32 %v1279, %v1487
  %1489 = vmatmul.f32.gmra.mxu0 %v189
  %v1490 = vpop.f32.mrf.mxu0
  %v1491 = vadd.f32 %v1282, %v1490
  %1492 = vmatmul.f32.gmra.mxu0 %v199
  %v1493 = vpop.f32.mrf.mxu0
  %v1494 = vadd.f32 %v1285, %v1493
  %1495 = vmatmul.f32.gmra.mxu0 %v209
  %v1496 = vpop.f32.mrf.mxu0
  %v1497 = vadd.f32 %v1288, %v1496
  %1498 = vmatmul.f32.gmra.mxu0 %v219
  %v1499 = vpop.f32.mrf.mxu0
  %v1500 = vadd.f32 %v1291, %v1499
  %1501 = vmatmul.f32.gmra.mxu0 %v229
  %v1502 = vpop.f32.mrf.mxu0
  %v1503 = vadd.f32 %v1294, %v1502
  %1504 = vmatmul.f32.gmra.mxu0 %v239
  %v1505 = vpop.f32.mrf.mxu0
  %v1506 = vadd.f32 %v1297, %v1505
  %1507 = vmatmul.f32.gmra.mxu0 %v249
  %v1508 = vpop.f32.mrf.mxu0
  %v1509 = vadd.f32 %v1300, %v1508
  %1510 = vmatmul.f32.gmra.mxu0 %v259
  %v1511 = vpop.f32.mrf.mxu0
  %v1512 = vadd.f32 %v1303, %v1511
  %1513 = vmatmul.f32.gmra.mxu0 %v269
  %v1514 = vpop.f32.mrf.mxu0
  %v1515 = vadd.f32 %v1306, %v1514
  %1516 = vmatmul.f32.gmra.mxu0 %v279
  %v1517 = vpop.f32.mrf.mxu0
  %v1518 = vadd.f32 %v1309, %v1517
  %1519 = vmatmul.f32.gmra.mxu0 %v289
  %v1520 = vpop.f32.mrf.mxu0
  %v1521 = vadd.f32 %v1312, %v1520
  %1522 = vmatmul.f32.gmra.mxu0 %v299
  %v1523 = vpop.f32.mrf.mxu0
  %v1524 = vadd.f32 %v1315, %v1523
  %1525 = vmatmul.f32.gmra.mxu0 %v309
  %v1526 = vpop.f32.mrf.mxu0
  %v1527 = vadd.f32 %v1318, %v1526
  %1528 = vmatmul.f32.gmra.mxu0 %v319
  %v1529 = vpop.f32.mrf.mxu0
  %v1530 = vadd.f32 %v1321, %v1529
  %1531 = vmatmul.f32.gmra.mxu0 %v329
  %v1532 = vpop.f32.mrf.mxu0
  %v1533 = vadd.f32 %v1324, %v1532
  %1534 = vmatmul.f32.gmra.mxu0 %v339
  %v1535 = vpop.f32.mrf.mxu0
  %v1536 = vadd.f32 %v1327, %v1535
  %1537 = vmatmul.f32.gmra.mxu0 %v349
  %v1538 = vpop.f32.mrf.mxu0
  %v1539 = vadd.f32 %v1330, %v1538
  %1540 = vmatmul.f32.gmra.mxu0 %v359
  %v1541 = vpop.f32.mrf.mxu0
  %v1542 = vadd.f32 %v1333, %v1541
  %1543 = vmatmul.f32.gmra.mxu0 %v369
  %v1544 = vpop.f32.mrf.mxu0
  %v1545 = vadd.f32 %v1336, %v1544
  %1546 = vmatmul.f32.gmra.mxu0 %v379
  %v1547 = vpop.f32.mrf.mxu0
  %v1548 = vadd.f32 %v1339, %v1547
  %1549 = vmatmul.f32.gmra.mxu0 %v389
  %v1550 = vpop.f32.mrf.mxu0
  %v1551 = vadd.f32 %v1342, %v1550
  %1552 = vmatmul.f32.gmra.mxu0 %v399
  %v1553 = vpop.f32.mrf.mxu0
  %v1554 = vadd.f32 %v1345, %v1553
  %1555 = vmatmul.f32.gmra.mxu0 %v409
  %v1556 = vpop.f32.mrf.mxu0
  %v1557 = vadd.f32 %v1348, %v1556
  %1558 = vmatmul.f32.gmra.mxu0 %v419
  %v1559 = vpop.f32.mrf.mxu0
  %v1560 = vadd.f32 %v1351, %v1559
  %1561 = vmatmul.f32.gmra.mxu0 %v429
  %v1562 = vpop.f32.mrf.mxu0
  %v1563 = vadd.f32 %v1354, %v1562
  %1564 = vmatmul.f32.gmra.mxu0 %v439
  %v1565 = vpop.f32.mrf.mxu0
  %v1566 = vadd.f32 %v1357, %v1565
  %1567 = vmatmul.f32.gmra.mxu0 %v449
  %v1568 = vpop.f32.mrf.mxu0
  %v1569 = vadd.f32 %v1360, %v1568
  %1570 = vmatmul.f32.gmra.mxu0 %v459
  %v1571 = vpop.f32.mrf.mxu0
  %v1572 = vadd.f32 %v1363, %v1571
  %1573 = vmatmul.f32.gmra.mxu0 %v469
  %v1574 = vpop.f32.mrf.mxu0
  %v1575 = vadd.f32 %v1366, %v1574
  %1576 = vmatmul.f32.gmra.mxu0 %v479
  %v1577 = vpop.f32.mrf.mxu0
  %v1578 = vadd.f32 %v1369, %v1577
  %1579 = vmatmul.f32.gmra.mxu0 %v489
  %v1580 = vpop.f32.mrf.mxu0
  %v1581 = vadd.f32 %v1372, %v1580
  %1582 = vmatmul.f32.gmra.mxu0 %v499
  %v1583 = vpop.f32.mrf.mxu0
  %v1584 = vadd.f32 %v1375, %v1583
  %1585 = vmatmul.f32.gmra.mxu0 %v509
  %v1586 = vpop.f32.mrf.mxu0
  %v1587 = vadd.f32 %v1378, %v1586
  %1588 = vmatmul.f32.gmra.mxu0 %v519
  %v1589 = vpop.f32.mrf.mxu0
  %v1590 = vadd.f32 %v1381, %v1589
  %1591 = vmatmul.f32.gmra.mxu0 %v529
  %v1592 = vpop.f32.mrf.mxu0
  %v1593 = vadd.f32 %v1384, %v1592
  %1594 = vmatmul.f32.gmra.mxu0 %v539
  %v1595 = vpop.f32.mrf.mxu0
  %v1596 = vadd.f32 %v1387, %v1595
  %1597 = vmatmul.f32.gmra.mxu0 %v549
  %v1598 = vpop.f32.mrf.mxu0
  %v1599 = vadd.f32 %v1390, %v1598
  %1600 = vmatmul.f32.gmra.mxu0 %v559
  %v1601 = vpop.f32.mrf.mxu0
  %v1602 = vadd.f32 %v1393, %v1601
  %1603 = vmatmul.f32.gmra.mxu0 %v569
  %v1604 = vpop.f32.mrf.mxu0
  %v1605 = vadd.f32 %v1396, %v1604
  %1606 = vmatmul.f32.gmra.mxu0 %v579
  %v1607 = vpop.f32.mrf.mxu0
  %v1608 = vadd.f32 %v1399, %v1607
  %1609 = vmatmul.f32.gmra.mxu0 %v589
  %v1610 = vpop.f32.mrf.mxu0
  %v1611 = vadd.f32 %v1402, %v1610
  %1612 = vmatmul.f32.gmra.mxu0 %v599
  %v1613 = vpop.f32.mrf.mxu0
  %v1614 = vadd.f32 %v1405, %v1613
  %1615 = vmatmul.f32.gmra.mxu0 %v609
  %v1616 = vpop.f32.mrf.mxu0
  %v1617 = vadd.f32 %v1408, %v1616
  %1618 = vmatmul.f32.gmra.mxu0 %v619
  %v1619 = vpop.f32.mrf.mxu0
  %v1620 = vadd.f32 %v1411, %v1619
  %1621 = vmatmul.f32.gmra.mxu0 %v629
  %v1622 = vpop.f32.mrf.mxu0
  %v1623 = vadd.f32 %v1414, %v1622
  %1624 = vmatmul.f32.gmra.mxu0 %v639
  %v1625 = vpop.f32.mrf.mxu0
  %v1626 = vadd.f32 %v1417, %v1625
  %1627 = vmatmul.f32.gmra.mxu0 %v649
  %v1628 = vpop.f32.mrf.mxu0
  %v1629 = vadd.f32 %v1420, %v1628
  %1630 = vdwg.mxu0
  %1631 = vmatpush.msra.mxu0 %v720
  %1632 = vmatpush.msra.mxu0 %v719
  %1633 = vmatpush.msra.mxu0 %v718
  %1634 = vmatpush.msra.mxu0 %v717
  %1635 = vmatpush.msra.mxu0 %v716
  %1636 = vmatpush.msra.mxu0 %v715
  %1637 = vmatpush.msra.mxu0 %v714
  %1638 = vmatpush.msra.mxu0 %v713
  %1639 = vmatpush.msra.mxu0 %v712
  %1640 = vmatpush.msra.mxu0 %v711
  %1641 = vmatpush.msra.mxu0 %v710
  %1642 = vmatpush.msra.mxu0 %v709
  %1643 = vmatpush.msra.mxu0 %v708
  %1644 = vmatpush.msra.mxu0 %v707
  %1645 = vmatpush.msra.mxu0 %v706
  %1646 = vmatpush.msra.mxu0 %v705
  %1647 = vmatmul.f32.gmra.mxu0 %v20
  %v1648 = vpop.f32.mrf.mxu0
  %v1649 = vadd.f32 %v1440, %v1648
  %1650 = vmatmul.f32.gmra.mxu0 %v30
  %v1651 = vpop.f32.mrf.mxu0
  %v1652 = vadd.f32 %v1443, %v1651
  %1653 = vmatmul.f32.gmra.mxu0 %v40
  %v1654 = vpop.f32.mrf.mxu0
  %v1655 = vadd.f32 %v1446, %v1654
  %1656 = vmatmul.f32.gmra.mxu0 %v50
  %v1657 = vpop.f32.mrf.mxu0
  %v1658 = vadd.f32 %v1449, %v1657
  %1659 = vmatmul.f32.gmra.mxu0 %v60
  %v1660 = vpop.f32.mrf.mxu0
  %v1661 = vadd.f32 %v1452, %v1660
  %1662 = vmatmul.f32.gmra.mxu0 %v70
  %v1663 = vpop.f32.mrf.mxu0
  %v1664 = vadd.f32 %v1455, %v1663
  %1665 = vmatmul.f32.gmra.mxu0 %v80
  %v1666 = vpop.f32.mrf.mxu0
  %v1667 = vadd.f32 %v1458, %v1666
  %1668 = vmatmul.f32.gmra.mxu0 %v90
  %v1669 = vpop.f32.mrf.mxu0
  %v1670 = vadd.f32 %v1461, %v1669
  %1671 = vmatmul.f32.gmra.mxu0 %v100
  %v1672 = vpop.f32.mrf.mxu0
  %v1673 = vadd.f32 %v1464, %v1672
  %1674 = vmatmul.f32.gmra.mxu0 %v110
  %v1675 = vpop.f32.mrf.mxu0
  %v1676 = vadd.f32 %v1467, %v1675
  %1677 = vmatmul.f32.gmra.mxu0 %v120
  %v1678 = vpop.f32.mrf.mxu0
  %v1679 = vadd.f32 %v1470, %v1678
  %1680 = vmatmul.f32.gmra.mxu0 %v130
  %v1681 = vpop.f32.mrf.mxu0
  %v1682 = vadd.f32 %v1473, %v1681
  %1683 = vmatmul.f32.gmra.mxu0 %v140
  %v1684 = vpop.f32.mrf.mxu0
  %v1685 = vadd.f32 %v1476, %v1684
  %1686 = vmatmul.f32.gmra.mxu0 %v150
  %v1687 = vpop.f32.mrf.mxu0
  %v1688 = vadd.f32 %v1479, %v1687
  %1689 = vmatmul.f32.gmra.mxu0 %v160
  %v1690 = vpop.f32.mrf.mxu0
  %v1691 = vadd.f32 %v1482, %v1690
  %1692 = vmatmul.f32.gmra.mxu0 %v170
  %v1693 = vpop.f32.mrf.mxu0
  %v1694 = vadd.f32 %v1485, %v1693
  %1695 = vmatmul.f32.gmra.mxu0 %v180
  %v1696 = vpop.f32.mrf.mxu0
  %v1697 = vadd.f32 %v1488, %v1696
  %1698 = vmatmul.f32.gmra.mxu0 %v190
  %v1699 = vpop.f32.mrf.mxu0
  %v1700 = vadd.f32 %v1491, %v1699
  %1701 = vmatmul.f32.gmra.mxu0 %v200
  %v1702 = vpop.f32.mrf.mxu0
  %v1703 = vadd.f32 %v1494, %v1702
  %1704 = vmatmul.f32.gmra.mxu0 %v210
  %v1705 = vpop.f32.mrf.mxu0
  %v1706 = vadd.f32 %v1497, %v1705
  %1707 = vmatmul.f32.gmra.mxu0 %v220
  %v1708 = vpop.f32.mrf.mxu0
  %v1709 = vadd.f32 %v1500, %v1708
  %1710 = vmatmul.f32.gmra.mxu0 %v230
  %v1711 = vpop.f32.mrf.mxu0
  %v1712 = vadd.f32 %v1503, %v1711
  %1713 = vmatmul.f32.gmra.mxu0 %v240
  %v1714 = vpop.f32.mrf.mxu0
  %v1715 = vadd.f32 %v1506, %v1714
  %1716 = vmatmul.f32.gmra.mxu0 %v250
  %v1717 = vpop.f32.mrf.mxu0
  %v1718 = vadd.f32 %v1509, %v1717
  %1719 = vmatmul.f32.gmra.mxu0 %v260
  %v1720 = vpop.f32.mrf.mxu0
  %v1721 = vadd.f32 %v1512, %v1720
  %1722 = vmatmul.f32.gmra.mxu0 %v270
  %v1723 = vpop.f32.mrf.mxu0
  %v1724 = vadd.f32 %v1515, %v1723
  %1725 = vmatmul.f32.gmra.mxu0 %v280
  %v1726 = vpop.f32.mrf.mxu0
  %v1727 = vadd.f32 %v1518, %v1726
  %1728 = vmatmul.f32.gmra.mxu0 %v290
  %v1729 = vpop.f32.mrf.mxu0
  %v1730 = vadd.f32 %v1521, %v1729
  %1731 = vmatmul.f32.gmra.mxu0 %v300
  %v1732 = vpop.f32.mrf.mxu0
  %v1733 = vadd.f32 %v1524, %v1732
  %1734 = vmatmul.f32.gmra.mxu0 %v310
  %v1735 = vpop.f32.mrf.mxu0
  %v1736 = vadd.f32 %v1527, %v1735
  %1737 = vmatmul.f32.gmra.mxu0 %v320
  %v1738 = vpop.f32.mrf.mxu0
  %v1739 = vadd.f32 %v1530, %v1738
  %1740 = vmatmul.f32.gmra.mxu0 %v330
  %v1741 = vpop.f32.mrf.mxu0
  %v1742 = vadd.f32 %v1533, %v1741
  %1743 = vmatmul.f32.gmra.mxu0 %v340
  %v1744 = vpop.f32.mrf.mxu0
  %v1745 = vadd.f32 %v1536, %v1744
  %1746 = vmatmul.f32.gmra.mxu0 %v350
  %v1747 = vpop.f32.mrf.mxu0
  %v1748 = vadd.f32 %v1539, %v1747
  %1749 = vmatmul.f32.gmra.mxu0 %v360
  %v1750 = vpop.f32.mrf.mxu0
  %v1751 = vadd.f32 %v1542, %v1750
  %1752 = vmatmul.f32.gmra.mxu0 %v370
  %v1753 = vpop.f32.mrf.mxu0
  %v1754 = vadd.f32 %v1545, %v1753
  %1755 = vmatmul.f32.gmra.mxu0 %v380
  %v1756 = vpop.f32.mrf.mxu0
  %v1757 = vadd.f32 %v1548, %v1756
  %1758 = vmatmul.f32.gmra.mxu0 %v390
  %v1759 = vpop.f32.mrf.mxu0
  %v1760 = vadd.f32 %v1551, %v1759
  %1761 = vmatmul.f32.gmra.mxu0 %v400
  %v1762 = vpop.f32.mrf.mxu0
  %v1763 = vadd.f32 %v1554, %v1762
  %1764 = vmatmul.f32.gmra.mxu0 %v410
  %v1765 = vpop.f32.mrf.mxu0
  %v1766 = vadd.f32 %v1557, %v1765
  %1767 = vmatmul.f32.gmra.mxu0 %v420
  %v1768 = vpop.f32.mrf.mxu0
  %v1769 = vadd.f32 %v1560, %v1768
  %1770 = vmatmul.f32.gmra.mxu0 %v430
  %v1771 = vpop.f32.mrf.mxu0
  %v1772 = vadd.f32 %v1563, %v1771
  %1773 = vmatmul.f32.gmra.mxu0 %v440
  %v1774 = vpop.f32.mrf.mxu0
  %v1775 = vadd.f32 %v1566, %v1774
  %1776 = vmatmul.f32.gmra.mxu0 %v450
  %v1777 = vpop.f32.mrf.mxu0
  %v1778 = vadd.f32 %v1569, %v1777
  %1779 = vmatmul.f32.gmra.mxu0 %v460
  %v1780 = vpop.f32.mrf.mxu0
  %v1781 = vadd.f32 %v1572, %v1780
  %1782 = vmatmul.f32.gmra.mxu0 %v470
  %v1783 = vpop.f32.mrf.mxu0
  %v1784 = vadd.f32 %v1575, %v1783
  %1785 = vmatmul.f32.gmra.mxu0 %v480
  %v1786 = vpop.f32.mrf.mxu0
  %v1787 = vadd.f32 %v1578, %v1786
  %1788 = vmatmul.f32.gmra.mxu0 %v490
  %v1789 = vpop.f32.mrf.mxu0
  %v1790 = vadd.f32 %v1581, %v1789
  %1791 = vmatmul.f32.gmra.mxu0 %v500
  %v1792 = vpop.f32.mrf.mxu0
  %v1793 = vadd.f32 %v1584, %v1792
  %1794 = vmatmul.f32.gmra.mxu0 %v510
  %v1795 = vpop.f32.mrf.mxu0
  %v1796 = vadd.f32 %v1587, %v1795
  %1797 = vmatmul.f32.gmra.mxu0 %v520
  %v1798 = vpop.f32.mrf.mxu0
  %v1799 = vadd.f32 %v1590, %v1798
  %1800 = vmatmul.f32.gmra.mxu0 %v530
  %v1801 = vpop.f32.mrf.mxu0
  %v1802 = vadd.f32 %v1593, %v1801
  %1803 = vmatmul.f32.gmra.mxu0 %v540
  %v1804 = vpop.f32.mrf.mxu0
  %v1805 = vadd.f32 %v1596, %v1804
  %1806 = vmatmul.f32.gmra.mxu0 %v550
  %v1807 = vpop.f32.mrf.mxu0
  %v1808 = vadd.f32 %v1599, %v1807
  %1809 = vmatmul.f32.gmra.mxu0 %v560
  %v1810 = vpop.f32.mrf.mxu0
  %v1811 = vadd.f32 %v1602, %v1810
  %1812 = vmatmul.f32.gmra.mxu0 %v570
  %v1813 = vpop.f32.mrf.mxu0
  %v1814 = vadd.f32 %v1605, %v1813
  %1815 = vmatmul.f32.gmra.mxu0 %v580
  %v1816 = vpop.f32.mrf.mxu0
  %v1817 = vadd.f32 %v1608, %v1816
  %1818 = vmatmul.f32.gmra.mxu0 %v590
  %v1819 = vpop.f32.mrf.mxu0
  %v1820 = vadd.f32 %v1611, %v1819
  %1821 = vmatmul.f32.gmra.mxu0 %v600
  %v1822 = vpop.f32.mrf.mxu0
  %v1823 = vadd.f32 %v1614, %v1822
  %1824 = vmatmul.f32.gmra.mxu0 %v610
  %v1825 = vpop.f32.mrf.mxu0
  %v1826 = vadd.f32 %v1617, %v1825
  %1827 = vmatmul.f32.gmra.mxu0 %v620
  %v1828 = vpop.f32.mrf.mxu0
  %v1829 = vadd.f32 %v1620, %v1828
  %1830 = vmatmul.f32.gmra.mxu0 %v630
  %v1831 = vpop.f32.mrf.mxu0
  %v1832 = vadd.f32 %v1623, %v1831
  %1833 = vmatmul.f32.gmra.mxu0 %v640
  %v1834 = vpop.f32.mrf.mxu0
  %v1835 = vadd.f32 %v1626, %v1834
  %1836 = vmatmul.f32.gmra.mxu0 %v650
  %v1837 = vpop.f32.mrf.mxu0
  %v1838 = vadd.f32 %v1629, %v1837
  %1839 = vdwg.mxu0
  %1840 = vmatpush.msra.mxu0 %v736
  %1841 = vmatpush.msra.mxu0 %v735
  %1842 = vmatpush.msra.mxu0 %v734
  %1843 = vmatpush.msra.mxu0 %v733
  %1844 = vmatpush.msra.mxu0 %v732
  %1845 = vmatpush.msra.mxu0 %v731
  %1846 = vmatpush.msra.mxu0 %v730
  %1847 = vmatpush.msra.mxu0 %v729
  %1848 = vmatpush.msra.mxu0 %v728
  %1849 = vmatpush.msra.mxu0 %v727
  %1850 = vmatpush.msra.mxu0 %v726
  %1851 = vmatpush.msra.mxu0 %v725
  %1852 = vmatpush.msra.mxu0 %v724
  %1853 = vmatpush.msra.mxu0 %v723
  %1854 = vmatpush.msra.mxu0 %v722
  %1855 = vmatpush.msra.mxu0 %v721
  %1856 = vmatmul.f32.gmra.mxu0 %v21
  %v1857 = vpop.f32.mrf.mxu0
  %v1858 = vadd.f32 %v1649, %v1857
  %1859 = vmatmul.f32.gmra.mxu0 %v31
  %v1860 = vpop.f32.mrf.mxu0
  %v1861 = vadd.f32 %v1652, %v1860
  %1862 = vmatmul.f32.gmra.mxu0 %v41
  %v1863 = vpop.f32.mrf.mxu0
  %v1864 = vadd.f32 %v1655, %v1863
  %1865 = vmatmul.f32.gmra.mxu0 %v51
  %v1866 = vpop.f32.mrf.mxu0
  %v1867 = vadd.f32 %v1658, %v1866
  %1868 = vmatmul.f32.gmra.mxu0 %v61
  %v1869 = vpop.f32.mrf.mxu0
  %v1870 = vadd.f32 %v1661, %v1869
  %1871 = vmatmul.f32.gmra.mxu0 %v71
  %v1872 = vpop.f32.mrf.mxu0
  %v1873 = vadd.f32 %v1664, %v1872
  %1874 = vmatmul.f32.gmra.mxu0 %v81
  %v1875 = vpop.f32.mrf.mxu0
  %v1876 = vadd.f32 %v1667, %v1875
  %1877 = vmatmul.f32.gmra.mxu0 %v91
  %v1878 = vpop.f32.mrf.mxu0
  %v1879 = vadd.f32 %v1670, %v1878
  %1880 = vmatmul.f32.gmra.mxu0 %v101
  %v1881 = vpop.f32.mrf.mxu0
  %v1882 = vadd.f32 %v1673, %v1881
  %1883 = vmatmul.f32.gmra.mxu0 %v111
  %v1884 = vpop.f32.mrf.mxu0
  %v1885 = vadd.f32 %v1676, %v1884
  %1886 = vmatmul.f32.gmra.mxu0 %v121
  %v1887 = vpop.f32.mrf.mxu0
  %v1888 = vadd.f32 %v1679, %v1887
  %1889 = vmatmul.f32.gmra.mxu0 %v131
  %v1890 = vpop.f32.mrf.mxu0
  %v1891 = vadd.f32 %v1682, %v1890
  %1892 = vmatmul.f32.gmra.mxu0 %v141
  %v1893 = vpop.f32.mrf.mxu0
  %v1894 = vadd.f32 %v1685, %v1893
  %1895 = vmatmul.f32.gmra.mxu0 %v151
  %v1896 = vpop.f32.mrf.mxu0
  %v1897 = vadd.f32 %v1688, %v1896
  %1898 = vmatmul.f32.gmra.mxu0 %v161
  %v1899 = vpop.f32.mrf.mxu0
  %v1900 = vadd.f32 %v1691, %v1899
  %1901 = vmatmul.f32.gmra.mxu0 %v171
  %v1902 = vpop.f32.mrf.mxu0
  %v1903 = vadd.f32 %v1694, %v1902
  %1904 = vmatmul.f32.gmra.mxu0 %v181
  %v1905 = vpop.f32.mrf.mxu0
  %v1906 = vadd.f32 %v1697, %v1905
  %1907 = vmatmul.f32.gmra.mxu0 %v191
  %v1908 = vpop.f32.mrf.mxu0
  %v1909 = vadd.f32 %v1700, %v1908
  %1910 = vmatmul.f32.gmra.mxu0 %v201
  %v1911 = vpop.f32.mrf.mxu0
  %v1912 = vadd.f32 %v1703, %v1911
  %1913 = vmatmul.f32.gmra.mxu0 %v211
  %v1914 = vpop.f32.mrf.mxu0
  %v1915 = vadd.f32 %v1706, %v1914
  %1916 = vmatmul.f32.gmra.mxu0 %v221
  %v1917 = vpop.f32.mrf.mxu0
  %v1918 = vadd.f32 %v1709, %v1917
  %1919 = vmatmul.f32.gmra.mxu0 %v231
  %v1920 = vpop.f32.mrf.mxu0
  %v1921 = vadd.f32 %v1712, %v1920
  %1922 = vmatmul.f32.gmra.mxu0 %v241
  %v1923 = vpop.f32.mrf.mxu0
  %v1924 = vadd.f32 %v1715, %v1923
  %1925 = vmatmul.f32.gmra.mxu0 %v251
  %v1926 = vpop.f32.mrf.mxu0
  %v1927 = vadd.f32 %v1718, %v1926
  %1928 = vmatmul.f32.gmra.mxu0 %v261
  %v1929 = vpop.f32.mrf.mxu0
  %v1930 = vadd.f32 %v1721, %v1929
  %1931 = vmatmul.f32.gmra.mxu0 %v271
  %v1932 = vpop.f32.mrf.mxu0
  %v1933 = vadd.f32 %v1724, %v1932
  %1934 = vmatmul.f32.gmra.mxu0 %v281
  %v1935 = vpop.f32.mrf.mxu0
  %v1936 = vadd.f32 %v1727, %v1935
  %1937 = vmatmul.f32.gmra.mxu0 %v291
  %v1938 = vpop.f32.mrf.mxu0
  %v1939 = vadd.f32 %v1730, %v1938
  %1940 = vmatmul.f32.gmra.mxu0 %v301
  %v1941 = vpop.f32.mrf.mxu0
  %v1942 = vadd.f32 %v1733, %v1941
  %1943 = vmatmul.f32.gmra.mxu0 %v311
  %v1944 = vpop.f32.mrf.mxu0
  %v1945 = vadd.f32 %v1736, %v1944
  %1946 = vmatmul.f32.gmra.mxu0 %v321
  %v1947 = vpop.f32.mrf.mxu0
  %v1948 = vadd.f32 %v1739, %v1947
  %1949 = vmatmul.f32.gmra.mxu0 %v331
  %v1950 = vpop.f32.mrf.mxu0
  %v1951 = vadd.f32 %v1742, %v1950
  %1952 = vmatmul.f32.gmra.mxu0 %v341
  %v1953 = vpop.f32.mrf.mxu0
  %v1954 = vadd.f32 %v1745, %v1953
  %1955 = vmatmul.f32.gmra.mxu0 %v351
  %v1956 = vpop.f32.mrf.mxu0
  %v1957 = vadd.f32 %v1748, %v1956
  %1958 = vmatmul.f32.gmra.mxu0 %v361
  %v1959 = vpop.f32.mrf.mxu0
  %v1960 = vadd.f32 %v1751, %v1959
  %1961 = vmatmul.f32.gmra.mxu0 %v371
  %v1962 = vpop.f32.mrf.mxu0
  %v1963 = vadd.f32 %v1754, %v1962
  %1964 = vmatmul.f32.gmra.mxu0 %v381
  %v1965 = vpop.f32.mrf.mxu0
  %v1966 = vadd.f32 %v1757, %v1965
  %1967 = vmatmul.f32.gmra.mxu0 %v391
  %v1968 = vpop.f32.mrf.mxu0
  %v1969 = vadd.f32 %v1760, %v1968
  %1970 = vmatmul.f32.gmra.mxu0 %v401
  %v1971 = vpop.f32.mrf.mxu0
  %v1972 = vadd.f32 %v1763, %v1971
  %1973 = vmatmul.f32.gmra.mxu0 %v411
  %v1974 = vpop.f32.mrf.mxu0
  %v1975 = vadd.f32 %v1766, %v1974
  %1976 = vmatmul.f32.gmra.mxu0 %v421
  %v1977 = vpop.f32.mrf.mxu0
  %v1978 = vadd.f32 %v1769, %v1977
  %1979 = vmatmul.f32.gmra.mxu0 %v431
  %v1980 = vpop.f32.mrf.mxu0
  %v1981 = vadd.f32 %v1772, %v1980
  %1982 = vmatmul.f32.gmra.mxu0 %v441
  %v1983 = vpop.f32.mrf.mxu0
  %v1984 = vadd.f32 %v1775, %v1983
  %1985 = vmatmul.f32.gmra.mxu0 %v451
  %v1986 = vpop.f32.mrf.mxu0
  %v1987 = vadd.f32 %v1778, %v1986
  %1988 = vmatmul.f32.gmra.mxu0 %v461
  %v1989 = vpop.f32.mrf.mxu0
  %v1990 = vadd.f32 %v1781, %v1989
  %1991 = vmatmul.f32.gmra.mxu0 %v471
  %v1992 = vpop.f32.mrf.mxu0
  %v1993 = vadd.f32 %v1784, %v1992
  %1994 = vmatmul.f32.gmra.mxu0 %v481
  %v1995 = vpop.f32.mrf.mxu0
  %v1996 = vadd.f32 %v1787, %v1995
  %1997 = vmatmul.f32.gmra.mxu0 %v491
  %v1998 = vpop.f32.mrf.mxu0
  %v1999 = vadd.f32 %v1790, %v1998
  %2000 = vmatmul.f32.gmra.mxu0 %v501
  %v2001 = vpop.f32.mrf.mxu0
  %v2002 = vadd.f32 %v1793, %v2001
  %2003 = vmatmul.f32.gmra.mxu0 %v511
  %v2004 = vpop.f32.mrf.mxu0
  %v2005 = vadd.f32 %v1796, %v2004
  %2006 = vmatmul.f32.gmra.mxu0 %v521
  %v2007 = vpop.f32.mrf.mxu0
  %v2008 = vadd.f32 %v1799, %v2007
  %2009 = vmatmul.f32.gmra.mxu0 %v531
  %v2010 = vpop.f32.mrf.mxu0
  %v2011 = vadd.f32 %v1802, %v2010
  %2012 = vmatmul.f32.gmra.mxu0 %v541
  %v2013 = vpop.f32.mrf.mxu0
  %v2014 = vadd.f32 %v1805, %v2013
  %2015 = vmatmul.f32.gmra.mxu0 %v551
  %v2016 = vpop.f32.mrf.mxu0
  %v2017 = vadd.f32 %v1808, %v2016
  %2018 = vmatmul.f32.gmra.mxu0 %v561
  %v2019 = vpop.f32.mrf.mxu0
  %v2020 = vadd.f32 %v1811, %v2019
  %2021 = vmatmul.f32.gmra.mxu0 %v571
  %v2022 = vpop.f32.mrf.mxu0
  %v2023 = vadd.f32 %v1814, %v2022
  %2024 = vmatmul.f32.gmra.mxu0 %v581
  %v2025 = vpop.f32.mrf.mxu0
  %v2026 = vadd.f32 %v1817, %v2025
  %2027 = vmatmul.f32.gmra.mxu0 %v591
  %v2028 = vpop.f32.mrf.mxu0
  %v2029 = vadd.f32 %v1820, %v2028
  %2030 = vmatmul.f32.gmra.mxu0 %v601
  %v2031 = vpop.f32.mrf.mxu0
  %v2032 = vadd.f32 %v1823, %v2031
  %2033 = vmatmul.f32.gmra.mxu0 %v611
  %v2034 = vpop.f32.mrf.mxu0
  %v2035 = vadd.f32 %v1826, %v2034
  %2036 = vmatmul.f32.gmra.mxu0 %v621
  %v2037 = vpop.f32.mrf.mxu0
  %v2038 = vadd.f32 %v1829, %v2037
  %2039 = vmatmul.f32.gmra.mxu0 %v631
  %v2040 = vpop.f32.mrf.mxu0
  %v2041 = vadd.f32 %v1832, %v2040
  %2042 = vmatmul.f32.gmra.mxu0 %v641
  %v2043 = vpop.f32.mrf.mxu0
  %v2044 = vadd.f32 %v1835, %v2043
  %2045 = vmatmul.f32.gmra.mxu0 %v651
  %v2046 = vpop.f32.mrf.mxu0
  %v2047 = vadd.f32 %v1838, %v2046
  %2048 = vdwg.mxu0
  %2049 = vmatpush.msra.mxu0 %v752
  %2050 = vmatpush.msra.mxu0 %v751
  %2051 = vmatpush.msra.mxu0 %v750
  %2052 = vmatpush.msra.mxu0 %v749
  %2053 = vmatpush.msra.mxu0 %v748
  %2054 = vmatpush.msra.mxu0 %v747
  %2055 = vmatpush.msra.mxu0 %v746
  %2056 = vmatpush.msra.mxu0 %v745
  %2057 = vmatpush.msra.mxu0 %v744
  %2058 = vmatpush.msra.mxu0 %v743
  %2059 = vmatpush.msra.mxu0 %v742
  %2060 = vmatpush.msra.mxu0 %v741
  %2061 = vmatpush.msra.mxu0 %v740
  %2062 = vmatpush.msra.mxu0 %v739
  %2063 = vmatpush.msra.mxu0 %v738
  %2064 = vmatpush.msra.mxu0 %v737
  %2065 = vmatmul.f32.gmra.mxu0 %v22
  %v2066 = vpop.f32.mrf.mxu0
  %v2067 = vadd.f32 %v1858, %v2066
  %2068 = vmatmul.f32.gmra.mxu0 %v32
  %v2069 = vpop.f32.mrf.mxu0
  %v2070 = vadd.f32 %v1861, %v2069
  %2071 = vmatmul.f32.gmra.mxu0 %v42
  %v2072 = vpop.f32.mrf.mxu0
  %v2073 = vadd.f32 %v1864, %v2072
  %2074 = vmatmul.f32.gmra.mxu0 %v52
  %v2075 = vpop.f32.mrf.mxu0
  %v2076 = vadd.f32 %v1867, %v2075
  %2077 = vmatmul.f32.gmra.mxu0 %v62
  %v2078 = vpop.f32.mrf.mxu0
  %v2079 = vadd.f32 %v1870, %v2078
  %2080 = vmatmul.f32.gmra.mxu0 %v72
  %v2081 = vpop.f32.mrf.mxu0
  %v2082 = vadd.f32 %v1873, %v2081
  %2083 = vmatmul.f32.gmra.mxu0 %v82
  %v2084 = vpop.f32.mrf.mxu0
  %v2085 = vadd.f32 %v1876, %v2084
  %2086 = vmatmul.f32.gmra.mxu0 %v92
  %v2087 = vpop.f32.mrf.mxu0
  %v2088 = vadd.f32 %v1879, %v2087
  %2089 = vmatmul.f32.gmra.mxu0 %v102
  %v2090 = vpop.f32.mrf.mxu0
  %v2091 = vadd.f32 %v1882, %v2090
  %2092 = vmatmul.f32.gmra.mxu0 %v112
  %v2093 = vpop.f32.mrf.mxu0
  %v2094 = vadd.f32 %v1885, %v2093
  %2095 = vmatmul.f32.gmra.mxu0 %v122
  %v2096 = vpop.f32.mrf.mxu0
  %v2097 = vadd.f32 %v1888, %v2096
  %2098 = vmatmul.f32.gmra.mxu0 %v132
  %v2099 = vpop.f32.mrf.mxu0
  %v2100 = vadd.f32 %v1891, %v2099
  %2101 = vmatmul.f32.gmra.mxu0 %v142
  %v2102 = vpop.f32.mrf.mxu0
  %v2103 = vadd.f32 %v1894, %v2102
  %2104 = vmatmul.f32.gmra.mxu0 %v152
  %v2105 = vpop.f32.mrf.mxu0
  %v2106 = vadd.f32 %v1897, %v2105
  %2107 = vmatmul.f32.gmra.mxu0 %v162
  %v2108 = vpop.f32.mrf.mxu0
  %v2109 = vadd.f32 %v1900, %v2108
  %2110 = vmatmul.f32.gmra.mxu0 %v172
  %v2111 = vpop.f32.mrf.mxu0
  %v2112 = vadd.f32 %v1903, %v2111
  %2113 = vmatmul.f32.gmra.mxu0 %v182
  %v2114 = vpop.f32.mrf.mxu0
  %v2115 = vadd.f32 %v1906, %v2114
  %2116 = vmatmul.f32.gmra.mxu0 %v192
  %v2117 = vpop.f32.mrf.mxu0
  %v2118 = vadd.f32 %v1909, %v2117
  %2119 = vmatmul.f32.gmra.mxu0 %v202
  %v2120 = vpop.f32.mrf.mxu0
  %v2121 = vadd.f32 %v1912, %v2120
  %2122 = vmatmul.f32.gmra.mxu0 %v212
  %v2123 = vpop.f32.mrf.mxu0
  %v2124 = vadd.f32 %v1915, %v2123
  %2125 = vmatmul.f32.gmra.mxu0 %v222
  %v2126 = vpop.f32.mrf.mxu0
  %v2127 = vadd.f32 %v1918, %v2126
  %2128 = vmatmul.f32.gmra.mxu0 %v232
  %v2129 = vpop.f32.mrf.mxu0
  %v2130 = vadd.f32 %v1921, %v2129
  %2131 = vmatmul.f32.gmra.mxu0 %v242
  %v2132 = vpop.f32.mrf.mxu0
  %v2133 = vadd.f32 %v1924, %v2132
  %2134 = vmatmul.f32.gmra.mxu0 %v252
  %v2135 = vpop.f32.mrf.mxu0
  %v2136 = vadd.f32 %v1927, %v2135
  %2137 = vmatmul.f32.gmra.mxu0 %v262
  %v2138 = vpop.f32.mrf.mxu0
  %v2139 = vadd.f32 %v1930, %v2138
  %2140 = vmatmul.f32.gmra.mxu0 %v272
  %v2141 = vpop.f32.mrf.mxu0
  %v2142 = vadd.f32 %v1933, %v2141
  %2143 = vmatmul.f32.gmra.mxu0 %v282
  %v2144 = vpop.f32.mrf.mxu0
  %v2145 = vadd.f32 %v1936, %v2144
  %2146 = vmatmul.f32.gmra.mxu0 %v292
  %v2147 = vpop.f32.mrf.mxu0
  %v2148 = vadd.f32 %v1939, %v2147
  %2149 = vmatmul.f32.gmra.mxu0 %v302
  %v2150 = vpop.f32.mrf.mxu0
  %v2151 = vadd.f32 %v1942, %v2150
  %2152 = vmatmul.f32.gmra.mxu0 %v312
  %v2153 = vpop.f32.mrf.mxu0
  %v2154 = vadd.f32 %v1945, %v2153
  %2155 = vmatmul.f32.gmra.mxu0 %v322
  %v2156 = vpop.f32.mrf.mxu0
  %v2157 = vadd.f32 %v1948, %v2156
  %2158 = vmatmul.f32.gmra.mxu0 %v332
  %v2159 = vpop.f32.mrf.mxu0
  %v2160 = vadd.f32 %v1951, %v2159
  %2161 = vmatmul.f32.gmra.mxu0 %v342
  %v2162 = vpop.f32.mrf.mxu0
  %v2163 = vadd.f32 %v1954, %v2162
  %2164 = vmatmul.f32.gmra.mxu0 %v352
  %v2165 = vpop.f32.mrf.mxu0
  %v2166 = vadd.f32 %v1957, %v2165
  %2167 = vmatmul.f32.gmra.mxu0 %v362
  %v2168 = vpop.f32.mrf.mxu0
  %v2169 = vadd.f32 %v1960, %v2168
  %2170 = vmatmul.f32.gmra.mxu0 %v372
  %v2171 = vpop.f32.mrf.mxu0
  %v2172 = vadd.f32 %v1963, %v2171
  %2173 = vmatmul.f32.gmra.mxu0 %v382
  %v2174 = vpop.f32.mrf.mxu0
  %v2175 = vadd.f32 %v1966, %v2174
  %2176 = vmatmul.f32.gmra.mxu0 %v392
  %v2177 = vpop.f32.mrf.mxu0
  %v2178 = vadd.f32 %v1969, %v2177
  %2179 = vmatmul.f32.gmra.mxu0 %v402
  %v2180 = vpop.f32.mrf.mxu0
  %v2181 = vadd.f32 %v1972, %v2180
  %2182 = vmatmul.f32.gmra.mxu0 %v412
  %v2183 = vpop.f32.mrf.mxu0
  %v2184 = vadd.f32 %v1975, %v2183
  %2185 = vmatmul.f32.gmra.mxu0 %v422
  %v2186 = vpop.f32.mrf.mxu0
  %v2187 = vadd.f32 %v1978, %v2186
  %2188 = vmatmul.f32.gmra.mxu0 %v432
  %v2189 = vpop.f32.mrf.mxu0
  %v2190 = vadd.f32 %v1981, %v2189
  %2191 = vmatmul.f32.gmra.mxu0 %v442
  %v2192 = vpop.f32.mrf.mxu0
  %v2193 = vadd.f32 %v1984, %v2192
  %2194 = vmatmul.f32.gmra.mxu0 %v452
  %v2195 = vpop.f32.mrf.mxu0
  %v2196 = vadd.f32 %v1987, %v2195
  %2197 = vmatmul.f32.gmra.mxu0 %v462
  %v2198 = vpop.f32.mrf.mxu0
  %v2199 = vadd.f32 %v1990, %v2198
  %2200 = vmatmul.f32.gmra.mxu0 %v472
  %v2201 = vpop.f32.mrf.mxu0
  %v2202 = vadd.f32 %v1993, %v2201
  %2203 = vmatmul.f32.gmra.mxu0 %v482
  %v2204 = vpop.f32.mrf.mxu0
  %v2205 = vadd.f32 %v1996, %v2204
  %2206 = vmatmul.f32.gmra.mxu0 %v492
  %v2207 = vpop.f32.mrf.mxu0
  %v2208 = vadd.f32 %v1999, %v2207
  %2209 = vmatmul.f32.gmra.mxu0 %v502
  %v2210 = vpop.f32.mrf.mxu0
  %v2211 = vadd.f32 %v2002, %v2210
  %2212 = vmatmul.f32.gmra.mxu0 %v512
  %v2213 = vpop.f32.mrf.mxu0
  %v2214 = vadd.f32 %v2005, %v2213
  %2215 = vmatmul.f32.gmra.mxu0 %v522
  %v2216 = vpop.f32.mrf.mxu0
  %v2217 = vadd.f32 %v2008, %v2216
  %2218 = vmatmul.f32.gmra.mxu0 %v532
  %v2219 = vpop.f32.mrf.mxu0
  %v2220 = vadd.f32 %v2011, %v2219
  %2221 = vmatmul.f32.gmra.mxu0 %v542
  %v2222 = vpop.f32.mrf.mxu0
  %v2223 = vadd.f32 %v2014, %v2222
  %2224 = vmatmul.f32.gmra.mxu0 %v552
  %v2225 = vpop.f32.mrf.mxu0
  %v2226 = vadd.f32 %v2017, %v2225
  %2227 = vmatmul.f32.gmra.mxu0 %v562
  %v2228 = vpop.f32.mrf.mxu0
  %v2229 = vadd.f32 %v2020, %v2228
  %2230 = vmatmul.f32.gmra.mxu0 %v572
  %v2231 = vpop.f32.mrf.mxu0
  %v2232 = vadd.f32 %v2023, %v2231
  %2233 = vmatmul.f32.gmra.mxu0 %v582
  %v2234 = vpop.f32.mrf.mxu0
  %v2235 = vadd.f32 %v2026, %v2234
  %2236 = vmatmul.f32.gmra.mxu0 %v592
  %v2237 = vpop.f32.mrf.mxu0
  %v2238 = vadd.f32 %v2029, %v2237
  %2239 = vmatmul.f32.gmra.mxu0 %v602
  %v2240 = vpop.f32.mrf.mxu0
  %v2241 = vadd.f32 %v2032, %v2240
  %2242 = vmatmul.f32.gmra.mxu0 %v612
  %v2243 = vpop.f32.mrf.mxu0
  %v2244 = vadd.f32 %v2035, %v2243
  %2245 = vmatmul.f32.gmra.mxu0 %v622
  %v2246 = vpop.f32.mrf.mxu0
  %v2247 = vadd.f32 %v2038, %v2246
  %2248 = vmatmul.f32.gmra.mxu0 %v632
  %v2249 = vpop.f32.mrf.mxu0
  %v2250 = vadd.f32 %v2041, %v2249
  %2251 = vmatmul.f32.gmra.mxu0 %v642
  %v2252 = vpop.f32.mrf.mxu0
  %v2253 = vadd.f32 %v2044, %v2252
  %2254 = vmatmul.f32.gmra.mxu0 %v652
  %v2255 = vpop.f32.mrf.mxu0
  %v2256 = vadd.f32 %v2047, %v2255
  %2257 = vdwg.mxu0
  %2258 = vmatpush.msra.mxu0 %v768
  %2259 = vmatpush.msra.mxu0 %v767
  %2260 = vmatpush.msra.mxu0 %v766
  %2261 = vmatpush.msra.mxu0 %v765
  %2262 = vmatpush.msra.mxu0 %v764
  %2263 = vmatpush.msra.mxu0 %v763
  %2264 = vmatpush.msra.mxu0 %v762
  %2265 = vmatpush.msra.mxu0 %v761
  %2266 = vmatpush.msra.mxu0 %v760
  %2267 = vmatpush.msra.mxu0 %v759
  %2268 = vmatpush.msra.mxu0 %v758
  %2269 = vmatpush.msra.mxu0 %v757
  %2270 = vmatpush.msra.mxu0 %v756
  %2271 = vmatpush.msra.mxu0 %v755
  %2272 = vmatpush.msra.mxu0 %v754
  %2273 = vmatpush.msra.mxu0 %v753
  %2274 = vmatmul.f32.gmra.mxu0 %v23
  %v2275 = vpop.f32.mrf.mxu0
  %v2276 = vadd.f32 %v2067, %v2275
  %2277 = vmatmul.f32.gmra.mxu0 %v33
  %v2278 = vpop.f32.mrf.mxu0
  %v2279 = vadd.f32 %v2070, %v2278
  %2280 = vmatmul.f32.gmra.mxu0 %v43
  %v2281 = vpop.f32.mrf.mxu0
  %v2282 = vadd.f32 %v2073, %v2281
  %2283 = vmatmul.f32.gmra.mxu0 %v53
  %v2284 = vpop.f32.mrf.mxu0
  %v2285 = vadd.f32 %v2076, %v2284
  %2286 = vmatmul.f32.gmra.mxu0 %v63
  %v2287 = vpop.f32.mrf.mxu0
  %v2288 = vadd.f32 %v2079, %v2287
  %2289 = vmatmul.f32.gmra.mxu0 %v73
  %v2290 = vpop.f32.mrf.mxu0
  %v2291 = vadd.f32 %v2082, %v2290
  %2292 = vmatmul.f32.gmra.mxu0 %v83
  %v2293 = vpop.f32.mrf.mxu0
  %v2294 = vadd.f32 %v2085, %v2293
  %2295 = vmatmul.f32.gmra.mxu0 %v93
  %v2296 = vpop.f32.mrf.mxu0
  %v2297 = vadd.f32 %v2088, %v2296
  %2298 = vmatmul.f32.gmra.mxu0 %v103
  %v2299 = vpop.f32.mrf.mxu0
  %v2300 = vadd.f32 %v2091, %v2299
  %2301 = vmatmul.f32.gmra.mxu0 %v113
  %v2302 = vpop.f32.mrf.mxu0
  %v2303 = vadd.f32 %v2094, %v2302
  %2304 = vmatmul.f32.gmra.mxu0 %v123
  %v2305 = vpop.f32.mrf.mxu0
  %v2306 = vadd.f32 %v2097, %v2305
  %2307 = vmatmul.f32.gmra.mxu0 %v133
  %v2308 = vpop.f32.mrf.mxu0
  %v2309 = vadd.f32 %v2100, %v2308
  %2310 = vmatmul.f32.gmra.mxu0 %v143
  %v2311 = vpop.f32.mrf.mxu0
  %v2312 = vadd.f32 %v2103, %v2311
  %2313 = vmatmul.f32.gmra.mxu0 %v153
  %v2314 = vpop.f32.mrf.mxu0
  %v2315 = vadd.f32 %v2106, %v2314
  %2316 = vmatmul.f32.gmra.mxu0 %v163
  %v2317 = vpop.f32.mrf.mxu0
  %v2318 = vadd.f32 %v2109, %v2317
  %2319 = vmatmul.f32.gmra.mxu0 %v173
  %v2320 = vpop.f32.mrf.mxu0
  %v2321 = vadd.f32 %v2112, %v2320
  %2322 = vmatmul.f32.gmra.mxu0 %v183
  %v2323 = vpop.f32.mrf.mxu0
  %v2324 = vadd.f32 %v2115, %v2323
  %2325 = vmatmul.f32.gmra.mxu0 %v193
  %v2326 = vpop.f32.mrf.mxu0
  %v2327 = vadd.f32 %v2118, %v2326
  %2328 = vmatmul.f32.gmra.mxu0 %v203
  %v2329 = vpop.f32.mrf.mxu0
  %v2330 = vadd.f32 %v2121, %v2329
  %2331 = vmatmul.f32.gmra.mxu0 %v213
  %v2332 = vpop.f32.mrf.mxu0
  %v2333 = vadd.f32 %v2124, %v2332
  %2334 = vmatmul.f32.gmra.mxu0 %v223
  %v2335 = vpop.f32.mrf.mxu0
  %v2336 = vadd.f32 %v2127, %v2335
  %2337 = vmatmul.f32.gmra.mxu0 %v233
  %v2338 = vpop.f32.mrf.mxu0
  %v2339 = vadd.f32 %v2130, %v2338
  %2340 = vmatmul.f32.gmra.mxu0 %v243
  %v2341 = vpop.f32.mrf.mxu0
  %v2342 = vadd.f32 %v2133, %v2341
  %2343 = vmatmul.f32.gmra.mxu0 %v253
  %v2344 = vpop.f32.mrf.mxu0
  %v2345 = vadd.f32 %v2136, %v2344
  %2346 = vmatmul.f32.gmra.mxu0 %v263
  %v2347 = vpop.f32.mrf.mxu0
  %v2348 = vadd.f32 %v2139, %v2347
  %2349 = vmatmul.f32.gmra.mxu0 %v273
  %v2350 = vpop.f32.mrf.mxu0
  %v2351 = vadd.f32 %v2142, %v2350
  %2352 = vmatmul.f32.gmra.mxu0 %v283
  %v2353 = vpop.f32.mrf.mxu0
  %v2354 = vadd.f32 %v2145, %v2353
  %2355 = vmatmul.f32.gmra.mxu0 %v293
  %v2356 = vpop.f32.mrf.mxu0
  %v2357 = vadd.f32 %v2148, %v2356
  %2358 = vmatmul.f32.gmra.mxu0 %v303
  %v2359 = vpop.f32.mrf.mxu0
  %v2360 = vadd.f32 %v2151, %v2359
  %2361 = vmatmul.f32.gmra.mxu0 %v313
  %v2362 = vpop.f32.mrf.mxu0
  %v2363 = vadd.f32 %v2154, %v2362
  %2364 = vmatmul.f32.gmra.mxu0 %v323
  %v2365 = vpop.f32.mrf.mxu0
  %v2366 = vadd.f32 %v2157, %v2365
  %2367 = vmatmul.f32.gmra.mxu0 %v333
  %v2368 = vpop.f32.mrf.mxu0
  %v2369 = vadd.f32 %v2160, %v2368
  %2370 = vmatmul.f32.gmra.mxu0 %v343
  %v2371 = vpop.f32.mrf.mxu0
  %v2372 = vadd.f32 %v2163, %v2371
  %2373 = vmatmul.f32.gmra.mxu0 %v353
  %v2374 = vpop.f32.mrf.mxu0
  %v2375 = vadd.f32 %v2166, %v2374
  %2376 = vmatmul.f32.gmra.mxu0 %v363
  %v2377 = vpop.f32.mrf.mxu0
  %v2378 = vadd.f32 %v2169, %v2377
  %2379 = vmatmul.f32.gmra.mxu0 %v373
  %v2380 = vpop.f32.mrf.mxu0
  %v2381 = vadd.f32 %v2172, %v2380
  %2382 = vmatmul.f32.gmra.mxu0 %v383
  %v2383 = vpop.f32.mrf.mxu0
  %v2384 = vadd.f32 %v2175, %v2383
  %2385 = vmatmul.f32.gmra.mxu0 %v393
  %v2386 = vpop.f32.mrf.mxu0
  %v2387 = vadd.f32 %v2178, %v2386
  %2388 = vmatmul.f32.gmra.mxu0 %v403
  %v2389 = vpop.f32.mrf.mxu0
  %v2390 = vadd.f32 %v2181, %v2389
  %2391 = vmatmul.f32.gmra.mxu0 %v413
  %v2392 = vpop.f32.mrf.mxu0
  %v2393 = vadd.f32 %v2184, %v2392
  %2394 = vmatmul.f32.gmra.mxu0 %v423
  %v2395 = vpop.f32.mrf.mxu0
  %v2396 = vadd.f32 %v2187, %v2395
  %2397 = vmatmul.f32.gmra.mxu0 %v433
  %v2398 = vpop.f32.mrf.mxu0
  %v2399 = vadd.f32 %v2190, %v2398
  %2400 = vmatmul.f32.gmra.mxu0 %v443
  %v2401 = vpop.f32.mrf.mxu0
  %v2402 = vadd.f32 %v2193, %v2401
  %2403 = vmatmul.f32.gmra.mxu0 %v453
  %v2404 = vpop.f32.mrf.mxu0
  %v2405 = vadd.f32 %v2196, %v2404
  %2406 = vmatmul.f32.gmra.mxu0 %v463
  %v2407 = vpop.f32.mrf.mxu0
  %v2408 = vadd.f32 %v2199, %v2407
  %2409 = vmatmul.f32.gmra.mxu0 %v473
  %v2410 = vpop.f32.mrf.mxu0
  %v2411 = vadd.f32 %v2202, %v2410
  %2412 = vmatmul.f32.gmra.mxu0 %v483
  %v2413 = vpop.f32.mrf.mxu0
  %v2414 = vadd.f32 %v2205, %v2413
  %2415 = vmatmul.f32.gmra.mxu0 %v493
  %v2416 = vpop.f32.mrf.mxu0
  %v2417 = vadd.f32 %v2208, %v2416
  %2418 = vmatmul.f32.gmra.mxu0 %v503
  %v2419 = vpop.f32.mrf.mxu0
  %v2420 = vadd.f32 %v2211, %v2419
  %2421 = vmatmul.f32.gmra.mxu0 %v513
  %v2422 = vpop.f32.mrf.mxu0
  %v2423 = vadd.f32 %v2214, %v2422
  %2424 = vmatmul.f32.gmra.mxu0 %v523
  %v2425 = vpop.f32.mrf.mxu0
  %v2426 = vadd.f32 %v2217, %v2425
  %2427 = vmatmul.f32.gmra.mxu0 %v533
  %v2428 = vpop.f32.mrf.mxu0
  %v2429 = vadd.f32 %v2220, %v2428
  %2430 = vmatmul.f32.gmra.mxu0 %v543
  %v2431 = vpop.f32.mrf.mxu0
  %v2432 = vadd.f32 %v2223, %v2431
  %2433 = vmatmul.f32.gmra.mxu0 %v553
  %v2434 = vpop.f32.mrf.mxu0
  %v2435 = vadd.f32 %v2226, %v2434
  %2436 = vmatmul.f32.gmra.mxu0 %v563
  %v2437 = vpop.f32.mrf.mxu0
  %v2438 = vadd.f32 %v2229, %v2437
  %2439 = vmatmul.f32.gmra.mxu0 %v573
  %v2440 = vpop.f32.mrf.mxu0
  %v2441 = vadd.f32 %v2232, %v2440
  %2442 = vmatmul.f32.gmra.mxu0 %v583
  %v2443 = vpop.f32.mrf.mxu0
  %v2444 = vadd.f32 %v2235, %v2443
  %2445 = vmatmul.f32.gmra.mxu0 %v593
  %v2446 = vpop.f32.mrf.mxu0
  %v2447 = vadd.f32 %v2238, %v2446
  %2448 = vmatmul.f32.gmra.mxu0 %v603
  %v2449 = vpop.f32.mrf.mxu0
  %v2450 = vadd.f32 %v2241, %v2449
  %2451 = vmatmul.f32.gmra.mxu0 %v613
  %v2452 = vpop.f32.mrf.mxu0
  %v2453 = vadd.f32 %v2244, %v2452
  %2454 = vmatmul.f32.gmra.mxu0 %v623
  %v2455 = vpop.f32.mrf.mxu0
  %v2456 = vadd.f32 %v2247, %v2455
  %2457 = vmatmul.f32.gmra.mxu0 %v633
  %v2458 = vpop.f32.mrf.mxu0
  %v2459 = vadd.f32 %v2250, %v2458
  %2460 = vmatmul.f32.gmra.mxu0 %v643
  %v2461 = vpop.f32.mrf.mxu0
  %v2462 = vadd.f32 %v2253, %v2461
  %2463 = vmatmul.f32.gmra.mxu0 %v653
  %v2464 = vpop.f32.mrf.mxu0
  %v2465 = vadd.f32 %v2256, %v2464
  %2466 = vdwg.mxu0
  %2467 = vmatpush.msra.mxu0 %v784
  %2468 = vmatpush.msra.mxu0 %v783
  %2469 = vmatpush.msra.mxu0 %v782
  %2470 = vmatpush.msra.mxu0 %v781
  %2471 = vmatpush.msra.mxu0 %v780
  %2472 = vmatpush.msra.mxu0 %v779
  %2473 = vmatpush.msra.mxu0 %v778
  %2474 = vmatpush.msra.mxu0 %v777
  %2475 = vmatpush.msra.mxu0 %v776
  %2476 = vmatpush.msra.mxu0 %v775
  %2477 = vmatpush.msra.mxu0 %v774
  %2478 = vmatpush.msra.mxu0 %v773
  %2479 = vmatpush.msra.mxu0 %v772
  %2480 = vmatpush.msra.mxu0 %v771
  %2481 = vmatpush.msra.mxu0 %v770
  %2482 = vmatpush.msra.mxu0 %v769
  %2483 = vmatmul.f32.gmra.mxu0 %v24
  %v2484 = vpop.f32.mrf.mxu0
  %v2485 = vadd.f32 %v2276, %v2484
  %2486 = vmatmul.f32.gmra.mxu0 %v34
  %v2487 = vpop.f32.mrf.mxu0
  %v2488 = vadd.f32 %v2279, %v2487
  %2489 = vmatmul.f32.gmra.mxu0 %v44
  %v2490 = vpop.f32.mrf.mxu0
  %v2491 = vadd.f32 %v2282, %v2490
  %2492 = vmatmul.f32.gmra.mxu0 %v54
  %v2493 = vpop.f32.mrf.mxu0
  %v2494 = vadd.f32 %v2285, %v2493
  %2495 = vmatmul.f32.gmra.mxu0 %v64
  %v2496 = vpop.f32.mrf.mxu0
  %v2497 = vadd.f32 %v2288, %v2496
  %2498 = vmatmul.f32.gmra.mxu0 %v74
  %v2499 = vpop.f32.mrf.mxu0
  %v2500 = vadd.f32 %v2291, %v2499
  %2501 = vmatmul.f32.gmra.mxu0 %v84
  %v2502 = vpop.f32.mrf.mxu0
  %v2503 = vadd.f32 %v2294, %v2502
  %2504 = vmatmul.f32.gmra.mxu0 %v94
  %v2505 = vpop.f32.mrf.mxu0
  %v2506 = vadd.f32 %v2297, %v2505
  %2507 = vmatmul.f32.gmra.mxu0 %v104
  %v2508 = vpop.f32.mrf.mxu0
  %v2509 = vadd.f32 %v2300, %v2508
  %2510 = vmatmul.f32.gmra.mxu0 %v114
  %v2511 = vpop.f32.mrf.mxu0
  %v2512 = vadd.f32 %v2303, %v2511
  %2513 = vmatmul.f32.gmra.mxu0 %v124
  %v2514 = vpop.f32.mrf.mxu0
  %v2515 = vadd.f32 %v2306, %v2514
  %2516 = vmatmul.f32.gmra.mxu0 %v134
  %v2517 = vpop.f32.mrf.mxu0
  %v2518 = vadd.f32 %v2309, %v2517
  %2519 = vmatmul.f32.gmra.mxu0 %v144
  %v2520 = vpop.f32.mrf.mxu0
  %v2521 = vadd.f32 %v2312, %v2520
  %2522 = vmatmul.f32.gmra.mxu0 %v154
  %v2523 = vpop.f32.mrf.mxu0
  %v2524 = vadd.f32 %v2315, %v2523
  %2525 = vmatmul.f32.gmra.mxu0 %v164
  %v2526 = vpop.f32.mrf.mxu0
  %v2527 = vadd.f32 %v2318, %v2526
  %2528 = vmatmul.f32.gmra.mxu0 %v174
  %v2529 = vpop.f32.mrf.mxu0
  %v2530 = vadd.f32 %v2321, %v2529
  %2531 = vmatmul.f32.gmra.mxu0 %v184
  %v2532 = vpop.f32.mrf.mxu0
  %v2533 = vadd.f32 %v2324, %v2532
  %2534 = vmatmul.f32.gmra.mxu0 %v194
  %v2535 = vpop.f32.mrf.mxu0
  %v2536 = vadd.f32 %v2327, %v2535
  %2537 = vmatmul.f32.gmra.mxu0 %v204
  %v2538 = vpop.f32.mrf.mxu0
  %v2539 = vadd.f32 %v2330, %v2538
  %2540 = vmatmul.f32.gmra.mxu0 %v214
  %v2541 = vpop.f32.mrf.mxu0
  %v2542 = vadd.f32 %v2333, %v2541
  %2543 = vmatmul.f32.gmra.mxu0 %v224
  %v2544 = vpop.f32.mrf.mxu0
  %v2545 = vadd.f32 %v2336, %v2544
  %2546 = vmatmul.f32.gmra.mxu0 %v234
  %v2547 = vpop.f32.mrf.mxu0
  %v2548 = vadd.f32 %v2339, %v2547
  %2549 = vmatmul.f32.gmra.mxu0 %v244
  %v2550 = vpop.f32.mrf.mxu0
  %v2551 = vadd.f32 %v2342, %v2550
  %2552 = vmatmul.f32.gmra.mxu0 %v254
  %v2553 = vpop.f32.mrf.mxu0
  %v2554 = vadd.f32 %v2345, %v2553
  %2555 = vmatmul.f32.gmra.mxu0 %v264
  %v2556 = vpop.f32.mrf.mxu0
  %v2557 = vadd.f32 %v2348, %v2556
  %2558 = vmatmul.f32.gmra.mxu0 %v274
  %v2559 = vpop.f32.mrf.mxu0
  %v2560 = vadd.f32 %v2351, %v2559
  %2561 = vmatmul.f32.gmra.mxu0 %v284
  %v2562 = vpop.f32.mrf.mxu0
  %v2563 = vadd.f32 %v2354, %v2562
  %2564 = vmatmul.f32.gmra.mxu0 %v294
  %v2565 = vpop.f32.mrf.mxu0
  %v2566 = vadd.f32 %v2357, %v2565
  %2567 = vmatmul.f32.gmra.mxu0 %v304
  %v2568 = vpop.f32.mrf.mxu0
  %v2569 = vadd.f32 %v2360, %v2568
  %2570 = vmatmul.f32.gmra.mxu0 %v314
  %v2571 = vpop.f32.mrf.mxu0
  %v2572 = vadd.f32 %v2363, %v2571
  %2573 = vmatmul.f32.gmra.mxu0 %v324
  %v2574 = vpop.f32.mrf.mxu0
  %v2575 = vadd.f32 %v2366, %v2574
  %2576 = vmatmul.f32.gmra.mxu0 %v334
  %v2577 = vpop.f32.mrf.mxu0
  %v2578 = vadd.f32 %v2369, %v2577
  %2579 = vmatmul.f32.gmra.mxu0 %v344
  %v2580 = vpop.f32.mrf.mxu0
  %v2581 = vadd.f32 %v2372, %v2580
  %2582 = vmatmul.f32.gmra.mxu0 %v354
  %v2583 = vpop.f32.mrf.mxu0
  %v2584 = vadd.f32 %v2375, %v2583
  %2585 = vmatmul.f32.gmra.mxu0 %v364
  %v2586 = vpop.f32.mrf.mxu0
  %v2587 = vadd.f32 %v2378, %v2586
  %2588 = vmatmul.f32.gmra.mxu0 %v374
  %v2589 = vpop.f32.mrf.mxu0
  %v2590 = vadd.f32 %v2381, %v2589
  %2591 = vmatmul.f32.gmra.mxu0 %v384
  %v2592 = vpop.f32.mrf.mxu0
  %v2593 = vadd.f32 %v2384, %v2592
  %2594 = vmatmul.f32.gmra.mxu0 %v394
  %v2595 = vpop.f32.mrf.mxu0
  %v2596 = vadd.f32 %v2387, %v2595
  %2597 = vmatmul.f32.gmra.mxu0 %v404
  %v2598 = vpop.f32.mrf.mxu0
  %v2599 = vadd.f32 %v2390, %v2598
  %2600 = vmatmul.f32.gmra.mxu0 %v414
  %v2601 = vpop.f32.mrf.mxu0
  %v2602 = vadd.f32 %v2393, %v2601
  %2603 = vmatmul.f32.gmra.mxu0 %v424
  %v2604 = vpop.f32.mrf.mxu0
  %v2605 = vadd.f32 %v2396, %v2604
  %2606 = vmatmul.f32.gmra.mxu0 %v434
  %v2607 = vpop.f32.mrf.mxu0
  %v2608 = vadd.f32 %v2399, %v2607
  %2609 = vmatmul.f32.gmra.mxu0 %v444
  %v2610 = vpop.f32.mrf.mxu0
  %v2611 = vadd.f32 %v2402, %v2610
  %2612 = vmatmul.f32.gmra.mxu0 %v454
  %v2613 = vpop.f32.mrf.mxu0
  %v2614 = vadd.f32 %v2405, %v2613
  %2615 = vmatmul.f32.gmra.mxu0 %v464
  %v2616 = vpop.f32.mrf.mxu0
  %v2617 = vadd.f32 %v2408, %v2616
  %2618 = vmatmul.f32.gmra.mxu0 %v474
  %v2619 = vpop.f32.mrf.mxu0
  %v2620 = vadd.f32 %v2411, %v2619
  %2621 = vmatmul.f32.gmra.mxu0 %v484
  %v2622 = vpop.f32.mrf.mxu0
  %v2623 = vadd.f32 %v2414, %v2622
  %2624 = vmatmul.f32.gmra.mxu0 %v494
  %v2625 = vpop.f32.mrf.mxu0
  %v2626 = vadd.f32 %v2417, %v2625
  %2627 = vmatmul.f32.gmra.mxu0 %v504
  %v2628 = vpop.f32.mrf.mxu0
  %v2629 = vadd.f32 %v2420, %v2628
  %2630 = vmatmul.f32.gmra.mxu0 %v514
  %v2631 = vpop.f32.mrf.mxu0
  %v2632 = vadd.f32 %v2423, %v2631
  %2633 = vmatmul.f32.gmra.mxu0 %v524
  %v2634 = vpop.f32.mrf.mxu0
  %v2635 = vadd.f32 %v2426, %v2634
  %2636 = vmatmul.f32.gmra.mxu0 %v534
  %v2637 = vpop.f32.mrf.mxu0
  %v2638 = vadd.f32 %v2429, %v2637
  %2639 = vmatmul.f32.gmra.mxu0 %v544
  %v2640 = vpop.f32.mrf.mxu0
  %v2641 = vadd.f32 %v2432, %v2640
  %2642 = vmatmul.f32.gmra.mxu0 %v554
  %v2643 = vpop.f32.mrf.mxu0
  %v2644 = vadd.f32 %v2435, %v2643
  %2645 = vmatmul.f32.gmra.mxu0 %v564
  %v2646 = vpop.f32.mrf.mxu0
  %v2647 = vadd.f32 %v2438, %v2646
  %2648 = vmatmul.f32.gmra.mxu0 %v574
  %v2649 = vpop.f32.mrf.mxu0
  %v2650 = vadd.f32 %v2441, %v2649
  %2651 = vmatmul.f32.gmra.mxu0 %v584
  %v2652 = vpop.f32.mrf.mxu0
  %v2653 = vadd.f32 %v2444, %v2652
  %2654 = vmatmul.f32.gmra.mxu0 %v594
  %v2655 = vpop.f32.mrf.mxu0
  %v2656 = vadd.f32 %v2447, %v2655
  %2657 = vmatmul.f32.gmra.mxu0 %v604
  %v2658 = vpop.f32.mrf.mxu0
  %v2659 = vadd.f32 %v2450, %v2658
  %2660 = vmatmul.f32.gmra.mxu0 %v614
  %v2661 = vpop.f32.mrf.mxu0
  %v2662 = vadd.f32 %v2453, %v2661
  %2663 = vmatmul.f32.gmra.mxu0 %v624
  %v2664 = vpop.f32.mrf.mxu0
  %v2665 = vadd.f32 %v2456, %v2664
  %2666 = vmatmul.f32.gmra.mxu0 %v634
  %v2667 = vpop.f32.mrf.mxu0
  %v2668 = vadd.f32 %v2459, %v2667
  %2669 = vmatmul.f32.gmra.mxu0 %v644
  %v2670 = vpop.f32.mrf.mxu0
  %v2671 = vadd.f32 %v2462, %v2670
  %2672 = vmatmul.f32.gmra.mxu0 %v654
  %v2673 = vpop.f32.mrf.mxu0
  %v2674 = vadd.f32 %v2465, %v2673
  %2675 = vdwg.mxu0
  %2676 = vmatpush.msra.mxu0 %v800
  %2677 = vmatpush.msra.mxu0 %v799
  %2678 = vmatpush.msra.mxu0 %v798
  %2679 = vmatpush.msra.mxu0 %v797
  %2680 = vmatpush.msra.mxu0 %v796
  %2681 = vmatpush.msra.mxu0 %v795
  %2682 = vmatpush.msra.mxu0 %v794
  %2683 = vmatpush.msra.mxu0 %v793
  %2684 = vmatpush.msra.mxu0 %v792
  %2685 = vmatpush.msra.mxu0 %v791
  %2686 = vmatpush.msra.mxu0 %v790
  %2687 = vmatpush.msra.mxu0 %v789
  %2688 = vmatpush.msra.mxu0 %v788
  %2689 = vmatpush.msra.mxu0 %v787
  %2690 = vmatpush.msra.mxu0 %v786
  %2691 = vmatpush.msra.mxu0 %v785
  %2692 = vmatmul.f32.gmra.mxu0 %v25
  %v2693 = vpop.f32.mrf.mxu0
  %v2694 = vadd.f32 %v2485, %v2693
  %2695 = vmatmul.f32.gmra.mxu0 %v35
  %v2696 = vpop.f32.mrf.mxu0
  %v2697 = vadd.f32 %v2488, %v2696
  %2698 = vmatmul.f32.gmra.mxu0 %v45
  %v2699 = vpop.f32.mrf.mxu0
  %v2700 = vadd.f32 %v2491, %v2699
  %2701 = vmatmul.f32.gmra.mxu0 %v55
  %v2702 = vpop.f32.mrf.mxu0
  %v2703 = vadd.f32 %v2494, %v2702
  %2704 = vmatmul.f32.gmra.mxu0 %v65
  %v2705 = vpop.f32.mrf.mxu0
  %v2706 = vadd.f32 %v2497, %v2705
  %2707 = vmatmul.f32.gmra.mxu0 %v75
  %v2708 = vpop.f32.mrf.mxu0
  %v2709 = vadd.f32 %v2500, %v2708
  %2710 = vmatmul.f32.gmra.mxu0 %v85
  %v2711 = vpop.f32.mrf.mxu0
  %v2712 = vadd.f32 %v2503, %v2711
  %2713 = vmatmul.f32.gmra.mxu0 %v95
  %v2714 = vpop.f32.mrf.mxu0
  %v2715 = vadd.f32 %v2506, %v2714
  %2716 = vmatmul.f32.gmra.mxu0 %v105
  %v2717 = vpop.f32.mrf.mxu0
  %v2718 = vadd.f32 %v2509, %v2717
  %2719 = vmatmul.f32.gmra.mxu0 %v115
  %v2720 = vpop.f32.mrf.mxu0
  %v2721 = vadd.f32 %v2512, %v2720
  %2722 = vmatmul.f32.gmra.mxu0 %v125
  %v2723 = vpop.f32.mrf.mxu0
  %v2724 = vadd.f32 %v2515, %v2723
  %2725 = vmatmul.f32.gmra.mxu0 %v135
  %v2726 = vpop.f32.mrf.mxu0
  %v2727 = vadd.f32 %v2518, %v2726
  %2728 = vmatmul.f32.gmra.mxu0 %v145
  %v2729 = vpop.f32.mrf.mxu0
  %v2730 = vadd.f32 %v2521, %v2729
  %2731 = vmatmul.f32.gmra.mxu0 %v155
  %v2732 = vpop.f32.mrf.mxu0
  %v2733 = vadd.f32 %v2524, %v2732
  %2734 = vmatmul.f32.gmra.mxu0 %v165
  %v2735 = vpop.f32.mrf.mxu0
  %v2736 = vadd.f32 %v2527, %v2735
  %2737 = vmatmul.f32.gmra.mxu0 %v175
  %v2738 = vpop.f32.mrf.mxu0
  %v2739 = vadd.f32 %v2530, %v2738
  %2740 = vmatmul.f32.gmra.mxu0 %v185
  %v2741 = vpop.f32.mrf.mxu0
  %v2742 = vadd.f32 %v2533, %v2741
  %2743 = vmatmul.f32.gmra.mxu0 %v195
  %v2744 = vpop.f32.mrf.mxu0
  %v2745 = vadd.f32 %v2536, %v2744
  %2746 = vmatmul.f32.gmra.mxu0 %v205
  %v2747 = vpop.f32.mrf.mxu0
  %v2748 = vadd.f32 %v2539, %v2747
  %2749 = vmatmul.f32.gmra.mxu0 %v215
  %v2750 = vpop.f32.mrf.mxu0
  %v2751 = vadd.f32 %v2542, %v2750
  %2752 = vmatmul.f32.gmra.mxu0 %v225
  %v2753 = vpop.f32.mrf.mxu0
  %v2754 = vadd.f32 %v2545, %v2753
  %2755 = vmatmul.f32.gmra.mxu0 %v235
  %v2756 = vpop.f32.mrf.mxu0
  %v2757 = vadd.f32 %v2548, %v2756
  %2758 = vmatmul.f32.gmra.mxu0 %v245
  %v2759 = vpop.f32.mrf.mxu0
  %v2760 = vadd.f32 %v2551, %v2759
  %2761 = vmatmul.f32.gmra.mxu0 %v255
  %v2762 = vpop.f32.mrf.mxu0
  %v2763 = vadd.f32 %v2554, %v2762
  %2764 = vmatmul.f32.gmra.mxu0 %v265
  %v2765 = vpop.f32.mrf.mxu0
  %v2766 = vadd.f32 %v2557, %v2765
  %2767 = vmatmul.f32.gmra.mxu0 %v275
  %v2768 = vpop.f32.mrf.mxu0
  %v2769 = vadd.f32 %v2560, %v2768
  %2770 = vmatmul.f32.gmra.mxu0 %v285
  %v2771 = vpop.f32.mrf.mxu0
  %v2772 = vadd.f32 %v2563, %v2771
  %2773 = vmatmul.f32.gmra.mxu0 %v295
  %v2774 = vpop.f32.mrf.mxu0
  %v2775 = vadd.f32 %v2566, %v2774
  %2776 = vmatmul.f32.gmra.mxu0 %v305
  %v2777 = vpop.f32.mrf.mxu0
  %v2778 = vadd.f32 %v2569, %v2777
  %2779 = vmatmul.f32.gmra.mxu0 %v315
  %v2780 = vpop.f32.mrf.mxu0
  %v2781 = vadd.f32 %v2572, %v2780
  %2782 = vmatmul.f32.gmra.mxu0 %v325
  %v2783 = vpop.f32.mrf.mxu0
  %v2784 = vadd.f32 %v2575, %v2783
  %2785 = vmatmul.f32.gmra.mxu0 %v335
  %v2786 = vpop.f32.mrf.mxu0
  %v2787 = vadd.f32 %v2578, %v2786
  %2788 = vmatmul.f32.gmra.mxu0 %v345
  %v2789 = vpop.f32.mrf.mxu0
  %v2790 = vadd.f32 %v2581, %v2789
  %2791 = vmatmul.f32.gmra.mxu0 %v355
  %v2792 = vpop.f32.mrf.mxu0
  %v2793 = vadd.f32 %v2584, %v2792
  %2794 = vmatmul.f32.gmra.mxu0 %v365
  %v2795 = vpop.f32.mrf.mxu0
  %v2796 = vadd.f32 %v2587, %v2795
  %2797 = vmatmul.f32.gmra.mxu0 %v375
  %v2798 = vpop.f32.mrf.mxu0
  %v2799 = vadd.f32 %v2590, %v2798
  %2800 = vmatmul.f32.gmra.mxu0 %v385
  %v2801 = vpop.f32.mrf.mxu0
  %v2802 = vadd.f32 %v2593, %v2801
  %2803 = vmatmul.f32.gmra.mxu0 %v395
  %v2804 = vpop.f32.mrf.mxu0
  %v2805 = vadd.f32 %v2596, %v2804
  %2806 = vmatmul.f32.gmra.mxu0 %v405
  %v2807 = vpop.f32.mrf.mxu0
  %v2808 = vadd.f32 %v2599, %v2807
  %2809 = vmatmul.f32.gmra.mxu0 %v415
  %v2810 = vpop.f32.mrf.mxu0
  %v2811 = vadd.f32 %v2602, %v2810
  %2812 = vmatmul.f32.gmra.mxu0 %v425
  %v2813 = vpop.f32.mrf.mxu0
  %v2814 = vadd.f32 %v2605, %v2813
  %2815 = vmatmul.f32.gmra.mxu0 %v435
  %v2816 = vpop.f32.mrf.mxu0
  %v2817 = vadd.f32 %v2608, %v2816
  %2818 = vmatmul.f32.gmra.mxu0 %v445
  %v2819 = vpop.f32.mrf.mxu0
  %v2820 = vadd.f32 %v2611, %v2819
  %2821 = vmatmul.f32.gmra.mxu0 %v455
  %v2822 = vpop.f32.mrf.mxu0
  %v2823 = vadd.f32 %v2614, %v2822
  %2824 = vmatmul.f32.gmra.mxu0 %v465
  %v2825 = vpop.f32.mrf.mxu0
  %v2826 = vadd.f32 %v2617, %v2825
  %2827 = vmatmul.f32.gmra.mxu0 %v475
  %v2828 = vpop.f32.mrf.mxu0
  %v2829 = vadd.f32 %v2620, %v2828
  %2830 = vmatmul.f32.gmra.mxu0 %v485
  %v2831 = vpop.f32.mrf.mxu0
  %v2832 = vadd.f32 %v2623, %v2831
  %2833 = vmatmul.f32.gmra.mxu0 %v495
  %v2834 = vpop.f32.mrf.mxu0
  %v2835 = vadd.f32 %v2626, %v2834
  %2836 = vmatmul.f32.gmra.mxu0 %v505
  %v2837 = vpop.f32.mrf.mxu0
  %v2838 = vadd.f32 %v2629, %v2837
  %2839 = vmatmul.f32.gmra.mxu0 %v515
  %v2840 = vpop.f32.mrf.mxu0
  %v2841 = vadd.f32 %v2632, %v2840
  %2842 = vmatmul.f32.gmra.mxu0 %v525
  %v2843 = vpop.f32.mrf.mxu0
  %v2844 = vadd.f32 %v2635, %v2843
  %2845 = vmatmul.f32.gmra.mxu0 %v535
  %v2846 = vpop.f32.mrf.mxu0
  %v2847 = vadd.f32 %v2638, %v2846
  %2848 = vmatmul.f32.gmra.mxu0 %v545
  %v2849 = vpop.f32.mrf.mxu0
  %v2850 = vadd.f32 %v2641, %v2849
  %2851 = vmatmul.f32.gmra.mxu0 %v555
  %v2852 = vpop.f32.mrf.mxu0
  %v2853 = vadd.f32 %v2644, %v2852
  %2854 = vmatmul.f32.gmra.mxu0 %v565
  %v2855 = vpop.f32.mrf.mxu0
  %v2856 = vadd.f32 %v2647, %v2855
  %2857 = vmatmul.f32.gmra.mxu0 %v575
  %v2858 = vpop.f32.mrf.mxu0
  %v2859 = vadd.f32 %v2650, %v2858
  %2860 = vmatmul.f32.gmra.mxu0 %v585
  %v2861 = vpop.f32.mrf.mxu0
  %v2862 = vadd.f32 %v2653, %v2861
  %2863 = vmatmul.f32.gmra.mxu0 %v595
  %v2864 = vpop.f32.mrf.mxu0
  %v2865 = vadd.f32 %v2656, %v2864
  %2866 = vmatmul.f32.gmra.mxu0 %v605
  %v2867 = vpop.f32.mrf.mxu0
  %v2868 = vadd.f32 %v2659, %v2867
  %2869 = vmatmul.f32.gmra.mxu0 %v615
  %v2870 = vpop.f32.mrf.mxu0
  %v2871 = vadd.f32 %v2662, %v2870
  %2872 = vmatmul.f32.gmra.mxu0 %v625
  %v2873 = vpop.f32.mrf.mxu0
  %v2874 = vadd.f32 %v2665, %v2873
  %2875 = vmatmul.f32.gmra.mxu0 %v635
  %v2876 = vpop.f32.mrf.mxu0
  %v2877 = vadd.f32 %v2668, %v2876
  %2878 = vmatmul.f32.gmra.mxu0 %v645
  %v2879 = vpop.f32.mrf.mxu0
  %v2880 = vadd.f32 %v2671, %v2879
  %2881 = vmatmul.f32.gmra.mxu0 %v655
  %v2882 = vpop.f32.mrf.mxu0
  %v2883 = vadd.f32 %v2674, %v2882
  %2884 = vdwg.mxu0
  %2885 = vmatpush.msra.mxu0 0.0
  %2886 = vmatpush.msra.mxu0 0.0
  %2887 = vmatpush.msra.mxu0 0.0
  %2888 = vmatpush.msra.mxu0 0.0
  %2889 = vmatpush.msra.mxu0 0.0
  %2890 = vmatpush.msra.mxu0 0.0
  %2891 = vmatpush.msra.mxu0 0.0
  %2892 = vmatpush.msra.mxu0 0.0
  %2893 = vmatpush.msra.mxu0 0.0
  %2894 = vmatpush.msra.mxu0 0.0
  %2895 = vmatpush.msra.mxu0 %v806
  %2896 = vmatpush.msra.mxu0 %v805
  %2897 = vmatpush.msra.mxu0 %v804
  %2898 = vmatpush.msra.mxu0 %v803
  %2899 = vmatpush.msra.mxu0 %v802
  %2900 = vmatpush.msra.mxu0 %v801
  %2901 = vmatmul.f32.gmra.mxu0 %v813
  %v2902 = vpop.f32.mrf.mxu0
  %v2903 = vadd.f32 %v2694, %v2902
  %2904 = vmatmul.f32.gmra.mxu0 %v816
  %v2905 = vpop.f32.mrf.mxu0
  %v2906 = vadd.f32 %v2697, %v2905
  %2907 = vmatmul.f32.gmra.mxu0 %v819
  %v2908 = vpop.f32.mrf.mxu0
  %v2909 = vadd.f32 %v2700, %v2908
  %2910 = vmatmul.f32.gmra.mxu0 %v822
  %v2911 = vpop.f32.mrf.mxu0
  %v2912 = vadd.f32 %v2703, %v2911
  %2913 = vmatmul.f32.gmra.mxu0 %v825
  %v2914 = vpop.f32.mrf.mxu0
  %v2915 = vadd.f32 %v2706, %v2914
  %2916 = vmatmul.f32.gmra.mxu0 %v828
  %v2917 = vpop.f32.mrf.mxu0
  %v2918 = vadd.f32 %v2709, %v2917
  %2919 = vmatmul.f32.gmra.mxu0 %v831
  %v2920 = vpop.f32.mrf.mxu0
  %v2921 = vadd.f32 %v2712, %v2920
  %2922 = vmatmul.f32.gmra.mxu0 %v834
  %v2923 = vpop.f32.mrf.mxu0
  %v2924 = vadd.f32 %v2715, %v2923
  %2925 = vmatmul.f32.gmra.mxu0 %v837
  %v2926 = vpop.f32.mrf.mxu0
  %v2927 = vadd.f32 %v2718, %v2926
  %2928 = vmatmul.f32.gmra.mxu0 %v840
  %v2929 = vpop.f32.mrf.mxu0
  %v2930 = vadd.f32 %v2721, %v2929
  %2931 = vmatmul.f32.gmra.mxu0 %v843
  %v2932 = vpop.f32.mrf.mxu0
  %v2933 = vadd.f32 %v2724, %v2932
  %2934 = vmatmul.f32.gmra.mxu0 %v846
  %v2935 = vpop.f32.mrf.mxu0
  %v2936 = vadd.f32 %v2727, %v2935
  %2937 = vmatmul.f32.gmra.mxu0 %v849
  %v2938 = vpop.f32.mrf.mxu0
  %v2939 = vadd.f32 %v2730, %v2938
  %2940 = vmatmul.f32.gmra.mxu0 %v852
  %v2941 = vpop.f32.mrf.mxu0
  %v2942 = vadd.f32 %v2733, %v2941
  %2943 = vmatmul.f32.gmra.mxu0 %v855
  %v2944 = vpop.f32.mrf.mxu0
  %v2945 = vadd.f32 %v2736, %v2944
  %2946 = vmatmul.f32.gmra.mxu0 %v858
  %v2947 = vpop.f32.mrf.mxu0
  %v2948 = vadd.f32 %v2739, %v2947
  %2949 = vmatmul.f32.gmra.mxu0 %v861
  %v2950 = vpop.f32.mrf.mxu0
  %v2951 = vadd.f32 %v2742, %v2950
  %2952 = vmatmul.f32.gmra.mxu0 %v864
  %v2953 = vpop.f32.mrf.mxu0
  %v2954 = vadd.f32 %v2745, %v2953
  %2955 = vmatmul.f32.gmra.mxu0 %v867
  %v2956 = vpop.f32.mrf.mxu0
  %v2957 = vadd.f32 %v2748, %v2956
  %2958 = vmatmul.f32.gmra.mxu0 %v870
  %v2959 = vpop.f32.mrf.mxu0
  %v2960 = vadd.f32 %v2751, %v2959
  %2961 = vmatmul.f32.gmra.mxu0 %v873
  %v2962 = vpop.f32.mrf.mxu0
  %v2963 = vadd.f32 %v2754, %v2962
  %2964 = vmatmul.f32.gmra.mxu0 %v876
  %v2965 = vpop.f32.mrf.mxu0
  %v2966 = vadd.f32 %v2757, %v2965
  %2967 = vmatmul.f32.gmra.mxu0 %v879
  %v2968 = vpop.f32.mrf.mxu0
  %v2969 = vadd.f32 %v2760, %v2968
  %2970 = vmatmul.f32.gmra.mxu0 %v882
  %v2971 = vpop.f32.mrf.mxu0
  %v2972 = vadd.f32 %v2763, %v2971
  %2973 = vmatmul.f32.gmra.mxu0 %v885
  %v2974 = vpop.f32.mrf.mxu0
  %v2975 = vadd.f32 %v2766, %v2974
  %2976 = vmatmul.f32.gmra.mxu0 %v888
  %v2977 = vpop.f32.mrf.mxu0
  %v2978 = vadd.f32 %v2769, %v2977
  %2979 = vmatmul.f32.gmra.mxu0 %v891
  %v2980 = vpop.f32.mrf.mxu0
  %v2981 = vadd.f32 %v2772, %v2980
  %2982 = vmatmul.f32.gmra.mxu0 %v894
  %v2983 = vpop.f32.mrf.mxu0
  %v2984 = vadd.f32 %v2775, %v2983
  %2985 = vmatmul.f32.gmra.mxu0 %v897
  %v2986 = vpop.f32.mrf.mxu0
  %v2987 = vadd.f32 %v2778, %v2986
  %2988 = vmatmul.f32.gmra.mxu0 %v900
  %v2989 = vpop.f32.mrf.mxu0
  %v2990 = vadd.f32 %v2781, %v2989
  %2991 = vmatmul.f32.gmra.mxu0 %v903
  %v2992 = vpop.f32.mrf.mxu0
  %v2993 = vadd.f32 %v2784, %v2992
  %2994 = vmatmul.f32.gmra.mxu0 %v906
  %v2995 = vpop.f32.mrf.mxu0
  %v2996 = vadd.f32 %v2787, %v2995
  %2997 = vmatmul.f32.gmra.mxu0 %v909
  %v2998 = vpop.f32.mrf.mxu0
  %v2999 = vadd.f32 %v2790, %v2998
  %3000 = vmatmul.f32.gmra.mxu0 %v912
  %v3001 = vpop.f32.mrf.mxu0
  %v3002 = vadd.f32 %v2793, %v3001
  %3003 = vmatmul.f32.gmra.mxu0 %v915
  %v3004 = vpop.f32.mrf.mxu0
  %v3005 = vadd.f32 %v2796, %v3004
  %3006 = vmatmul.f32.gmra.mxu0 %v918
  %v3007 = vpop.f32.mrf.mxu0
  %v3008 = vadd.f32 %v2799, %v3007
  %3009 = vmatmul.f32.gmra.mxu0 %v921
  %v3010 = vpop.f32.mrf.mxu0
  %v3011 = vadd.f32 %v2802, %v3010
  %3012 = vmatmul.f32.gmra.mxu0 %v924
  %v3013 = vpop.f32.mrf.mxu0
  %v3014 = vadd.f32 %v2805, %v3013
  %3015 = vmatmul.f32.gmra.mxu0 %v927
  %v3016 = vpop.f32.mrf.mxu0
  %v3017 = vadd.f32 %v2808, %v3016
  %3018 = vmatmul.f32.gmra.mxu0 %v930
  %v3019 = vpop.f32.mrf.mxu0
  %v3020 = vadd.f32 %v2811, %v3019
  %3021 = vmatmul.f32.gmra.mxu0 %v933
  %v3022 = vpop.f32.mrf.mxu0
  %v3023 = vadd.f32 %v2814, %v3022
  %3024 = vmatmul.f32.gmra.mxu0 %v936
  %v3025 = vpop.f32.mrf.mxu0
  %v3026 = vadd.f32 %v2817, %v3025
  %3027 = vmatmul.f32.gmra.mxu0 %v939
  %v3028 = vpop.f32.mrf.mxu0
  %v3029 = vadd.f32 %v2820, %v3028
  %3030 = vmatmul.f32.gmra.mxu0 %v942
  %v3031 = vpop.f32.mrf.mxu0
  %v3032 = vadd.f32 %v2823, %v3031
  %3033 = vmatmul.f32.gmra.mxu0 %v945
  %v3034 = vpop.f32.mrf.mxu0
  %v3035 = vadd.f32 %v2826, %v3034
  %3036 = vmatmul.f32.gmra.mxu0 %v948
  %v3037 = vpop.f32.mrf.mxu0
  %v3038 = vadd.f32 %v2829, %v3037
  %3039 = vmatmul.f32.gmra.mxu0 %v951
  %v3040 = vpop.f32.mrf.mxu0
  %v3041 = vadd.f32 %v2832, %v3040
  %3042 = vmatmul.f32.gmra.mxu0 %v954
  %v3043 = vpop.f32.mrf.mxu0
  %v3044 = vadd.f32 %v2835, %v3043
  %3045 = vmatmul.f32.gmra.mxu0 %v957
  %v3046 = vpop.f32.mrf.mxu0
  %v3047 = vadd.f32 %v2838, %v3046
  %3048 = vmatmul.f32.gmra.mxu0 %v960
  %v3049 = vpop.f32.mrf.mxu0
  %v3050 = vadd.f32 %v2841, %v3049
  %3051 = vmatmul.f32.gmra.mxu0 %v963
  %v3052 = vpop.f32.mrf.mxu0
  %v3053 = vadd.f32 %v2844, %v3052
  %3054 = vmatmul.f32.gmra.mxu0 %v966
  %v3055 = vpop.f32.mrf.mxu0
  %v3056 = vadd.f32 %v2847, %v3055
  %3057 = vmatmul.f32.gmra.mxu0 %v969
  %v3058 = vpop.f32.mrf.mxu0
  %v3059 = vadd.f32 %v2850, %v3058
  %3060 = vmatmul.f32.gmra.mxu0 %v972
  %v3061 = vpop.f32.mrf.mxu0
  %v3062 = vadd.f32 %v2853, %v3061
  %3063 = vmatmul.f32.gmra.mxu0 %v975
  %v3064 = vpop.f32.mrf.mxu0
  %v3065 = vadd.f32 %v2856, %v3064
  %3066 = vmatmul.f32.gmra.mxu0 %v978
  %v3067 = vpop.f32.mrf.mxu0
  %v3068 = vadd.f32 %v2859, %v3067
  %3069 = vmatmul.f32.gmra.mxu0 %v981
  %v3070 = vpop.f32.mrf.mxu0
  %v3071 = vadd.f32 %v2862, %v3070
  %3072 = vmatmul.f32.gmra.mxu0 %v984
  %v3073 = vpop.f32.mrf.mxu0
  %v3074 = vadd.f32 %v2865, %v3073
  %3075 = vmatmul.f32.gmra.mxu0 %v987
  %v3076 = vpop.f32.mrf.mxu0
  %v3077 = vadd.f32 %v2868, %v3076
  %3078 = vmatmul.f32.gmra.mxu0 %v990
  %v3079 = vpop.f32.mrf.mxu0
  %v3080 = vadd.f32 %v2871, %v3079
  %3081 = vmatmul.f32.gmra.mxu0 %v993
  %v3082 = vpop.f32.mrf.mxu0
  %v3083 = vadd.f32 %v2874, %v3082
  %3084 = vmatmul.f32.gmra.mxu0 %v996
  %v3085 = vpop.f32.mrf.mxu0
  %v3086 = vadd.f32 %v2877, %v3085
  %3087 = vmatmul.f32.gmra.mxu0 %v999
  %v3088 = vpop.f32.mrf.mxu0
  %v3089 = vadd.f32 %v2880, %v3088
  %3090 = vmatmul.f32.gmra.mxu0 %v1002
  %v3091 = vpop.f32.mrf.mxu0
  %v3092 = vadd.f32 %v2883, %v3091
  %3093 = vdwg.mxu0
  %v3094 = vld [vmem:[%s3] sm:$0xff]
  %v3095 = vld [vmem:[%s3 + $0x8] sm:$0xff]
  %v3096 = vld [vmem:[%s3 + $0x10] sm:$0xff]
  %v3097 = vld [vmem:[%s3 + $0x18] sm:$0xff]
  %v3098 = vld [vmem:[%s3 + $0x20] sm:$0xff]
  %v3099 = vld [vmem:[%s3 + $0x28] sm:$0xff]
  %v3100 = vld [vmem:[%s3 + $0x30] sm:$0xff]
  %v3101 = vld [vmem:[%s3 + $0x38] sm:$0xff]
  %v3102 = vld [vmem:[%s3 + $0x40] sm:$0xff]
  %v3103 = vld [vmem:[%s3 + $0x48] sm:$0xff]
  %v3104 = vld [vmem:[%s3 + $0x50] sm:$0xff]
  %v3105 = vld [vmem:[%s3 + $0x58] sm:$0xff]
  %v3106 = vld [vmem:[%s3 + $0x60] sm:$0xff]
  %v3107 = vld [vmem:[%s3 + $0x68] sm:$0xff]
  %v3108 = vld [vmem:[%s3 + $0x70] sm:$0xff]
  %v3109 = vld [vmem:[%s3 + $0x78] sm:$0xff]
  %v3110 = vld [vmem:[%s3 + $0x80] sm:$0xff]
  %v3111 = vld [vmem:[%s3 + $0x88] sm:$0xff]
  %v3112 = vld [vmem:[%s3 + $0x90] sm:$0xff]
  %v3113 = vld [vmem:[%s3 + $0x98] sm:$0xff]
  %v3114 = vld [vmem:[%s3 + $0xa0] sm:$0xff]
  %v3115 = vld [vmem:[%s3 + $0xa8] sm:$0xff]
  %v3116 = vld [vmem:[%s3 + $0xb0] sm:$0xff]
  %v3117 = vld [vmem:[%s3 + $0xb8] sm:$0xff]
  %v3118 = vld [vmem:[%s3 + $0xc0] sm:$0xff]
  %v3119 = vld [vmem:[%s3 + $0xc8] sm:$0xff]
  %v3120 = vld [vmem:[%s3 + $0xd0] sm:$0xff]
  %v3121 = vld [vmem:[%s3 + $0xd8] sm:$0xff]
  %v3122 = vld [vmem:[%s3 + $0xe0] sm:$0xff]
  %v3123 = vld [vmem:[%s3 + $0xe8] sm:$0xff]
  %v3124 = vld [vmem:[%s3 + $0xf0] sm:$0xff]
  %v3125 = vld [vmem:[%s3 + $0xf8] sm:$0xff]
  %v3126 = vld [vmem:[%s3 + $0x100] sm:$0xff]
  %v3127 = vld [vmem:[%s3 + $0x108] sm:$0xff]
  %v3128 = vld [vmem:[%s3 + $0x110] sm:$0xff]
  %v3129 = vld [vmem:[%s3 + $0x118] sm:$0xff]
  %v3130 = vld [vmem:[%s3 + $0x120] sm:$0xff]
  %v3131 = vld [vmem:[%s3 + $0x128] sm:$0xff]
  %v3132 = vld [vmem:[%s3 + $0x130] sm:$0xff]
  %v3133 = vld [vmem:[%s3 + $0x138] sm:$0xff]
  %v3134 = vld [vmem:[%s3 + $0x140] sm:$0xff]
  %v3135 = vld [vmem:[%s3 + $0x148] sm:$0xff]
  %v3136 = vld [vmem:[%s3 + $0x150] sm:$0xff]
  %v3137 = vld [vmem:[%s3 + $0x158] sm:$0xff]
  %v3138 = vld [vmem:[%s3 + $0x160] sm:$0xff]
  %v3139 = vld [vmem:[%s3 + $0x168] sm:$0xff]
  %v3140 = vld [vmem:[%s3 + $0x170] sm:$0xff]
  %v3141 = vld [vmem:[%s3 + $0x178] sm:$0xff]
  %v3142 = vld [vmem:[%s3 + $0x180] sm:$0xff]
  %v3143 = vld [vmem:[%s3 + $0x188] sm:$0xff]
  %v3144 = vld [vmem:[%s3 + $0x190] sm:$0xff]
  %v3145 = vld [vmem:[%s3 + $0x198] sm:$0xff]
  %v3146 = vld [vmem:[%s3 + $0x1a0] sm:$0xff]
  %v3147 = vld [vmem:[%s3 + $0x1a8] sm:$0xff]
  %v3148 = vld [vmem:[%s3 + $0x1b0] sm:$0xff]
  %v3149 = vld [vmem:[%s3 + $0x1b8] sm:$0xff]
  %v3150 = vld [vmem:[%s3 + $0x1c0] sm:$0xff]
  %v3151 = vld [vmem:[%s3 + $0x1c8] sm:$0xff]
  %v3152 = vld [vmem:[%s3 + $0x1d0] sm:$0xff]
  %v3153 = vld [vmem:[%s3 + $0x1d8] sm:$0xff]
  %v3154 = vld [vmem:[%s3 + $0x1e0] sm:$0xff]
  %v3155 = vld [vmem:[%s3 + $0x1e8] sm:$0xff]
  %v3156 = vld [vmem:[%s3 + $0x1f0] sm:$0xff]
  %v3157 = vld [vmem:[%s3 + $0x1f8] sm:$0xff]
  %3159 = vset.pattern.permute.xlu0 0
  %3160 = vperm.xlu0 %3159, %v3094
  %v3161 = vpop.permute.xlu0 %3160
  %3164 = vset.pattern.permute.xlu0 0
  %3165 = vperm.xlu0 %3164, %v3095
  %v3166 = vpop.permute.xlu0 %3165
  %3169 = vset.pattern.permute.xlu0 0
  %3170 = vperm.xlu0 %3169, %v3096
  %v3171 = vpop.permute.xlu0 %3170
  %3174 = vset.pattern.permute.xlu0 0
  %3175 = vperm.xlu0 %3174, %v3097
  %v3176 = vpop.permute.xlu0 %3175
  %3179 = vset.pattern.permute.xlu0 0
  %3180 = vperm.xlu0 %3179, %v3098
  %v3181 = vpop.permute.xlu0 %3180
  %3184 = vset.pattern.permute.xlu0 0
  %3185 = vperm.xlu0 %3184, %v3099
  %v3186 = vpop.permute.xlu0 %3185
  %3189 = vset.pattern.permute.xlu0 0
  %3190 = vperm.xlu0 %3189, %v3100
  %v3191 = vpop.permute.xlu0 %3190
  %3194 = vset.pattern.permute.xlu0 0
  %3195 = vperm.xlu0 %3194, %v3101
  %v3196 = vpop.permute.xlu0 %3195
  %3199 = vset.pattern.permute.xlu0 0
  %3200 = vperm.xlu0 %3199, %v3102
  %v3201 = vpop.permute.xlu0 %3200
  %3204 = vset.pattern.permute.xlu0 0
  %3205 = vperm.xlu0 %3204, %v3103
  %v3206 = vpop.permute.xlu0 %3205
  %3209 = vset.pattern.permute.xlu0 0
  %3210 = vperm.xlu0 %3209, %v3104
  %v3211 = vpop.permute.xlu0 %3210
  %3214 = vset.pattern.permute.xlu0 0
  %3215 = vperm.xlu0 %3214, %v3105
  %v3216 = vpop.permute.xlu0 %3215
  %3219 = vset.pattern.permute.xlu0 0
  %3220 = vperm.xlu0 %3219, %v3106
  %v3221 = vpop.permute.xlu0 %3220
  %3224 = vset.pattern.permute.xlu0 0
  %3225 = vperm.xlu0 %3224, %v3107
  %v3226 = vpop.permute.xlu0 %3225
  %3229 = vset.pattern.permute.xlu0 0
  %3230 = vperm.xlu0 %3229, %v3108
  %v3231 = vpop.permute.xlu0 %3230
  %3234 = vset.pattern.permute.xlu0 0
  %3235 = vperm.xlu0 %3234, %v3109
  %v3236 = vpop.permute.xlu0 %3235
  %3239 = vset.pattern.permute.xlu0 0
  %3240 = vperm.xlu0 %3239, %v3110
  %v3241 = vpop.permute.xlu0 %3240
  %3244 = vset.pattern.permute.xlu0 0
  %3245 = vperm.xlu0 %3244, %v3111
  %v3246 = vpop.permute.xlu0 %3245
  %3249 = vset.pattern.permute.xlu0 0
  %3250 = vperm.xlu0 %3249, %v3112
  %v3251 = vpop.permute.xlu0 %3250
  %3254 = vset.pattern.permute.xlu0 0
  %3255 = vperm.xlu0 %3254, %v3113
  %v3256 = vpop.permute.xlu0 %3255
  %3259 = vset.pattern.permute.xlu0 0
  %3260 = vperm.xlu0 %3259, %v3114
  %v3261 = vpop.permute.xlu0 %3260
  %3264 = vset.pattern.permute.xlu0 0
  %3265 = vperm.xlu0 %3264, %v3115
  %v3266 = vpop.permute.xlu0 %3265
  %3269 = vset.pattern.permute.xlu0 0
  %3270 = vperm.xlu0 %3269, %v3116
  %v3271 = vpop.permute.xlu0 %3270
  %3274 = vset.pattern.permute.xlu0 0
  %3275 = vperm.xlu0 %3274, %v3117
  %v3276 = vpop.permute.xlu0 %3275
  %3279 = vset.pattern.permute.xlu0 0
  %3280 = vperm.xlu0 %3279, %v3118
  %v3281 = vpop.permute.xlu0 %3280
  %3284 = vset.pattern.permute.xlu0 0
  %3285 = vperm.xlu0 %3284, %v3119
  %v3286 = vpop.permute.xlu0 %3285
  %3289 = vset.pattern.permute.xlu0 0
  %3290 = vperm.xlu0 %3289, %v3120
  %v3291 = vpop.permute.xlu0 %3290
  %3294 = vset.pattern.permute.xlu0 0
  %3295 = vperm.xlu0 %3294, %v3121
  %v3296 = vpop.permute.xlu0 %3295
  %3299 = vset.pattern.permute.xlu0 0
  %3300 = vperm.xlu0 %3299, %v3122
  %v3301 = vpop.permute.xlu0 %3300
  %3304 = vset.pattern.permute.xlu0 0
  %3305 = vperm.xlu0 %3304, %v3123
  %v3306 = vpop.permute.xlu0 %3305
  %3309 = vset.pattern.permute.xlu0 0
  %3310 = vperm.xlu0 %3309, %v3124
  %v3311 = vpop.permute.xlu0 %3310
  %3314 = vset.pattern.permute.xlu0 0
  %3315 = vperm.xlu0 %3314, %v3125
  %v3316 = vpop.permute.xlu0 %3315
  %3319 = vset.pattern.permute.xlu0 0
  %3320 = vperm.xlu0 %3319, %v3126
  %v3321 = vpop.permute.xlu0 %3320
  %3324 = vset.pattern.permute.xlu0 0
  %3325 = vperm.xlu0 %3324, %v3127
  %v3326 = vpop.permute.xlu0 %3325
  %3329 = vset.pattern.permute.xlu0 0
  %3330 = vperm.xlu0 %3329, %v3128
  %v3331 = vpop.permute.xlu0 %3330
  %3334 = vset.pattern.permute.xlu0 0
  %3335 = vperm.xlu0 %3334, %v3129
  %v3336 = vpop.permute.xlu0 %3335
  %3339 = vset.pattern.permute.xlu0 0
  %3340 = vperm.xlu0 %3339, %v3130
  %v3341 = vpop.permute.xlu0 %3340
  %3344 = vset.pattern.permute.xlu0 0
  %3345 = vperm.xlu0 %3344, %v3131
  %v3346 = vpop.permute.xlu0 %3345
  %3349 = vset.pattern.permute.xlu0 0
  %3350 = vperm.xlu0 %3349, %v3132
  %v3351 = vpop.permute.xlu0 %3350
  %3354 = vset.pattern.permute.xlu0 0
  %3355 = vperm.xlu0 %3354, %v3133
  %v3356 = vpop.permute.xlu0 %3355
  %3359 = vset.pattern.permute.xlu0 0
  %3360 = vperm.xlu0 %3359, %v3134
  %v3361 = vpop.permute.xlu0 %3360
  %3364 = vset.pattern.permute.xlu0 0
  %3365 = vperm.xlu0 %3364, %v3135
  %v3366 = vpop.permute.xlu0 %3365
  %3369 = vset.pattern.permute.xlu0 0
  %3370 = vperm.xlu0 %3369, %v3136
  %v3371 = vpop.permute.xlu0 %3370
  %3374 = vset.pattern.permute.xlu0 0
  %3375 = vperm.xlu0 %3374, %v3137
  %v3376 = vpop.permute.xlu0 %3375
  %3379 = vset.pattern.permute.xlu0 0
  %3380 = vperm.xlu0 %3379, %v3138
  %v3381 = vpop.permute.xlu0 %3380
  %3384 = vset.pattern.permute.xlu0 0
  %3385 = vperm.xlu0 %3384, %v3139
  %v3386 = vpop.permute.xlu0 %3385
  %3389 = vset.pattern.permute.xlu0 0
  %3390 = vperm.xlu0 %3389, %v3140
  %v3391 = vpop.permute.xlu0 %3390
  %3394 = vset.pattern.permute.xlu0 0
  %3395 = vperm.xlu0 %3394, %v3141
  %v3396 = vpop.permute.xlu0 %3395
  %3399 = vset.pattern.permute.xlu0 0
  %3400 = vperm.xlu0 %3399, %v3142
  %v3401 = vpop.permute.xlu0 %3400
  %3404 = vset.pattern.permute.xlu0 0
  %3405 = vperm.xlu0 %3404, %v3143
  %v3406 = vpop.permute.xlu0 %3405
  %3409 = vset.pattern.permute.xlu0 0
  %3410 = vperm.xlu0 %3409, %v3144
  %v3411 = vpop.permute.xlu0 %3410
  %3414 = vset.pattern.permute.xlu0 0
  %3415 = vperm.xlu0 %3414, %v3145
  %v3416 = vpop.permute.xlu0 %3415
  %3419 = vset.pattern.permute.xlu0 0
  %3420 = vperm.xlu0 %3419, %v3146
  %v3421 = vpop.permute.xlu0 %3420
  %3424 = vset.pattern.permute.xlu0 0
  %3425 = vperm.xlu0 %3424, %v3147
  %v3426 = vpop.permute.xlu0 %3425
  %3429 = vset.pattern.permute.xlu0 0
  %3430 = vperm.xlu0 %3429, %v3148
  %v3431 = vpop.permute.xlu0 %3430
  %3434 = vset.pattern.permute.xlu0 0
  %3435 = vperm.xlu0 %3434, %v3149
  %v3436 = vpop.permute.xlu0 %3435
  %3439 = vset.pattern.permute.xlu0 0
  %3440 = vperm.xlu0 %3439, %v3150
  %v3441 = vpop.permute.xlu0 %3440
  %3444 = vset.pattern.permute.xlu0 0
  %3445 = vperm.xlu0 %3444, %v3151
  %v3446 = vpop.permute.xlu0 %3445
  %3449 = vset.pattern.permute.xlu0 0
  %3450 = vperm.xlu0 %3449, %v3152
  %v3451 = vpop.permute.xlu0 %3450
  %3454 = vset.pattern.permute.xlu0 0
  %3455 = vperm.xlu0 %3454, %v3153
  %v3456 = vpop.permute.xlu0 %3455
  %3459 = vset.pattern.permute.xlu0 0
  %3460 = vperm.xlu0 %3459, %v3154
  %v3461 = vpop.permute.xlu0 %3460
  %3464 = vset.pattern.permute.xlu0 0
  %3465 = vperm.xlu0 %3464, %v3155
  %v3466 = vpop.permute.xlu0 %3465
  %3469 = vset.pattern.permute.xlu0 0
  %3470 = vperm.xlu0 %3469, %v3156
  %v3471 = vpop.permute.xlu0 %3470
  %3474 = vset.pattern.permute.xlu0 0
  %3475 = vperm.xlu0 %3474, %v3157
  %v3476 = vpop.permute.xlu0 %3475
  %v3478 = vmul.f32 %v2903, %v3161
  %v3479 = vmul.f32 %v2906, %v3166
  %v3480 = vmul.f32 %v2909, %v3171
  %v3481 = vmul.f32 %v2912, %v3176
  %v3482 = vmul.f32 %v2915, %v3181
  %v3483 = vmul.f32 %v2918, %v3186
  %v3484 = vmul.f32 %v2921, %v3191
  %v3485 = vmul.f32 %v2924, %v3196
  %v3486 = vmul.f32 %v2927, %v3201
  %v3487 = vmul.f32 %v2930, %v3206
  %v3488 = vmul.f32 %v2933, %v3211
  %v3489 = vmul.f32 %v2936, %v3216
  %v3490 = vmul.f32 %v2939, %v3221
  %v3491 = vmul.f32 %v2942, %v3226
  %v3492 = vmul.f32 %v2945, %v3231
  %v3493 = vmul.f32 %v2948, %v3236
  %v3494 = vmul.f32 %v2951, %v3241
  %v3495 = vmul.f32 %v2954, %v3246
  %v3496 = vmul.f32 %v2957, %v3251
  %v3497 = vmul.f32 %v2960, %v3256
  %v3498 = vmul.f32 %v2963, %v3261
  %v3499 = vmul.f32 %v2966, %v3266
  %v3500 = vmul.f32 %v2969, %v3271
  %v3501 = vmul.f32 %v2972, %v3276
  %v3502 = vmul.f32 %v2975, %v3281
  %v3503 = vmul.f32 %v2978, %v3286
  %v3504 = vmul.f32 %v2981, %v3291
  %v3505 = vmul.f32 %v2984, %v3296
  %v3506 = vmul.f32 %v2987, %v3301
  %v3507 = vmul.f32 %v2990, %v3306
  %v3508 = vmul.f32 %v2993, %v3311
  %v3509 = vmul.f32 %v2996, %v3316
  %v3510 = vmul.f32 %v2999, %v3321
  %v3511 = vmul.f32 %v3002, %v3326
  %v3512 = vmul.f32 %v3005, %v3331
  %v3513 = vmul.f32 %v3008, %v3336
  %v3514 = vmul.f32 %v3011, %v3341
  %v3515 = vmul.f32 %v3014, %v3346
  %v3516 = vmul.f32 %v3017, %v3351
  %v3517 = vmul.f32 %v3020, %v3356
  %v3518 = vmul.f32 %v3023, %v3361
  %v3519 = vmul.f32 %v3026, %v3366
  %v3520 = vmul.f32 %v3029, %v3371
  %v3521 = vmul.f32 %v3032, %v3376
  %v3522 = vmul.f32 %v3035, %v3381
  %v3523 = vmul.f32 %v3038, %v3386
  %v3524 = vmul.f32 %v3041, %v3391
  %v3525 = vmul.f32 %v3044, %v3396
  %v3526 = vmul.f32 %v3047, %v3401
  %v3527 = vmul.f32 %v3050, %v3406
  %v3528 = vmul.f32 %v3053, %v3411
  %v3529 = vmul.f32 %v3056, %v3416
  %v3530 = vmul.f32 %v3059, %v3421
  %v3531 = vmul.f32 %v3062, %v3426
  %v3532 = vmul.f32 %v3065, %v3431
  %v3533 = vmul.f32 %v3068, %v3436
  %v3534 = vmul.f32 %v3071, %v3441
  %v3535 = vmul.f32 %v3074, %v3446
  %v3536 = vmul.f32 %v3077, %v3451
  %v3537 = vmul.f32 %v3080, %v3456
  %v3538 = vmul.f32 %v3083, %v3461
  %v3539 = vmul.f32 %v3086, %v3466
  %v3540 = vmul.f32 %v3089, %v3471
  %v3541 = vmul.f32 %v3092, %v3476
  %3542 = vst [vmem:[%s4] sm:$0xff] %v3478
  %3543 = vst [vmem:[%s4 + $0x8] sm:$0xff] %v3479
  %3544 = vst [vmem:[%s4 + $0x10] sm:$0xff] %v3480
  %3545 = vst [vmem:[%s4 + $0x18] sm:$0xff] %v3481
  %3546 = vst [vmem:[%s4 + $0x20] sm:$0xff] %v3482
  %3547 = vst [vmem:[%s4 + $0x28] sm:$0xff] %v3483
  %3548 = vst [vmem:[%s4 + $0x30] sm:$0xff] %v3484
  %3549 = vst [vmem:[%s4 + $0x38] sm:$0xff] %v3485
  %3550 = vst [vmem:[%s4 + $0x40] sm:$0xff] %v3486
  %3551 = vst [vmem:[%s4 + $0x48] sm:$0xff] %v3487
  %3552 = vst [vmem:[%s4 + $0x50] sm:$0xff] %v3488
  %3553 = vst [vmem:[%s4 + $0x58] sm:$0xff] %v3489
  %3554 = vst [vmem:[%s4 + $0x60] sm:$0xff] %v3490
  %3555 = vst [vmem:[%s4 + $0x68] sm:$0xff] %v3491
  %3556 = vst [vmem:[%s4 + $0x70] sm:$0xff] %v3492
  %3557 = vst [vmem:[%s4 + $0x78] sm:$0xff] %v3493
  %3558 = vst [vmem:[%s4 + $0x80] sm:$0xff] %v3494
  %3559 = vst [vmem:[%s4 + $0x88] sm:$0xff] %v3495
  %3560 = vst [vmem:[%s4 + $0x90] sm:$0xff] %v3496
  %3561 = vst [vmem:[%s4 + $0x98] sm:$0xff] %v3497
  %3562 = vst [vmem:[%s4 + $0xa0] sm:$0xff] %v3498
  %3563 = vst [vmem:[%s4 + $0xa8] sm:$0xff] %v3499
  %3564 = vst [vmem:[%s4 + $0xb0] sm:$0xff] %v3500
  %3565 = vst [vmem:[%s4 + $0xb8] sm:$0xff] %v3501
  %3566 = vst [vmem:[%s4 + $0xc0] sm:$0xff] %v3502
  %3567 = vst [vmem:[%s4 + $0xc8] sm:$0xff] %v3503
  %3568 = vst [vmem:[%s4 + $0xd0] sm:$0xff] %v3504
  %3569 = vst [vmem:[%s4 + $0xd8] sm:$0xff] %v3505
  %3570 = vst [vmem:[%s4 + $0xe0] sm:$0xff] %v3506
  %3571 = vst [vmem:[%s4 + $0xe8] sm:$0xff] %v3507
  %3572 = vst [vmem:[%s4 + $0xf0] sm:$0xff] %v3508
  %3573 = vst [vmem:[%s4 + $0xf8] sm:$0xff] %v3509
  %3574 = vst [vmem:[%s4 + $0x100] sm:$0xff] %v3510
  %3575 = vst [vmem:[%s4 + $0x108] sm:$0xff] %v3511
  %3576 = vst [vmem:[%s4 + $0x110] sm:$0xff] %v3512
  %3577 = vst [vmem:[%s4 + $0x118] sm:$0xff] %v3513
  %3578 = vst [vmem:[%s4 + $0x120] sm:$0xff] %v3514
  %3579 = vst [vmem:[%s4 + $0x128] sm:$0xff] %v3515
  %3580 = vst [vmem:[%s4 + $0x130] sm:$0xff] %v3516
  %3581 = vst [vmem:[%s4 + $0x138] sm:$0xff] %v3517
  %3582 = vst [vmem:[%s4 + $0x140] sm:$0xff] %v3518
  %3583 = vst [vmem:[%s4 + $0x148] sm:$0xff] %v3519
  %3584 = vst [vmem:[%s4 + $0x150] sm:$0xff] %v3520
  %3585 = vst [vmem:[%s4 + $0x158] sm:$0xff] %v3521
  %3586 = vst [vmem:[%s4 + $0x160] sm:$0xff] %v3522
  %3587 = vst [vmem:[%s4 + $0x168] sm:$0xff] %v3523
  %3588 = vst [vmem:[%s4 + $0x170] sm:$0xff] %v3524
  %3589 = vst [vmem:[%s4 + $0x178] sm:$0xff] %v3525
  %3590 = vst [vmem:[%s4 + $0x180] sm:$0xff] %v3526
  %3591 = vst [vmem:[%s4 + $0x188] sm:$0xff] %v3527
  %3592 = vst [vmem:[%s4 + $0x190] sm:$0xff] %v3528
  %3593 = vst [vmem:[%s4 + $0x198] sm:$0xff] %v3529
  %3594 = vst [vmem:[%s4 + $0x1a0] sm:$0xff] %v3530
  %3595 = vst [vmem:[%s4 + $0x1a8] sm:$0xff] %v3531
  %3596 = vst [vmem:[%s4 + $0x1b0] sm:$0xff] %v3532
  %3597 = vst [vmem:[%s4 + $0x1b8] sm:$0xff] %v3533
  %3598 = vst [vmem:[%s4 + $0x1c0] sm:$0xff] %v3534
  %3599 = vst [vmem:[%s4 + $0x1c8] sm:$0xff] %v3535
  %3600 = vst [vmem:[%s4 + $0x1d0] sm:$0xff] %v3536
  %3601 = vst [vmem:[%s4 + $0x1d8] sm:$0xff] %v3537
  %3602 = vst [vmem:[%s4 + $0x1e0] sm:$0xff] %v3538
  %3603 = vst [vmem:[%s4 + $0x1e8] sm:$0xff] %v3539
  %3604 = vst [vmem:[%s4 + $0x1f0] sm:$0xff] %v3540
  %3605 = vst [vmem:[%s4 + $0x1f8] sm:$0xff] %v3541
  // Predicated region
  $region18: #{nir_feat_extrator_forward.3} parent=0 // pred_check
    _
  $region19: #{nir_feat_extrator_forward.3} parent=0 // pred_check_branch
    %3607 = sbr.rel (0) target = $region21
  $region20: #{nir_feat_extrator_forward.3} parent=0 // pred_region
    _
  $region21: #{nir_feat_extrator_forward.3} parent=0 // pred_fallthru
    _
  // Predicated region
  $region22: #{nir_feat_extrator_forward.3} parent=0 // pred_check
    _
  $region23: #{nir_feat_extrator_forward.3} parent=0 // pred_check_branch
    %3609 = sbr.rel (0) target = $region25
  $region24: #{nir_feat_extrator_forward.3} parent=0 // pred_region
    _
  $region25: #{nir_feat_extrator_forward.3} parent=0 // pred_fallthru
    _

</llo_original>
